<compile_context>
chip_gen: v6e
topology: v6e:2x2x1
jax: 0.10.0
libtpu: 0.0.40
codegen_flags: <defaults>
</compile_context>

<pallas_src>
import functools

import jax
import jax.numpy as jnp
import numpy as np
from jax.experimental import pallas as pl
from jax.experimental.pallas import tpu as pltpu


# ---------------------------------------------------------------------------
# Pallas kernel: one (batch-packed) block per grid step, everything fused.
# ---------------------------------------------------------------------------
def _star_kernel(x_ref, w3_ref, wff_ref, wg_ref, dw_ref, bc_ref, bff_ref,
                 out_ref, *, width, height, hw, lanes, c3, mxu_dtype):
    f32 = jnp.float32

    # ---- lane -> (y, x) coordinates within each packed sample (once per step)
    pos = jax.lax.broadcasted_iota(jnp.int32, (1, lanes), 1)
    if (hw & (hw - 1) == 0) and (width & (width - 1) == 0):
        q = pos & (hw - 1)                       # position within one sample
        xx = q & (width - 1)
        yy = q >> (width.bit_length() - 1)
    else:
        q = pos % hw
        xx = q % width
        yy = q // width

    def tap_masks(ksize):
        """Per-tap {0,1} f32 masks (or None when the tap is always valid)."""
        r = ksize // 2
        masks = []
        for ky in range(ksize):
            for kx in range(ksize):
                dy, dx = ky - r, kx - r
                conds = []
                if dy < 0:
                    conds.append(yy >= -dy)
                elif dy > 0:
                    conds.append(yy < height - dy)
                if dx < 0:
                    conds.append(xx >= -dx)
                elif dx > 0:
                    conds.append(xx < width - dx)
                if not conds:
                    masks.append(None)
                else:
                    m = conds[0]
                    for cnd in conds[1:]:
                        m = m & cnd
                    masks.append(jnp.where(m, 1.0, 0.0).astype(f32))
        return masks

    def shifted(v, off, m):
        # out[:, p] = v[:, (p + off) % lanes], then boundary-masked.  Wrapped
        # entries (incl. across packed samples) are always masked to zero.
        s = (-off) % lanes
        t = v if s == 0 else pltpu.roll(v, shift=s, axis=1)
        return t if m is None else t * m

    # ---- Star.convbn: 3x3 conv + folded BN1 as ONE fused MXU matmul ---------
    x = x_ref[...]                                          # (Cin_p, lanes) f32
    m3 = tap_masks(3)
    pieces = []
    for k in range(9):
        ky, kx = divmod(k, 3)
        off = (ky - 1) * width + (kx - 1)
        pieces.append(shifted(x, off, m3[k]))
    xs = jnp.concatenate(pieces, axis=0).astype(mxu_dtype)  # (9*Cin_p, lanes)
    y0 = jnp.dot(w3_ref[...], xs, preferred_element_type=f32) + bc_ref[0]

    # ---- depthwise 7x7: roll + mask + per-channel FMA, 4 partial accumulators
    m7 = tap_masks(7)

    def dwconv7(y, dw, bias):                               # y (C,HW·B), dw (C,49)
        accs = [None, None, None, None]
        for k in range(49):
            ky, kx = divmod(k, 7)
            off = (ky - 3) * width + (kx - 3)
            term = shifted(y, off, m7[k]) * dw[:, k:k + 1]  # (C,lanes)*(C,1)
            i = k % 4
            accs[i] = term if accs[i] is None else accs[i] + term
        return (accs[0] + accs[1]) + (accs[2] + accs[3]) + bias

    # Block.dwconv (+ folded BN2)
    y1 = dwconv7(y0, dw_ref[0], bc_ref[1])                  # (C, lanes)

    # ---- f1|f2 fused into one matmul, star op, g (1x1 + folded BN3) ---------
    ab = jnp.dot(wff_ref[...], y1.astype(mxu_dtype),
                 preferred_element_type=f32) + bff_ref[...]  # (2*3C, lanes)
    a, b = ab[:c3], ab[c3:]
    s = (a * jax.nn.sigmoid(a)) * b                          # SiLU(a) * b
    u = jnp.dot(wg_ref[...], s.astype(mxu_dtype),
                preferred_element_type=f32) + bc_ref[2]      # (C, lanes)

    # ---- Block.dwconv2 (no BN) + residual, lane-dense store ------------------
    v = dwconv7(u, dw_ref[1], bc_ref[3])
    out_ref[...] = y0 + v


# ---------------------------------------------------------------------------
# Host-side helpers
# ---------------------------------------------------------------------------
def _fold_bn(w, b, gamma, beta, mean, var, eps):
    """Fold an inference-mode BatchNorm into the preceding conv's (w, b)."""
    s = gamma / jnp.sqrt(var + eps)
    return w * s[:, None, None, None], (b - mean) * s + beta


def _pick_bblk(n, hw, target_lanes=1024):
    """Pack samples into the lane dim, but keep the grid even/>=2 (v7x 2 TCs)."""
    bb = max(1, min(n, target_lanes // max(hw, 1)))
    while bb > 1 and (n % bb != 0 or (n // bb) < 2):
        bb -= 1
    return bb


def star_forward(x, p, *, eps=1e-5, b_blk=None, mxu_dtype=jnp.bfloat16):
    """x: (N, Cin, H, W) float32 NCHW.  Returns (N, C, H, W) float32."""
    N, Cin, H, W = x.shape
    C = p["conv1_w"].shape[0]
    C3 = p["f1_w"].shape[0]
    HW = H * W
    f32 = jnp.float32

    if b_blk is None:
        b_blk = _pick_bblk(N, HW)
    assert N % b_blk == 0
    G = N // b_blk
    lanes = b_blk * HW
    Cin_p = ((Cin + 7) // 8) * 8          # sublane-align so the stacked operand
                                          # concatenates at 8-row boundaries

    # Fold the three inference-mode BatchNorms into their convolutions.
    w1f, b1f = _fold_bn(p["conv1_w"], p["conv1_b"],
                        p["bn1_g"], p["bn1_b"], p["bn1_m"], p["bn1_v"], eps)
    dw1f, bdw1f = _fold_bn(p["dw1_w"], p["dw1_b"],
                           p["bn2_g"], p["bn2_b"], p["bn2_m"], p["bn2_v"], eps)
    wgf, bgf = _fold_bn(p["g_w"], p["g_b"],
                        p["bn3_g"], p["bn3_b"], p["bn3_m"], p["bn3_v"], eps)

    # --- pack weights: MXU operands in mxu_dtype, elementwise operands in f32.
    w3pack = jnp.transpose(w1f, (0, 2, 3, 1)).reshape(C, 9, Cin)      # (C, tap, ci)
    if Cin_p != Cin:
        w3pack = jnp.pad(w3pack, ((0, 0), (0, 0), (0, Cin_p - Cin)))
    w3pack = w3pack.reshape(C, 9 * Cin_p).astype(mxu_dtype)           # (C, 9*Cin_p)

    wffpack = jnp.concatenate([p["f1_w"].reshape(C3, C),
                               p["f2_w"].reshape(C3, C)], 0).astype(mxu_dtype)  # (2*3C, C)
    wgpack = wgf.reshape(C, C3).astype(mxu_dtype)                     # (C, 3C)
    dwp = jnp.stack([dw1f.reshape(C, 49),
                     p["dw2_w"].reshape(C, 49)]).astype(f32)          # (2, C, 49)
    bc = jnp.stack([b1f, bdw1f, bgf, p["dw2_b"]]).astype(f32)[:, :, None]  # (4, C, 1)
    bff = jnp.concatenate([p["f1_b"], p["f2_b"]]).astype(f32)[:, None]     # (2*3C, 1)

    # --- input layout: channels-first, lane dim = b_blk * H * W (samples
    #     contiguous in lanes; masks zero any cross-sample roll wrap).
    x_flat = x.reshape(N, Cin, HW).astype(f32)
    if Cin_p != Cin:
        x_flat = jnp.pad(x_flat, ((0, 0), (0, Cin_p - Cin), (0, 0)))
    if b_blk == 1:
        xp = x_flat.reshape(G, Cin_p, lanes)
    else:
        xp = (x_flat.reshape(G, b_blk, Cin_p, HW)
              .transpose(0, 2, 1, 3).reshape(G, Cin_p, lanes))

    kernel = functools.partial(_star_kernel, width=W, height=H, hw=HW,
                               lanes=lanes, c3=C3, mxu_dtype=mxu_dtype)

    out = pl.pallas_call(
        kernel,
        grid=(G,),
        in_specs=[
            pl.BlockSpec((None, Cin_p, lanes), lambda i: (i, 0, 0)),  # x block
            pl.BlockSpec((C, 9 * Cin_p), lambda i: (0, 0)),           # fused 3x3 weight (BN1 folded)
            pl.BlockSpec((2 * C3, C), lambda i: (0, 0)),              # f1|f2 packed weight
            pl.BlockSpec((C, C3), lambda i: (0, 0)),                  # g weight (BN3 folded)
            pl.BlockSpec((2, C, 49), lambda i: (0, 0, 0)),            # depthwise filters
            pl.BlockSpec((4, C, 1), lambda i: (0, 0, 0)),             # per-channel biases
            pl.BlockSpec((2 * C3, 1), lambda i: (0, 0)),              # f1|f2 biases
        ],
        out_specs=pl.BlockSpec((None, C, lanes), lambda i: (i, 0, 0)),
        out_shape=jax.ShapeDtypeStruct((G, C, lanes), f32),
        compiler_params=pltpu.CompilerParams(
            dimension_semantics=("parallel",),
            vmem_limit_bytes=32 * 1024 * 1024),
    )(xp, w3pack, wffpack, wgpack, dwp, bc, bff)

    if b_blk == 1:
        # (N, C, HW) is already NCHW up to a free reshape (no transpose).
        return out.reshape(N, C, H, W)
    return (out.reshape(G, C, b_blk, HW).transpose(0, 2, 1, 3)
            .reshape(N, C, H, W))


# ---------------------------------------------------------------------------
# Pure-JAX reference (matches PyTorch Star in inference mode)
# ---------------------------------------------------------------------------
def star_reference(x, p, *, eps=1e-5):
    hi = jax.lax.Precision.HIGHEST

    def conv(x, w, b, pad, groups=1):
        y = jax.lax.conv_general_dilated(
            x, w, (1, 1), ((pad, pad), (pad, pad)),
            dimension_numbers=("NCHW", "OIHW", "NCHW"),
            feature_group_count=groups, precision=hi)
        return y + b[None, :, None, None]

    def bn(y, g, b, m, v):
        s = g / jnp.sqrt(v + eps)
        return (y - m[None, :, None, None]) * s[None, :, None, None] \
            + b[None, :, None, None]

    y0 = bn(conv(x, p["conv1_w"], p["conv1_b"], 1),
            p["bn1_g"], p["bn1_b"], p["bn1_m"], p["bn1_v"])
    C = y0.shape[1]
    t = bn(conv(y0, p["dw1_w"], p["dw1_b"], 3, groups=C),
           p["bn2_g"], p["bn2_b"], p["bn2_m"], p["bn2_v"])
    a = conv(t, p["f1_w"], p["f1_b"], 0)
    b = conv(t, p["f2_w"], p["f2_b"], 0)
    s = jax.nn.silu(a) * b
    u = bn(conv(s, p["g_w"], p["g_b"], 0),
           p["bn3_g"], p["bn3_b"], p["bn3_m"], p["bn3_v"])
    v = conv(u, p["dw2_w"], p["dw2_b"], 3, groups=C)
    return y0 + v


# ---------------------------------------------------------------------------
if __name__ == "__main__":
    N, Cin, C, H, W = 2, 4, 8, 16, 16
    C3 = 3 * C

    keys = iter(jax.random.split(jax.random.PRNGKey(0), 32))

    def nrm(shape, scale=0.1):
        return scale * jax.random.normal(next(keys), shape, dtype=jnp.float32)

    def bn_params(c):
        return (1.0 + nrm((c,)),                                         # gamma
                nrm((c,)),                                               # beta
                nrm((c,)),                                               # running mean
                0.5 + jax.random.uniform(next(keys), (c,), dtype=jnp.float32))  # var

    x = jax.random.normal(next(keys), (N, Cin, H, W), dtype=jnp.float32)

    p = {}
    p["conv1_w"] = nrm((C, Cin, 3, 3)); p["conv1_b"] = nrm((C,))
    p["bn1_g"], p["bn1_b"], p["bn1_m"], p["bn1_v"] = bn_params(C)
    p["dw1_w"] = nrm((C, 1, 7, 7));     p["dw1_b"] = nrm((C,))
    p["bn2_g"], p["bn2_b"], p["bn2_m"], p["bn2_v"] = bn_params(C)
    p["f1_w"] = nrm((C3, C, 1, 1));     p["f1_b"] = nrm((C3,))
    p["f2_w"] = nrm((C3, C, 1, 1));     p["f2_b"] = nrm((C3,))
    p["g_w"] = nrm((C, C3, 1, 1));      p["g_b"] = nrm((C,))
    p["bn3_g"], p["bn3_b"], p["bn3_m"], p["bn3_v"] = bn_params(C)
    p["dw2_w"] = nrm((C, 1, 7, 7));     p["dw2_b"] = nrm((C,))

    ref = jax.block_until_ready(star_reference(x, p))

    # Default (bf16 MXU operands, f32 accumulation) — production path.
    out = jax.block_until_ready(star_forward(x, p))
    np.testing.assert_allclose(np.asarray(out), np.asarray(ref),
                               rtol=2e-2, atol=2e-2)

    # Exact-algorithm check: f32 MXU operands, batch-packing path exercised.
    out_f32 = jax.block_until_ready(
        star_forward(x, p, b_blk=2, mxu_dtype=jnp.float32))
    np.testing.assert_allclose(np.asarray(out_f32), np.asarray(ref),
                               rtol=1e-3, atol=1e-3)

    print("KERNEL_OK")
</pallas_src>

<mosaic_0001>
module attributes {stable_mosaic.version = 11 : i64} {
  func.func @_star_kernel(%arg0: i32, %arg1: memref<1x8x256xf32, #tpu.memory_space<vmem>>, %arg2: memref<8x72xbf16, #tpu.memory_space<vmem>>, %arg3: memref<48x8xbf16, #tpu.memory_space<vmem>>, %arg4: memref<8x24xbf16, #tpu.memory_space<vmem>>, %arg5: memref<2x8x49xf32, #tpu.memory_space<vmem>>, %arg6: memref<4x8x1xf32, #tpu.memory_space<vmem>>, %arg7: memref<48x1xf32, #tpu.memory_space<vmem>>, %arg8: memref<1x8x256xf32, #tpu.memory_space<vmem>>) attributes {dimension_semantics = [#tpu.dimension_semantics<parallel>], iteration_bounds = array<i64: 2>, scalar_prefetch = 0 : i64, scratch_operands = 0 : i64, tpu.core_type = #tpu.core_type<tc>, window_params = [{transform_indices = @transform_0, window_bounds = array<i64: 1, 8, 256>}, {pipeline_mode = #tpu.pipeline_mode<synchronous>, transform_indices = @transform_1, window_bounds = array<i64: 8, 72>}, {pipeline_mode = #tpu.pipeline_mode<synchronous>, transform_indices = @transform_2, window_bounds = array<i64: 48, 8>}, {pipeline_mode = #tpu.pipeline_mode<synchronous>, transform_indices = @transform_3, window_bounds = array<i64: 8, 24>}, {pipeline_mode = #tpu.pipeline_mode<synchronous>, transform_indices = @transform_4, window_bounds = array<i64: 2, 8, 49>}, {pipeline_mode = #tpu.pipeline_mode<synchronous>, transform_indices = @transform_5, window_bounds = array<i64: 4, 8, 1>}, {pipeline_mode = #tpu.pipeline_mode<synchronous>, transform_indices = @transform_6, window_bounds = array<i64: 48, 1>}, {transform_indices = @transform_7, window_bounds = array<i64: 1, 8, 256>}]} {
    %0 = tpu.iota {dimensions = array<i32: 1>} : vector<1x256xi32>
    %c255_i32 = arith.constant 255 : i32
    %1 = vector.broadcast %c255_i32 : i32 to vector<1x256xi32>
    %2 = arith.andi %0, %1 : vector<1x256xi32>
    %c15_i32 = arith.constant 15 : i32
    %3 = vector.broadcast %c15_i32 : i32 to vector<1x256xi32>
    %4 = arith.andi %2, %3 : vector<1x256xi32>
    %c4_i32 = arith.constant 4 : i32
    %5 = vector.broadcast %c4_i32 : i32 to vector<1x256xi32>
    %6 = arith.shrsi %2, %5 : vector<1x256xi32>
    %c0 = arith.constant 0 : index
    %c0_0 = arith.constant 0 : index
    %c0_1 = arith.constant 0 : index
    %7 = vector.load %arg1[%c0, %c0_0, %c0_1] : memref<1x8x256xf32, #tpu.memory_space<vmem>>, vector<1x8x256xf32>
    %8 = vector.shape_cast %7 : vector<1x8x256xf32> to vector<8x256xf32>
    %c1_i32 = arith.constant 1 : i32
    %9 = vector.broadcast %c1_i32 : i32 to vector<1x256xi32>
    %10 = arith.cmpi sge, %6, %9 : vector<1x256xi32>
    %c1_i32_2 = arith.constant 1 : i32
    %11 = vector.broadcast %c1_i32_2 : i32 to vector<1x256xi32>
    %12 = arith.cmpi sge, %4, %11 : vector<1x256xi32>
    %13 = arith.andi %10, %12 : vector<1x256xi1>
    %cst = arith.constant 1.000000e+00 : f32
    %cst_3 = arith.constant 0.000000e+00 : f32
    %14 = vector.broadcast %cst : f32 to vector<1x256xf32>
    %15 = vector.broadcast %cst_3 : f32 to vector<1x256xf32>
    %16 = arith.select %13, %14, %15 : vector<1x256xi1>, vector<1x256xf32>
    %c1_i32_4 = arith.constant 1 : i32
    %17 = vector.broadcast %c1_i32_4 : i32 to vector<1x256xi32>
    %18 = arith.cmpi sge, %6, %17 : vector<1x256xi32>
    %cst_5 = arith.constant 1.000000e+00 : f32
    %cst_6 = arith.constant 0.000000e+00 : f32
    %19 = vector.broadcast %cst_5 : f32 to vector<1x256xf32>
    %20 = vector.broadcast %cst_6 : f32 to vector<1x256xf32>
    %21 = arith.select %18, %19, %20 : vector<1x256xi1>, vector<1x256xf32>
    %c1_i32_7 = arith.constant 1 : i32
    %22 = vector.broadcast %c1_i32_7 : i32 to vector<1x256xi32>
    %23 = arith.cmpi sge, %6, %22 : vector<1x256xi32>
    %c15_i32_8 = arith.constant 15 : i32
    %24 = vector.broadcast %c15_i32_8 : i32 to vector<1x256xi32>
    %25 = arith.cmpi slt, %4, %24 : vector<1x256xi32>
    %26 = arith.andi %23, %25 : vector<1x256xi1>
    %cst_9 = arith.constant 1.000000e+00 : f32
    %cst_10 = arith.constant 0.000000e+00 : f32
    %27 = vector.broadcast %cst_9 : f32 to vector<1x256xf32>
    %28 = vector.broadcast %cst_10 : f32 to vector<1x256xf32>
    %29 = arith.select %26, %27, %28 : vector<1x256xi1>, vector<1x256xf32>
    %c1_i32_11 = arith.constant 1 : i32
    %30 = vector.broadcast %c1_i32_11 : i32 to vector<1x256xi32>
    %31 = arith.cmpi sge, %4, %30 : vector<1x256xi32>
    %cst_12 = arith.constant 1.000000e+00 : f32
    %cst_13 = arith.constant 0.000000e+00 : f32
    %32 = vector.broadcast %cst_12 : f32 to vector<1x256xf32>
    %33 = vector.broadcast %cst_13 : f32 to vector<1x256xf32>
    %34 = arith.select %31, %32, %33 : vector<1x256xi1>, vector<1x256xf32>
    %c15_i32_14 = arith.constant 15 : i32
    %35 = vector.broadcast %c15_i32_14 : i32 to vector<1x256xi32>
    %36 = arith.cmpi slt, %4, %35 : vector<1x256xi32>
    %cst_15 = arith.constant 1.000000e+00 : f32
    %cst_16 = arith.constant 0.000000e+00 : f32
    %37 = vector.broadcast %cst_15 : f32 to vector<1x256xf32>
    %38 = vector.broadcast %cst_16 : f32 to vector<1x256xf32>
    %39 = arith.select %36, %37, %38 : vector<1x256xi1>, vector<1x256xf32>
    %c15_i32_17 = arith.constant 15 : i32
    %40 = vector.broadcast %c15_i32_17 : i32 to vector<1x256xi32>
    %41 = arith.cmpi slt, %6, %40 : vector<1x256xi32>
    %c1_i32_18 = arith.constant 1 : i32
    %42 = vector.broadcast %c1_i32_18 : i32 to vector<1x256xi32>
    %43 = arith.cmpi sge, %4, %42 : vector<1x256xi32>
    %44 = arith.andi %41, %43 : vector<1x256xi1>
    %cst_19 = arith.constant 1.000000e+00 : f32
    %cst_20 = arith.constant 0.000000e+00 : f32
    %45 = vector.broadcast %cst_19 : f32 to vector<1x256xf32>
    %46 = vector.broadcast %cst_20 : f32 to vector<1x256xf32>
    %47 = arith.select %44, %45, %46 : vector<1x256xi1>, vector<1x256xf32>
    %c15_i32_21 = arith.constant 15 : i32
    %48 = vector.broadcast %c15_i32_21 : i32 to vector<1x256xi32>
    %49 = arith.cmpi slt, %6, %48 : vector<1x256xi32>
    %cst_22 = arith.constant 1.000000e+00 : f32
    %cst_23 = arith.constant 0.000000e+00 : f32
    %50 = vector.broadcast %cst_22 : f32 to vector<1x256xf32>
    %51 = vector.broadcast %cst_23 : f32 to vector<1x256xf32>
    %52 = arith.select %49, %50, %51 : vector<1x256xi1>, vector<1x256xf32>
    %c15_i32_24 = arith.constant 15 : i32
    %53 = vector.broadcast %c15_i32_24 : i32 to vector<1x256xi32>
    %54 = arith.cmpi slt, %6, %53 : vector<1x256xi32>
    %c15_i32_25 = arith.constant 15 : i32
    %55 = vector.broadcast %c15_i32_25 : i32 to vector<1x256xi32>
    %56 = arith.cmpi slt, %4, %55 : vector<1x256xi32>
    %57 = arith.andi %54, %56 : vector<1x256xi1>
    %cst_26 = arith.constant 1.000000e+00 : f32
    %cst_27 = arith.constant 0.000000e+00 : f32
    %58 = vector.broadcast %cst_26 : f32 to vector<1x256xf32>
    %59 = vector.broadcast %cst_27 : f32 to vector<1x256xf32>
    %60 = arith.select %57, %58, %59 : vector<1x256xi1>, vector<1x256xf32>
    %c17_i32 = arith.constant 17 : i32
    %61 = tpu.dynamic_rotate %8 by %c17_i32 dim 1 : vector<8x256xf32>, i32 -> vector<8x256xf32>
    %62 = vector.broadcast %16 : vector<1x256xf32> to vector<8x256xf32>
    %63 = arith.mulf %61, %62 : vector<8x256xf32>
    %c16_i32 = arith.constant 16 : i32
    %64 = tpu.dynamic_rotate %8 by %c16_i32 dim 1 : vector<8x256xf32>, i32 -> vector<8x256xf32>
    %65 = vector.broadcast %21 : vector<1x256xf32> to vector<8x256xf32>
    %66 = arith.mulf %64, %65 : vector<8x256xf32>
    %c15_i32_28 = arith.constant 15 : i32
    %67 = tpu.dynamic_rotate %8 by %c15_i32_28 dim 1 : vector<8x256xf32>, i32 -> vector<8x256xf32>
    %68 = vector.broadcast %29 : vector<1x256xf32> to vector<8x256xf32>
    %69 = arith.mulf %67, %68 : vector<8x256xf32>
    %c1_i32_29 = arith.constant 1 : i32
    %70 = tpu.dynamic_rotate %8 by %c1_i32_29 dim 1 : vector<8x256xf32>, i32 -> vector<8x256xf32>
    %71 = vector.broadcast %34 : vector<1x256xf32> to vector<8x256xf32>
    %72 = arith.mulf %70, %71 : vector<8x256xf32>
    %c255_i32_30 = arith.constant 255 : i32
    %73 = tpu.dynamic_rotate %8 by %c255_i32_30 dim 1 : vector<8x256xf32>, i32 -> vector<8x256xf32>
    %74 = vector.broadcast %39 : vector<1x256xf32> to vector<8x256xf32>
    %75 = arith.mulf %73, %74 : vector<8x256xf32>
    %c241_i32 = arith.constant 241 : i32
    %76 = tpu.dynamic_rotate %8 by %c241_i32 dim 1 : vector<8x256xf32>, i32 -> vector<8x256xf32>
    %77 = vector.broadcast %47 : vector<1x256xf32> to vector<8x256xf32>
    %78 = arith.mulf %76, %77 : vector<8x256xf32>
    %c240_i32 = arith.constant 240 : i32
    %79 = tpu.dynamic_rotate %8 by %c240_i32 dim 1 : vector<8x256xf32>, i32 -> vector<8x256xf32>
    %80 = vector.broadcast %52 : vector<1x256xf32> to vector<8x256xf32>
    %81 = arith.mulf %79, %80 : vector<8x256xf32>
    %c239_i32 = arith.constant 239 : i32
    %82 = tpu.dynamic_rotate %8 by %c239_i32 dim 1 : vector<8x256xf32>, i32 -> vector<8x256xf32>
    %83 = vector.broadcast %60 : vector<1x256xf32> to vector<8x256xf32>
    %84 = arith.mulf %82, %83 : vector<8x256xf32>
    %85 = tpu.concatenate %63, %66, %69, %72, %8, %75, %78, %81, %84 in 0 : vector<8x256xf32>, vector<8x256xf32>, vector<8x256xf32>, vector<8x256xf32>, vector<8x256xf32>, vector<8x256xf32>, vector<8x256xf32>, vector<8x256xf32>, vector<8x256xf32> -> vector<72x256xf32>
    %86 = arith.truncf %85 : vector<72x256xf32> to vector<72x256xbf16>
    %c0_31 = arith.constant 0 : index
    %c0_32 = arith.constant 0 : index
    %87 = vector.load %arg2[%c0_31, %c0_32] : memref<8x72xbf16, #tpu.memory_space<vmem>>, vector<8x72xbf16>
    %cst_33 = arith.constant dense<0.000000e+00> : vector<8x256xf32>
    %88 = tpu.matmul %87, %86, %cst_33 {dimension_numbers = #tpu.dot_dimension_numbers<[1], [0], [0], [1], [0, 0, 1, 1], [], []>} : vector<8x72xbf16>, vector<72x256xbf16>, vector<8x256xf32> -> vector<8x256xf32>
    %c0_34 = arith.constant 0 : index
    %c0_35 = arith.constant 0 : index
    %c0_36 = arith.constant 0 : index
    %89 = vector.load %arg6[%c0_34, %c0_35, %c0_36] : memref<4x8x1xf32, #tpu.memory_space<vmem>>, vector<1x8x1xf32>
    %90 = vector.shape_cast %89 : vector<1x8x1xf32> to vector<8x1xf32>
    %91 = vector.broadcast %90 : vector<8x1xf32> to vector<8x256xf32>
    %92 = arith.addf %88, %91 : vector<8x256xf32>
    %c3_i32 = arith.constant 3 : i32
    %93 = vector.broadcast %c3_i32 : i32 to vector<1x256xi32>
    %94 = arith.cmpi sge, %6, %93 : vector<1x256xi32>
    %c3_i32_37 = arith.constant 3 : i32
    %95 = vector.broadcast %c3_i32_37 : i32 to vector<1x256xi32>
    %96 = arith.cmpi sge, %4, %95 : vector<1x256xi32>
    %97 = arith.andi %94, %96 : vector<1x256xi1>
    %cst_38 = arith.constant 1.000000e+00 : f32
    %cst_39 = arith.constant 0.000000e+00 : f32
    %98 = vector.broadcast %cst_38 : f32 to vector<1x256xf32>
    %99 = vector.broadcast %cst_39 : f32 to vector<1x256xf32>
    %100 = arith.select %97, %98, %99 : vector<1x256xi1>, vector<1x256xf32>
    %c3_i32_40 = arith.constant 3 : i32
    %101 = vector.broadcast %c3_i32_40 : i32 to vector<1x256xi32>
    %102 = arith.cmpi sge, %6, %101 : vector<1x256xi32>
    %c2_i32 = arith.constant 2 : i32
    %103 = vector.broadcast %c2_i32 : i32 to vector<1x256xi32>
    %104 = arith.cmpi sge, %4, %103 : vector<1x256xi32>
    %105 = arith.andi %102, %104 : vector<1x256xi1>
    %cst_41 = arith.constant 1.000000e+00 : f32
    %cst_42 = arith.constant 0.000000e+00 : f32
    %106 = vector.broadcast %cst_41 : f32 to vector<1x256xf32>
    %107 = vector.broadcast %cst_42 : f32 to vector<1x256xf32>
    %108 = arith.select %105, %106, %107 : vector<1x256xi1>, vector<1x256xf32>
    %c3_i32_43 = arith.constant 3 : i32
    %109 = vector.broadcast %c3_i32_43 : i32 to vector<1x256xi32>
    %110 = arith.cmpi sge, %6, %109 : vector<1x256xi32>
    %c1_i32_44 = arith.constant 1 : i32
    %111 = vector.broadcast %c1_i32_44 : i32 to vector<1x256xi32>
    %112 = arith.cmpi sge, %4, %111 : vector<1x256xi32>
    %113 = arith.andi %110, %112 : vector<1x256xi1>
    %cst_45 = arith.constant 1.000000e+00 : f32
    %cst_46 = arith.constant 0.000000e+00 : f32
    %114 = vector.broadcast %cst_45 : f32 to vector<1x256xf32>
    %115 = vector.broadcast %cst_46 : f32 to vector<1x256xf32>
    %116 = arith.select %113, %114, %115 : vector<1x256xi1>, vector<1x256xf32>
    %c3_i32_47 = arith.constant 3 : i32
    %117 = vector.broadcast %c3_i32_47 : i32 to vector<1x256xi32>
    %118 = arith.cmpi sge, %6, %117 : vector<1x256xi32>
    %cst_48 = arith.constant 1.000000e+00 : f32
    %cst_49 = arith.constant 0.000000e+00 : f32
    %119 = vector.broadcast %cst_48 : f32 to vector<1x256xf32>
    %120 = vector.broadcast %cst_49 : f32 to vector<1x256xf32>
    %121 = arith.select %118, %119, %120 : vector<1x256xi1>, vector<1x256xf32>
    %c3_i32_50 = arith.constant 3 : i32
    %122 = vector.broadcast %c3_i32_50 : i32 to vector<1x256xi32>
    %123 = arith.cmpi sge, %6, %122 : vector<1x256xi32>
    %c15_i32_51 = arith.constant 15 : i32
    %124 = vector.broadcast %c15_i32_51 : i32 to vector<1x256xi32>
    %125 = arith.cmpi slt, %4, %124 : vector<1x256xi32>
    %126 = arith.andi %123, %125 : vector<1x256xi1>
    %cst_52 = arith.constant 1.000000e+00 : f32
    %cst_53 = arith.constant 0.000000e+00 : f32
    %127 = vector.broadcast %cst_52 : f32 to vector<1x256xf32>
    %128 = vector.broadcast %cst_53 : f32 to vector<1x256xf32>
    %129 = arith.select %126, %127, %128 : vector<1x256xi1>, vector<1x256xf32>
    %c3_i32_54 = arith.constant 3 : i32
    %130 = vector.broadcast %c3_i32_54 : i32 to vector<1x256xi32>
    %131 = arith.cmpi sge, %6, %130 : vector<1x256xi32>
    %c14_i32 = arith.constant 14 : i32
    %132 = vector.broadcast %c14_i32 : i32 to vector<1x256xi32>
    %133 = arith.cmpi slt, %4, %132 : vector<1x256xi32>
    %134 = arith.andi %131, %133 : vector<1x256xi1>
    %cst_55 = arith.constant 1.000000e+00 : f32
    %cst_56 = arith.constant 0.000000e+00 : f32
    %135 = vector.broadcast %cst_55 : f32 to vector<1x256xf32>
    %136 = vector.broadcast %cst_56 : f32 to vector<1x256xf32>
    %137 = arith.select %134, %135, %136 : vector<1x256xi1>, vector<1x256xf32>
    %c3_i32_57 = arith.constant 3 : i32
    %138 = vector.broadcast %c3_i32_57 : i32 to vector<1x256xi32>
    %139 = arith.cmpi sge, %6, %138 : vector<1x256xi32>
    %c13_i32 = arith.constant 13 : i32
    %140 = vector.broadcast %c13_i32 : i32 to vector<1x256xi32>
    %141 = arith.cmpi slt, %4, %140 : vector<1x256xi32>
    %142 = arith.andi %139, %141 : vector<1x256xi1>
    %cst_58 = arith.constant 1.000000e+00 : f32
    %cst_59 = arith.constant 0.000000e+00 : f32
    %143 = vector.broadcast %cst_58 : f32 to vector<1x256xf32>
    %144 = vector.broadcast %cst_59 : f32 to vector<1x256xf32>
    %145 = arith.select %142, %143, %144 : vector<1x256xi1>, vector<1x256xf32>
    %c2_i32_60 = arith.constant 2 : i32
    %146 = vector.broadcast %c2_i32_60 : i32 to vector<1x256xi32>
    %147 = arith.cmpi sge, %6, %146 : vector<1x256xi32>
    %c3_i32_61 = arith.constant 3 : i32
    %148 = vector.broadcast %c3_i32_61 : i32 to vector<1x256xi32>
    %149 = arith.cmpi sge, %4, %148 : vector<1x256xi32>
    %150 = arith.andi %147, %149 : vector<1x256xi1>
    %cst_62 = arith.constant 1.000000e+00 : f32
    %cst_63 = arith.constant 0.000000e+00 : f32
    %151 = vector.broadcast %cst_62 : f32 to vector<1x256xf32>
    %152 = vector.broadcast %cst_63 : f32 to vector<1x256xf32>
    %153 = arith.select %150, %151, %152 : vector<1x256xi1>, vector<1x256xf32>
    %c2_i32_64 = arith.constant 2 : i32
    %154 = vector.broadcast %c2_i32_64 : i32 to vector<1x256xi32>
    %155 = arith.cmpi sge, %6, %154 : vector<1x256xi32>
    %c2_i32_65 = arith.constant 2 : i32
    %156 = vector.broadcast %c2_i32_65 : i32 to vector<1x256xi32>
    %157 = arith.cmpi sge, %4, %156 : vector<1x256xi32>
    %158 = arith.andi %155, %157 : vector<1x256xi1>
    %cst_66 = arith.constant 1.000000e+00 : f32
    %cst_67 = arith.constant 0.000000e+00 : f32
    %159 = vector.broadcast %cst_66 : f32 to vector<1x256xf32>
    %160 = vector.broadcast %cst_67 : f32 to vector<1x256xf32>
    %161 = arith.select %158, %159, %160 : vector<1x256xi1>, vector<1x256xf32>
    %c2_i32_68 = arith.constant 2 : i32
    %162 = vector.broadcast %c2_i32_68 : i32 to vector<1x256xi32>
    %163 = arith.cmpi sge, %6, %162 : vector<1x256xi32>
    %c1_i32_69 = arith.constant 1 : i32
    %164 = vector.broadcast %c1_i32_69 : i32 to vector<1x256xi32>
    %165 = arith.cmpi sge, %4, %164 : vector<1x256xi32>
    %166 = arith.andi %163, %165 : vector<1x256xi1>
    %cst_70 = arith.constant 1.000000e+00 : f32
    %cst_71 = arith.constant 0.000000e+00 : f32
    %167 = vector.broadcast %cst_70 : f32 to vector<1x256xf32>
    %168 = vector.broadcast %cst_71 : f32 to vector<1x256xf32>
    %169 = arith.select %166, %167, %168 : vector<1x256xi1>, vector<1x256xf32>
    %c2_i32_72 = arith.constant 2 : i32
    %170 = vector.broadcast %c2_i32_72 : i32 to vector<1x256xi32>
    %171 = arith.cmpi sge, %6, %170 : vector<1x256xi32>
    %cst_73 = arith.constant 1.000000e+00 : f32
    %cst_74 = arith.constant 0.000000e+00 : f32
    %172 = vector.broadcast %cst_73 : f32 to vector<1x256xf32>
    %173 = vector.broadcast %cst_74 : f32 to vector<1x256xf32>
    %174 = arith.select %171, %172, %173 : vector<1x256xi1>, vector<1x256xf32>
    %c2_i32_75 = arith.constant 2 : i32
    %175 = vector.broadcast %c2_i32_75 : i32 to vector<1x256xi32>
    %176 = arith.cmpi sge, %6, %175 : vector<1x256xi32>
    %c15_i32_76 = arith.constant 15 : i32
    %177 = vector.broadcast %c15_i32_76 : i32 to vector<1x256xi32>
    %178 = arith.cmpi slt, %4, %177 : vector<1x256xi32>
    %179 = arith.andi %176, %178 : vector<1x256xi1>
    %cst_77 = arith.constant 1.000000e+00 : f32
    %cst_78 = arith.constant 0.000000e+00 : f32
    %180 = vector.broadcast %cst_77 : f32 to vector<1x256xf32>
    %181 = vector.broadcast %cst_78 : f32 to vector<1x256xf32>
    %182 = arith.select %179, %180, %181 : vector<1x256xi1>, vector<1x256xf32>
    %c2_i32_79 = arith.constant 2 : i32
    %183 = vector.broadcast %c2_i32_79 : i32 to vector<1x256xi32>
    %184 = arith.cmpi sge, %6, %183 : vector<1x256xi32>
    %c14_i32_80 = arith.constant 14 : i32
    %185 = vector.broadcast %c14_i32_80 : i32 to vector<1x256xi32>
    %186 = arith.cmpi slt, %4, %185 : vector<1x256xi32>
    %187 = arith.andi %184, %186 : vector<1x256xi1>
    %cst_81 = arith.constant 1.000000e+00 : f32
    %cst_82 = arith.constant 0.000000e+00 : f32
    %188 = vector.broadcast %cst_81 : f32 to vector<1x256xf32>
    %189 = vector.broadcast %cst_82 : f32 to vector<1x256xf32>
    %190 = arith.select %187, %188, %189 : vector<1x256xi1>, vector<1x256xf32>
    %c2_i32_83 = arith.constant 2 : i32
    %191 = vector.broadcast %c2_i32_83 : i32 to vector<1x256xi32>
    %192 = arith.cmpi sge, %6, %191 : vector<1x256xi32>
    %c13_i32_84 = arith.constant 13 : i32
    %193 = vector.broadcast %c13_i32_84 : i32 to vector<1x256xi32>
    %194 = arith.cmpi slt, %4, %193 : vector<1x256xi32>
    %195 = arith.andi %192, %194 : vector<1x256xi1>
    %cst_85 = arith.constant 1.000000e+00 : f32
    %cst_86 = arith.constant 0.000000e+00 : f32
    %196 = vector.broadcast %cst_85 : f32 to vector<1x256xf32>
    %197 = vector.broadcast %cst_86 : f32 to vector<1x256xf32>
    %198 = arith.select %195, %196, %197 : vector<1x256xi1>, vector<1x256xf32>
    %c1_i32_87 = arith.constant 1 : i32
    %199 = vector.broadcast %c1_i32_87 : i32 to vector<1x256xi32>
    %200 = arith.cmpi sge, %6, %199 : vector<1x256xi32>
    %c3_i32_88 = arith.constant 3 : i32
    %201 = vector.broadcast %c3_i32_88 : i32 to vector<1x256xi32>
    %202 = arith.cmpi sge, %4, %201 : vector<1x256xi32>
    %203 = arith.andi %200, %202 : vector<1x256xi1>
    %cst_89 = arith.constant 1.000000e+00 : f32
    %cst_90 = arith.constant 0.000000e+00 : f32
    %204 = vector.broadcast %cst_89 : f32 to vector<1x256xf32>
    %205 = vector.broadcast %cst_90 : f32 to vector<1x256xf32>
    %206 = arith.select %203, %204, %205 : vector<1x256xi1>, vector<1x256xf32>
    %c1_i32_91 = arith.constant 1 : i32
    %207 = vector.broadcast %c1_i32_91 : i32 to vector<1x256xi32>
    %208 = arith.cmpi sge, %6, %207 : vector<1x256xi32>
    %c2_i32_92 = arith.constant 2 : i32
    %209 = vector.broadcast %c2_i32_92 : i32 to vector<1x256xi32>
    %210 = arith.cmpi sge, %4, %209 : vector<1x256xi32>
    %211 = arith.andi %208, %210 : vector<1x256xi1>
    %cst_93 = arith.constant 1.000000e+00 : f32
    %cst_94 = arith.constant 0.000000e+00 : f32
    %212 = vector.broadcast %cst_93 : f32 to vector<1x256xf32>
    %213 = vector.broadcast %cst_94 : f32 to vector<1x256xf32>
    %214 = arith.select %211, %212, %213 : vector<1x256xi1>, vector<1x256xf32>
    %c1_i32_95 = arith.constant 1 : i32
    %215 = vector.broadcast %c1_i32_95 : i32 to vector<1x256xi32>
    %216 = arith.cmpi sge, %6, %215 : vector<1x256xi32>
    %c1_i32_96 = arith.constant 1 : i32
    %217 = vector.broadcast %c1_i32_96 : i32 to vector<1x256xi32>
    %218 = arith.cmpi sge, %4, %217 : vector<1x256xi32>
    %219 = arith.andi %216, %218 : vector<1x256xi1>
    %cst_97 = arith.constant 1.000000e+00 : f32
    %cst_98 = arith.constant 0.000000e+00 : f32
    %220 = vector.broadcast %cst_97 : f32 to vector<1x256xf32>
    %221 = vector.broadcast %cst_98 : f32 to vector<1x256xf32>
    %222 = arith.select %219, %220, %221 : vector<1x256xi1>, vector<1x256xf32>
    %c1_i32_99 = arith.constant 1 : i32
    %223 = vector.broadcast %c1_i32_99 : i32 to vector<1x256xi32>
    %224 = arith.cmpi sge, %6, %223 : vector<1x256xi32>
    %cst_100 = arith.constant 1.000000e+00 : f32
    %cst_101 = arith.constant 0.000000e+00 : f32
    %225 = vector.broadcast %cst_100 : f32 to vector<1x256xf32>
    %226 = vector.broadcast %cst_101 : f32 to vector<1x256xf32>
    %227 = arith.select %224, %225, %226 : vector<1x256xi1>, vector<1x256xf32>
    %c1_i32_102 = arith.constant 1 : i32
    %228 = vector.broadcast %c1_i32_102 : i32 to vector<1x256xi32>
    %229 = arith.cmpi sge, %6, %228 : vector<1x256xi32>
    %c15_i32_103 = arith.constant 15 : i32
    %230 = vector.broadcast %c15_i32_103 : i32 to vector<1x256xi32>
    %231 = arith.cmpi slt, %4, %230 : vector<1x256xi32>
    %232 = arith.andi %229, %231 : vector<1x256xi1>
    %cst_104 = arith.constant 1.000000e+00 : f32
    %cst_105 = arith.constant 0.000000e+00 : f32
    %233 = vector.broadcast %cst_104 : f32 to vector<1x256xf32>
    %234 = vector.broadcast %cst_105 : f32 to vector<1x256xf32>
    %235 = arith.select %232, %233, %234 : vector<1x256xi1>, vector<1x256xf32>
    %c1_i32_106 = arith.constant 1 : i32
    %236 = vector.broadcast %c1_i32_106 : i32 to vector<1x256xi32>
    %237 = arith.cmpi sge, %6, %236 : vector<1x256xi32>
    %c14_i32_107 = arith.constant 14 : i32
    %238 = vector.broadcast %c14_i32_107 : i32 to vector<1x256xi32>
    %239 = arith.cmpi slt, %4, %238 : vector<1x256xi32>
    %240 = arith.andi %237, %239 : vector<1x256xi1>
    %cst_108 = arith.constant 1.000000e+00 : f32
    %cst_109 = arith.constant 0.000000e+00 : f32
    %241 = vector.broadcast %cst_108 : f32 to vector<1x256xf32>
    %242 = vector.broadcast %cst_109 : f32 to vector<1x256xf32>
    %243 = arith.select %240, %241, %242 : vector<1x256xi1>, vector<1x256xf32>
    %c1_i32_110 = arith.constant 1 : i32
    %244 = vector.broadcast %c1_i32_110 : i32 to vector<1x256xi32>
    %245 = arith.cmpi sge, %6, %244 : vector<1x256xi32>
    %c13_i32_111 = arith.constant 13 : i32
    %246 = vector.broadcast %c13_i32_111 : i32 to vector<1x256xi32>
    %247 = arith.cmpi slt, %4, %246 : vector<1x256xi32>
    %248 = arith.andi %245, %247 : vector<1x256xi1>
    %cst_112 = arith.constant 1.000000e+00 : f32
    %cst_113 = arith.constant 0.000000e+00 : f32
    %249 = vector.broadcast %cst_112 : f32 to vector<1x256xf32>
    %250 = vector.broadcast %cst_113 : f32 to vector<1x256xf32>
    %251 = arith.select %248, %249, %250 : vector<1x256xi1>, vector<1x256xf32>
    %c3_i32_114 = arith.constant 3 : i32
    %252 = vector.broadcast %c3_i32_114 : i32 to vector<1x256xi32>
    %253 = arith.cmpi sge, %4, %252 : vector<1x256xi32>
    %cst_115 = arith.constant 1.000000e+00 : f32
    %cst_116 = arith.constant 0.000000e+00 : f32
    %254 = vector.broadcast %cst_115 : f32 to vector<1x256xf32>
    %255 = vector.broadcast %cst_116 : f32 to vector<1x256xf32>
    %256 = arith.select %253, %254, %255 : vector<1x256xi1>, vector<1x256xf32>
    %c2_i32_117 = arith.constant 2 : i32
    %257 = vector.broadcast %c2_i32_117 : i32 to vector<1x256xi32>
    %258 = arith.cmpi sge, %4, %257 : vector<1x256xi32>
    %cst_118 = arith.constant 1.000000e+00 : f32
    %cst_119 = arith.constant 0.000000e+00 : f32
    %259 = vector.broadcast %cst_118 : f32 to vector<1x256xf32>
    %260 = vector.broadcast %cst_119 : f32 to vector<1x256xf32>
    %261 = arith.select %258, %259, %260 : vector<1x256xi1>, vector<1x256xf32>
    %c1_i32_120 = arith.constant 1 : i32
    %262 = vector.broadcast %c1_i32_120 : i32 to vector<1x256xi32>
    %263 = arith.cmpi sge, %4, %262 : vector<1x256xi32>
    %cst_121 = arith.constant 1.000000e+00 : f32
    %cst_122 = arith.constant 0.000000e+00 : f32
    %264 = vector.broadcast %cst_121 : f32 to vector<1x256xf32>
    %265 = vector.broadcast %cst_122 : f32 to vector<1x256xf32>
    %266 = arith.select %263, %264, %265 : vector<1x256xi1>, vector<1x256xf32>
    %c15_i32_123 = arith.constant 15 : i32
    %267 = vector.broadcast %c15_i32_123 : i32 to vector<1x256xi32>
    %268 = arith.cmpi slt, %4, %267 : vector<1x256xi32>
    %cst_124 = arith.constant 1.000000e+00 : f32
    %cst_125 = arith.constant 0.000000e+00 : f32
    %269 = vector.broadcast %cst_124 : f32 to vector<1x256xf32>
    %270 = vector.broadcast %cst_125 : f32 to vector<1x256xf32>
    %271 = arith.select %268, %269, %270 : vector<1x256xi1>, vector<1x256xf32>
    %c14_i32_126 = arith.constant 14 : i32
    %272 = vector.broadcast %c14_i32_126 : i32 to vector<1x256xi32>
    %273 = arith.cmpi slt, %4, %272 : vector<1x256xi32>
    %cst_127 = arith.constant 1.000000e+00 : f32
    %cst_128 = arith.constant 0.000000e+00 : f32
    %274 = vector.broadcast %cst_127 : f32 to vector<1x256xf32>
    %275 = vector.broadcast %cst_128 : f32 to vector<1x256xf32>
    %276 = arith.select %273, %274, %275 : vector<1x256xi1>, vector<1x256xf32>
    %c13_i32_129 = arith.constant 13 : i32
    %277 = vector.broadcast %c13_i32_129 : i32 to vector<1x256xi32>
    %278 = arith.cmpi slt, %4, %277 : vector<1x256xi32>
    %cst_130 = arith.constant 1.000000e+00 : f32
    %cst_131 = arith.constant 0.000000e+00 : f32
    %279 = vector.broadcast %cst_130 : f32 to vector<1x256xf32>
    %280 = vector.broadcast %cst_131 : f32 to vector<1x256xf32>
    %281 = arith.select %278, %279, %280 : vector<1x256xi1>, vector<1x256xf32>
    %c15_i32_132 = arith.constant 15 : i32
    %282 = vector.broadcast %c15_i32_132 : i32 to vector<1x256xi32>
    %283 = arith.cmpi slt, %6, %282 : vector<1x256xi32>
    %c3_i32_133 = arith.constant 3 : i32
    %284 = vector.broadcast %c3_i32_133 : i32 to vector<1x256xi32>
    %285 = arith.cmpi sge, %4, %284 : vector<1x256xi32>
    %286 = arith.andi %283, %285 : vector<1x256xi1>
    %cst_134 = arith.constant 1.000000e+00 : f32
    %cst_135 = arith.constant 0.000000e+00 : f32
    %287 = vector.broadcast %cst_134 : f32 to vector<1x256xf32>
    %288 = vector.broadcast %cst_135 : f32 to vector<1x256xf32>
    %289 = arith.select %286, %287, %288 : vector<1x256xi1>, vector<1x256xf32>
    %c15_i32_136 = arith.constant 15 : i32
    %290 = vector.broadcast %c15_i32_136 : i32 to vector<1x256xi32>
    %291 = arith.cmpi slt, %6, %290 : vector<1x256xi32>
    %c2_i32_137 = arith.constant 2 : i32
    %292 = vector.broadcast %c2_i32_137 : i32 to vector<1x256xi32>
    %293 = arith.cmpi sge, %4, %292 : vector<1x256xi32>
    %294 = arith.andi %291, %293 : vector<1x256xi1>
    %cst_138 = arith.constant 1.000000e+00 : f32
    %cst_139 = arith.constant 0.000000e+00 : f32
    %295 = vector.broadcast %cst_138 : f32 to vector<1x256xf32>
    %296 = vector.broadcast %cst_139 : f32 to vector<1x256xf32>
    %297 = arith.select %294, %295, %296 : vector<1x256xi1>, vector<1x256xf32>
    %c15_i32_140 = arith.constant 15 : i32
    %298 = vector.broadcast %c15_i32_140 : i32 to vector<1x256xi32>
    %299 = arith.cmpi slt, %6, %298 : vector<1x256xi32>
    %c1_i32_141 = arith.constant 1 : i32
    %300 = vector.broadcast %c1_i32_141 : i32 to vector<1x256xi32>
    %301 = arith.cmpi sge, %4, %300 : vector<1x256xi32>
    %302 = arith.andi %299, %301 : vector<1x256xi1>
    %cst_142 = arith.constant 1.000000e+00 : f32
    %cst_143 = arith.constant 0.000000e+00 : f32
    %303 = vector.broadcast %cst_142 : f32 to vector<1x256xf32>
    %304 = vector.broadcast %cst_143 : f32 to vector<1x256xf32>
    %305 = arith.select %302, %303, %304 : vector<1x256xi1>, vector<1x256xf32>
    %c15_i32_144 = arith.constant 15 : i32
    %306 = vector.broadcast %c15_i32_144 : i32 to vector<1x256xi32>
    %307 = arith.cmpi slt, %6, %306 : vector<1x256xi32>
    %cst_145 = arith.constant 1.000000e+00 : f32
    %cst_146 = arith.constant 0.000000e+00 : f32
    %308 = vector.broadcast %cst_145 : f32 to vector<1x256xf32>
    %309 = vector.broadcast %cst_146 : f32 to vector<1x256xf32>
    %310 = arith.select %307, %308, %309 : vector<1x256xi1>, vector<1x256xf32>
    %c15_i32_147 = arith.constant 15 : i32
    %311 = vector.broadcast %c15_i32_147 : i32 to vector<1x256xi32>
    %312 = arith.cmpi slt, %6, %311 : vector<1x256xi32>
    %c15_i32_148 = arith.constant 15 : i32
    %313 = vector.broadcast %c15_i32_148 : i32 to vector<1x256xi32>
    %314 = arith.cmpi slt, %4, %313 : vector<1x256xi32>
    %315 = arith.andi %312, %314 : vector<1x256xi1>
    %cst_149 = arith.constant 1.000000e+00 : f32
    %cst_150 = arith.constant 0.000000e+00 : f32
    %316 = vector.broadcast %cst_149 : f32 to vector<1x256xf32>
    %317 = vector.broadcast %cst_150 : f32 to vector<1x256xf32>
    %318 = arith.select %315, %316, %317 : vector<1x256xi1>, vector<1x256xf32>
    %c15_i32_151 = arith.constant 15 : i32
    %319 = vector.broadcast %c15_i32_151 : i32 to vector<1x256xi32>
    %320 = arith.cmpi slt, %6, %319 : vector<1x256xi32>
    %c14_i32_152 = arith.constant 14 : i32
    %321 = vector.broadcast %c14_i32_152 : i32 to vector<1x256xi32>
    %322 = arith.cmpi slt, %4, %321 : vector<1x256xi32>
    %323 = arith.andi %320, %322 : vector<1x256xi1>
    %cst_153 = arith.constant 1.000000e+00 : f32
    %cst_154 = arith.constant 0.000000e+00 : f32
    %324 = vector.broadcast %cst_153 : f32 to vector<1x256xf32>
    %325 = vector.broadcast %cst_154 : f32 to vector<1x256xf32>
    %326 = arith.select %323, %324, %325 : vector<1x256xi1>, vector<1x256xf32>
    %c15_i32_155 = arith.constant 15 : i32
    %327 = vector.broadcast %c15_i32_155 : i32 to vector<1x256xi32>
    %328 = arith.cmpi slt, %6, %327 : vector<1x256xi32>
    %c13_i32_156 = arith.constant 13 : i32
    %329 = vector.broadcast %c13_i32_156 : i32 to vector<1x256xi32>
    %330 = arith.cmpi slt, %4, %329 : vector<1x256xi32>
    %331 = arith.andi %328, %330 : vector<1x256xi1>
    %cst_157 = arith.constant 1.000000e+00 : f32
    %cst_158 = arith.constant 0.000000e+00 : f32
    %332 = vector.broadcast %cst_157 : f32 to vector<1x256xf32>
    %333 = vector.broadcast %cst_158 : f32 to vector<1x256xf32>
    %334 = arith.select %331, %332, %333 : vector<1x256xi1>, vector<1x256xf32>
    %c14_i32_159 = arith.constant 14 : i32
    %335 = vector.broadcast %c14_i32_159 : i32 to vector<1x256xi32>
    %336 = arith.cmpi slt, %6, %335 : vector<1x256xi32>
    %c3_i32_160 = arith.constant 3 : i32
    %337 = vector.broadcast %c3_i32_160 : i32 to vector<1x256xi32>
    %338 = arith.cmpi sge, %4, %337 : vector<1x256xi32>
    %339 = arith.andi %336, %338 : vector<1x256xi1>
    %cst_161 = arith.constant 1.000000e+00 : f32
    %cst_162 = arith.constant 0.000000e+00 : f32
    %340 = vector.broadcast %cst_161 : f32 to vector<1x256xf32>
    %341 = vector.broadcast %cst_162 : f32 to vector<1x256xf32>
    %342 = arith.select %339, %340, %341 : vector<1x256xi1>, vector<1x256xf32>
    %c14_i32_163 = arith.constant 14 : i32
    %343 = vector.broadcast %c14_i32_163 : i32 to vector<1x256xi32>
    %344 = arith.cmpi slt, %6, %343 : vector<1x256xi32>
    %c2_i32_164 = arith.constant 2 : i32
    %345 = vector.broadcast %c2_i32_164 : i32 to vector<1x256xi32>
    %346 = arith.cmpi sge, %4, %345 : vector<1x256xi32>
    %347 = arith.andi %344, %346 : vector<1x256xi1>
    %cst_165 = arith.constant 1.000000e+00 : f32
    %cst_166 = arith.constant 0.000000e+00 : f32
    %348 = vector.broadcast %cst_165 : f32 to vector<1x256xf32>
    %349 = vector.broadcast %cst_166 : f32 to vector<1x256xf32>
    %350 = arith.select %347, %348, %349 : vector<1x256xi1>, vector<1x256xf32>
    %c14_i32_167 = arith.constant 14 : i32
    %351 = vector.broadcast %c14_i32_167 : i32 to vector<1x256xi32>
    %352 = arith.cmpi slt, %6, %351 : vector<1x256xi32>
    %c1_i32_168 = arith.constant 1 : i32
    %353 = vector.broadcast %c1_i32_168 : i32 to vector<1x256xi32>
    %354 = arith.cmpi sge, %4, %353 : vector<1x256xi32>
    %355 = arith.andi %352, %354 : vector<1x256xi1>
    %cst_169 = arith.constant 1.000000e+00 : f32
    %cst_170 = arith.constant 0.000000e+00 : f32
    %356 = vector.broadcast %cst_169 : f32 to vector<1x256xf32>
    %357 = vector.broadcast %cst_170 : f32 to vector<1x256xf32>
    %358 = arith.select %355, %356, %357 : vector<1x256xi1>, vector<1x256xf32>
    %c14_i32_171 = arith.constant 14 : i32
    %359 = vector.broadcast %c14_i32_171 : i32 to vector<1x256xi32>
    %360 = arith.cmpi slt, %6, %359 : vector<1x256xi32>
    %cst_172 = arith.constant 1.000000e+00 : f32
    %cst_173 = arith.constant 0.000000e+00 : f32
    %361 = vector.broadcast %cst_172 : f32 to vector<1x256xf32>
    %362 = vector.broadcast %cst_173 : f32 to vector<1x256xf32>
    %363 = arith.select %360, %361, %362 : vector<1x256xi1>, vector<1x256xf32>
    %c14_i32_174 = arith.constant 14 : i32
    %364 = vector.broadcast %c14_i32_174 : i32 to vector<1x256xi32>
    %365 = arith.cmpi slt, %6, %364 : vector<1x256xi32>
    %c15_i32_175 = arith.constant 15 : i32
    %366 = vector.broadcast %c15_i32_175 : i32 to vector<1x256xi32>
    %367 = arith.cmpi slt, %4, %366 : vector<1x256xi32>
    %368 = arith.andi %365, %367 : vector<1x256xi1>
    %cst_176 = arith.constant 1.000000e+00 : f32
    %cst_177 = arith.constant 0.000000e+00 : f32
    %369 = vector.broadcast %cst_176 : f32 to vector<1x256xf32>
    %370 = vector.broadcast %cst_177 : f32 to vector<1x256xf32>
    %371 = arith.select %368, %369, %370 : vector<1x256xi1>, vector<1x256xf32>
    %c14_i32_178 = arith.constant 14 : i32
    %372 = vector.broadcast %c14_i32_178 : i32 to vector<1x256xi32>
    %373 = arith.cmpi slt, %6, %372 : vector<1x256xi32>
    %c14_i32_179 = arith.constant 14 : i32
    %374 = vector.broadcast %c14_i32_179 : i32 to vector<1x256xi32>
    %375 = arith.cmpi slt, %4, %374 : vector<1x256xi32>
    %376 = arith.andi %373, %375 : vector<1x256xi1>
    %cst_180 = arith.constant 1.000000e+00 : f32
    %cst_181 = arith.constant 0.000000e+00 : f32
    %377 = vector.broadcast %cst_180 : f32 to vector<1x256xf32>
    %378 = vector.broadcast %cst_181 : f32 to vector<1x256xf32>
    %379 = arith.select %376, %377, %378 : vector<1x256xi1>, vector<1x256xf32>
    %c14_i32_182 = arith.constant 14 : i32
    %380 = vector.broadcast %c14_i32_182 : i32 to vector<1x256xi32>
    %381 = arith.cmpi slt, %6, %380 : vector<1x256xi32>
    %c13_i32_183 = arith.constant 13 : i32
    %382 = vector.broadcast %c13_i32_183 : i32 to vector<1x256xi32>
    %383 = arith.cmpi slt, %4, %382 : vector<1x256xi32>
    %384 = arith.andi %381, %383 : vector<1x256xi1>
    %cst_184 = arith.constant 1.000000e+00 : f32
    %cst_185 = arith.constant 0.000000e+00 : f32
    %385 = vector.broadcast %cst_184 : f32 to vector<1x256xf32>
    %386 = vector.broadcast %cst_185 : f32 to vector<1x256xf32>
    %387 = arith.select %384, %385, %386 : vector<1x256xi1>, vector<1x256xf32>
    %c13_i32_186 = arith.constant 13 : i32
    %388 = vector.broadcast %c13_i32_186 : i32 to vector<1x256xi32>
    %389 = arith.cmpi slt, %6, %388 : vector<1x256xi32>
    %c3_i32_187 = arith.constant 3 : i32
    %390 = vector.broadcast %c3_i32_187 : i32 to vector<1x256xi32>
    %391 = arith.cmpi sge, %4, %390 : vector<1x256xi32>
    %392 = arith.andi %389, %391 : vector<1x256xi1>
    %cst_188 = arith.constant 1.000000e+00 : f32
    %cst_189 = arith.constant 0.000000e+00 : f32
    %393 = vector.broadcast %cst_188 : f32 to vector<1x256xf32>
    %394 = vector.broadcast %cst_189 : f32 to vector<1x256xf32>
    %395 = arith.select %392, %393, %394 : vector<1x256xi1>, vector<1x256xf32>
    %c13_i32_190 = arith.constant 13 : i32
    %396 = vector.broadcast %c13_i32_190 : i32 to vector<1x256xi32>
    %397 = arith.cmpi slt, %6, %396 : vector<1x256xi32>
    %c2_i32_191 = arith.constant 2 : i32
    %398 = vector.broadcast %c2_i32_191 : i32 to vector<1x256xi32>
    %399 = arith.cmpi sge, %4, %398 : vector<1x256xi32>
    %400 = arith.andi %397, %399 : vector<1x256xi1>
    %cst_192 = arith.constant 1.000000e+00 : f32
    %cst_193 = arith.constant 0.000000e+00 : f32
    %401 = vector.broadcast %cst_192 : f32 to vector<1x256xf32>
    %402 = vector.broadcast %cst_193 : f32 to vector<1x256xf32>
    %403 = arith.select %400, %401, %402 : vector<1x256xi1>, vector<1x256xf32>
    %c13_i32_194 = arith.constant 13 : i32
    %404 = vector.broadcast %c13_i32_194 : i32 to vector<1x256xi32>
    %405 = arith.cmpi slt, %6, %404 : vector<1x256xi32>
    %c1_i32_195 = arith.constant 1 : i32
    %406 = vector.broadcast %c1_i32_195 : i32 to vector<1x256xi32>
    %407 = arith.cmpi sge, %4, %406 : vector<1x256xi32>
    %408 = arith.andi %405, %407 : vector<1x256xi1>
    %cst_196 = arith.constant 1.000000e+00 : f32
    %cst_197 = arith.constant 0.000000e+00 : f32
    %409 = vector.broadcast %cst_196 : f32 to vector<1x256xf32>
    %410 = vector.broadcast %cst_197 : f32 to vector<1x256xf32>
    %411 = arith.select %408, %409, %410 : vector<1x256xi1>, vector<1x256xf32>
    %c13_i32_198 = arith.constant 13 : i32
    %412 = vector.broadcast %c13_i32_198 : i32 to vector<1x256xi32>
    %413 = arith.cmpi slt, %6, %412 : vector<1x256xi32>
    %cst_199 = arith.constant 1.000000e+00 : f32
    %cst_200 = arith.constant 0.000000e+00 : f32
    %414 = vector.broadcast %cst_199 : f32 to vector<1x256xf32>
    %415 = vector.broadcast %cst_200 : f32 to vector<1x256xf32>
    %416 = arith.select %413, %414, %415 : vector<1x256xi1>, vector<1x256xf32>
    %c13_i32_201 = arith.constant 13 : i32
    %417 = vector.broadcast %c13_i32_201 : i32 to vector<1x256xi32>
    %418 = arith.cmpi slt, %6, %417 : vector<1x256xi32>
    %c15_i32_202 = arith.constant 15 : i32
    %419 = vector.broadcast %c15_i32_202 : i32 to vector<1x256xi32>
    %420 = arith.cmpi slt, %4, %419 : vector<1x256xi32>
    %421 = arith.andi %418, %420 : vector<1x256xi1>
    %cst_203 = arith.constant 1.000000e+00 : f32
    %cst_204 = arith.constant 0.000000e+00 : f32
    %422 = vector.broadcast %cst_203 : f32 to vector<1x256xf32>
    %423 = vector.broadcast %cst_204 : f32 to vector<1x256xf32>
    %424 = arith.select %421, %422, %423 : vector<1x256xi1>, vector<1x256xf32>
    %c13_i32_205 = arith.constant 13 : i32
    %425 = vector.broadcast %c13_i32_205 : i32 to vector<1x256xi32>
    %426 = arith.cmpi slt, %6, %425 : vector<1x256xi32>
    %c14_i32_206 = arith.constant 14 : i32
    %427 = vector.broadcast %c14_i32_206 : i32 to vector<1x256xi32>
    %428 = arith.cmpi slt, %4, %427 : vector<1x256xi32>
    %429 = arith.andi %426, %428 : vector<1x256xi1>
    %cst_207 = arith.constant 1.000000e+00 : f32
    %cst_208 = arith.constant 0.000000e+00 : f32
    %430 = vector.broadcast %cst_207 : f32 to vector<1x256xf32>
    %431 = vector.broadcast %cst_208 : f32 to vector<1x256xf32>
    %432 = arith.select %429, %430, %431 : vector<1x256xi1>, vector<1x256xf32>
    %c13_i32_209 = arith.constant 13 : i32
    %433 = vector.broadcast %c13_i32_209 : i32 to vector<1x256xi32>
    %434 = arith.cmpi slt, %6, %433 : vector<1x256xi32>
    %c13_i32_210 = arith.constant 13 : i32
    %435 = vector.broadcast %c13_i32_210 : i32 to vector<1x256xi32>
    %436 = arith.cmpi slt, %4, %435 : vector<1x256xi32>
    %437 = arith.andi %434, %436 : vector<1x256xi1>
    %cst_211 = arith.constant 1.000000e+00 : f32
    %cst_212 = arith.constant 0.000000e+00 : f32
    %438 = vector.broadcast %cst_211 : f32 to vector<1x256xf32>
    %439 = vector.broadcast %cst_212 : f32 to vector<1x256xf32>
    %440 = arith.select %437, %438, %439 : vector<1x256xi1>, vector<1x256xf32>
    %c0_213 = arith.constant 0 : index
    %c0_214 = arith.constant 0 : index
    %c0_215 = arith.constant 0 : index
    %441 = vector.load %arg5[%c0_213, %c0_214, %c0_215] : memref<2x8x49xf32, #tpu.memory_space<vmem>>, vector<1x8x49xf32>
    %442 = vector.shape_cast %441 : vector<1x8x49xf32> to vector<8x49xf32>
    %c1 = arith.constant 1 : index
    %c0_216 = arith.constant 0 : index
    %c0_217 = arith.constant 0 : index
    %443 = vector.load %arg6[%c1, %c0_216, %c0_217] : memref<4x8x1xf32, #tpu.memory_space<vmem>>, vector<1x8x1xf32>
    %444 = vector.shape_cast %443 : vector<1x8x1xf32> to vector<8x1xf32>
    %c51_i32 = arith.constant 51 : i32
    %445 = tpu.dynamic_rotate %92 by %c51_i32 dim 1 : vector<8x256xf32>, i32 -> vector<8x256xf32>
    %446 = vector.broadcast %100 : vector<1x256xf32> to vector<8x256xf32>
    %447 = arith.mulf %445, %446 : vector<8x256xf32>
    %448 = vector.extract_strided_slice %442 {offsets = [0, 0], sizes = [8, 1], strides = [1, 1]} : vector<8x49xf32> to vector<8x1xf32>
    %449 = vector.broadcast %448 : vector<8x1xf32> to vector<8x256xf32>
    %450 = arith.mulf %447, %449 : vector<8x256xf32>
    %c50_i32 = arith.constant 50 : i32
    %451 = tpu.dynamic_rotate %92 by %c50_i32 dim 1 : vector<8x256xf32>, i32 -> vector<8x256xf32>
    %452 = vector.broadcast %108 : vector<1x256xf32> to vector<8x256xf32>
    %453 = arith.mulf %451, %452 : vector<8x256xf32>
    %454 = vector.extract_strided_slice %442 {offsets = [0, 1], sizes = [8, 1], strides = [1, 1]} : vector<8x49xf32> to vector<8x1xf32>
    %455 = vector.broadcast %454 : vector<8x1xf32> to vector<8x256xf32>
    %456 = arith.mulf %453, %455 : vector<8x256xf32>
    %c49_i32 = arith.constant 49 : i32
    %457 = tpu.dynamic_rotate %92 by %c49_i32 dim 1 : vector<8x256xf32>, i32 -> vector<8x256xf32>
    %458 = vector.broadcast %116 : vector<1x256xf32> to vector<8x256xf32>
    %459 = arith.mulf %457, %458 : vector<8x256xf32>
    %460 = vector.extract_strided_slice %442 {offsets = [0, 2], sizes = [8, 1], strides = [1, 1]} : vector<8x49xf32> to vector<8x1xf32>
    %461 = vector.broadcast %460 : vector<8x1xf32> to vector<8x256xf32>
    %462 = arith.mulf %459, %461 : vector<8x256xf32>
    %c48_i32 = arith.constant 48 : i32
    %463 = tpu.dynamic_rotate %92 by %c48_i32 dim 1 : vector<8x256xf32>, i32 -> vector<8x256xf32>
    %464 = vector.broadcast %121 : vector<1x256xf32> to vector<8x256xf32>
    %465 = arith.mulf %463, %464 : vector<8x256xf32>
    %466 = vector.extract_strided_slice %442 {offsets = [0, 3], sizes = [8, 1], strides = [1, 1]} : vector<8x49xf32> to vector<8x1xf32>
    %467 = vector.broadcast %466 : vector<8x1xf32> to vector<8x256xf32>
    %468 = arith.mulf %465, %467 : vector<8x256xf32>
    %c47_i32 = arith.constant 47 : i32
    %469 = tpu.dynamic_rotate %92 by %c47_i32 dim 1 : vector<8x256xf32>, i32 -> vector<8x256xf32>
    %470 = vector.broadcast %129 : vector<1x256xf32> to vector<8x256xf32>
    %471 = arith.mulf %469, %470 : vector<8x256xf32>
    %472 = vector.extract_strided_slice %442 {offsets = [0, 4], sizes = [8, 1], strides = [1, 1]} : vector<8x49xf32> to vector<8x1xf32>
    %473 = vector.broadcast %472 : vector<8x1xf32> to vector<8x256xf32>
    %474 = arith.mulf %471, %473 : vector<8x256xf32>
    %475 = arith.addf %450, %474 : vector<8x256xf32>
    %c46_i32 = arith.constant 46 : i32
    %476 = tpu.dynamic_rotate %92 by %c46_i32 dim 1 : vector<8x256xf32>, i32 -> vector<8x256xf32>
    %477 = vector.broadcast %137 : vector<1x256xf32> to vector<8x256xf32>
    %478 = arith.mulf %476, %477 : vector<8x256xf32>
    %479 = vector.extract_strided_slice %442 {offsets = [0, 5], sizes = [8, 1], strides = [1, 1]} : vector<8x49xf32> to vector<8x1xf32>
    %480 = vector.broadcast %479 : vector<8x1xf32> to vector<8x256xf32>
    %481 = arith.mulf %478, %480 : vector<8x256xf32>
    %482 = arith.addf %456, %481 : vector<8x256xf32>
    %c45_i32 = arith.constant 45 : i32
    %483 = tpu.dynamic_rotate %92 by %c45_i32 dim 1 : vector<8x256xf32>, i32 -> vector<8x256xf32>
    %484 = vector.broadcast %145 : vector<1x256xf32> to vector<8x256xf32>
    %485 = arith.mulf %483, %484 : vector<8x256xf32>
    %486 = vector.extract_strided_slice %442 {offsets = [0, 6], sizes = [8, 1], strides = [1, 1]} : vector<8x49xf32> to vector<8x1xf32>
    %487 = vector.broadcast %486 : vector<8x1xf32> to vector<8x256xf32>
    %488 = arith.mulf %485, %487 : vector<8x256xf32>
    %489 = arith.addf %462, %488 : vector<8x256xf32>
    %c35_i32 = arith.constant 35 : i32
    %490 = tpu.dynamic_rotate %92 by %c35_i32 dim 1 : vector<8x256xf32>, i32 -> vector<8x256xf32>
    %491 = vector.broadcast %153 : vector<1x256xf32> to vector<8x256xf32>
    %492 = arith.mulf %490, %491 : vector<8x256xf32>
    %493 = vector.extract_strided_slice %442 {offsets = [0, 7], sizes = [8, 1], strides = [1, 1]} : vector<8x49xf32> to vector<8x1xf32>
    %494 = vector.broadcast %493 : vector<8x1xf32> to vector<8x256xf32>
    %495 = arith.mulf %492, %494 : vector<8x256xf32>
    %496 = arith.addf %468, %495 : vector<8x256xf32>
    %c34_i32 = arith.constant 34 : i32
    %497 = tpu.dynamic_rotate %92 by %c34_i32 dim 1 : vector<8x256xf32>, i32 -> vector<8x256xf32>
    %498 = vector.broadcast %161 : vector<1x256xf32> to vector<8x256xf32>
    %499 = arith.mulf %497, %498 : vector<8x256xf32>
    %500 = vector.extract_strided_slice %442 {offsets = [0, 8], sizes = [8, 1], strides = [1, 1]} : vector<8x49xf32> to vector<8x1xf32>
    %501 = vector.broadcast %500 : vector<8x1xf32> to vector<8x256xf32>
    %502 = arith.mulf %499, %501 : vector<8x256xf32>
    %503 = arith.addf %475, %502 : vector<8x256xf32>
    %c33_i32 = arith.constant 33 : i32
    %504 = tpu.dynamic_rotate %92 by %c33_i32 dim 1 : vector<8x256xf32>, i32 -> vector<8x256xf32>
    %505 = vector.broadcast %169 : vector<1x256xf32> to vector<8x256xf32>
    %506 = arith.mulf %504, %505 : vector<8x256xf32>
    %507 = vector.extract_strided_slice %442 {offsets = [0, 9], sizes = [8, 1], strides = [1, 1]} : vector<8x49xf32> to vector<8x1xf32>
    %508 = vector.broadcast %507 : vector<8x1xf32> to vector<8x256xf32>
    %509 = arith.mulf %506, %508 : vector<8x256xf32>
    %510 = arith.addf %482, %509 : vector<8x256xf32>
    %c32_i32 = arith.constant 32 : i32
    %511 = tpu.dynamic_rotate %92 by %c32_i32 dim 1 : vector<8x256xf32>, i32 -> vector<8x256xf32>
    %512 = vector.broadcast %174 : vector<1x256xf32> to vector<8x256xf32>
    %513 = arith.mulf %511, %512 : vector<8x256xf32>
    %514 = vector.extract_strided_slice %442 {offsets = [0, 10], sizes = [8, 1], strides = [1, 1]} : vector<8x49xf32> to vector<8x1xf32>
    %515 = vector.broadcast %514 : vector<8x1xf32> to vector<8x256xf32>
    %516 = arith.mulf %513, %515 : vector<8x256xf32>
    %517 = arith.addf %489, %516 : vector<8x256xf32>
    %c31_i32 = arith.constant 31 : i32
    %518 = tpu.dynamic_rotate %92 by %c31_i32 dim 1 : vector<8x256xf32>, i32 -> vector<8x256xf32>
    %519 = vector.broadcast %182 : vector<1x256xf32> to vector<8x256xf32>
    %520 = arith.mulf %518, %519 : vector<8x256xf32>
    %521 = vector.extract_strided_slice %442 {offsets = [0, 11], sizes = [8, 1], strides = [1, 1]} : vector<8x49xf32> to vector<8x1xf32>
    %522 = vector.broadcast %521 : vector<8x1xf32> to vector<8x256xf32>
    %523 = arith.mulf %520, %522 : vector<8x256xf32>
    %524 = arith.addf %496, %523 : vector<8x256xf32>
    %c30_i32 = arith.constant 30 : i32
    %525 = tpu.dynamic_rotate %92 by %c30_i32 dim 1 : vector<8x256xf32>, i32 -> vector<8x256xf32>
    %526 = vector.broadcast %190 : vector<1x256xf32> to vector<8x256xf32>
    %527 = arith.mulf %525, %526 : vector<8x256xf32>
    %528 = vector.extract_strided_slice %442 {offsets = [0, 12], sizes = [8, 1], strides = [1, 1]} : vector<8x49xf32> to vector<8x1xf32>
    %529 = vector.broadcast %528 : vector<8x1xf32> to vector<8x256xf32>
    %530 = arith.mulf %527, %529 : vector<8x256xf32>
    %531 = arith.addf %503, %530 : vector<8x256xf32>
    %c29_i32 = arith.constant 29 : i32
    %532 = tpu.dynamic_rotate %92 by %c29_i32 dim 1 : vector<8x256xf32>, i32 -> vector<8x256xf32>
    %533 = vector.broadcast %198 : vector<1x256xf32> to vector<8x256xf32>
    %534 = arith.mulf %532, %533 : vector<8x256xf32>
    %535 = vector.extract_strided_slice %442 {offsets = [0, 13], sizes = [8, 1], strides = [1, 1]} : vector<8x49xf32> to vector<8x1xf32>
    %536 = vector.broadcast %535 : vector<8x1xf32> to vector<8x256xf32>
    %537 = arith.mulf %534, %536 : vector<8x256xf32>
    %538 = arith.addf %510, %537 : vector<8x256xf32>
    %c19_i32 = arith.constant 19 : i32
    %539 = tpu.dynamic_rotate %92 by %c19_i32 dim 1 : vector<8x256xf32>, i32 -> vector<8x256xf32>
    %540 = vector.broadcast %206 : vector<1x256xf32> to vector<8x256xf32>
    %541 = arith.mulf %539, %540 : vector<8x256xf32>
    %542 = vector.extract_strided_slice %442 {offsets = [0, 14], sizes = [8, 1], strides = [1, 1]} : vector<8x49xf32> to vector<8x1xf32>
    %543 = vector.broadcast %542 : vector<8x1xf32> to vector<8x256xf32>
    %544 = arith.mulf %541, %543 : vector<8x256xf32>
    %545 = arith.addf %517, %544 : vector<8x256xf32>
    %c18_i32 = arith.constant 18 : i32
    %546 = tpu.dynamic_rotate %92 by %c18_i32 dim 1 : vector<8x256xf32>, i32 -> vector<8x256xf32>
    %547 = vector.broadcast %214 : vector<1x256xf32> to vector<8x256xf32>
    %548 = arith.mulf %546, %547 : vector<8x256xf32>
    %549 = vector.extract_strided_slice %442 {offsets = [0, 15], sizes = [8, 1], strides = [1, 1]} : vector<8x49xf32> to vector<8x1xf32>
    %550 = vector.broadcast %549 : vector<8x1xf32> to vector<8x256xf32>
    %551 = arith.mulf %548, %550 : vector<8x256xf32>
    %552 = arith.addf %524, %551 : vector<8x256xf32>
    %c17_i32_218 = arith.constant 17 : i32
    %553 = tpu.dynamic_rotate %92 by %c17_i32_218 dim 1 : vector<8x256xf32>, i32 -> vector<8x256xf32>
    %554 = vector.broadcast %222 : vector<1x256xf32> to vector<8x256xf32>
    %555 = arith.mulf %553, %554 : vector<8x256xf32>
    %556 = vector.extract_strided_slice %442 {offsets = [0, 16], sizes = [8, 1], strides = [1, 1]} : vector<8x49xf32> to vector<8x1xf32>
    %557 = vector.broadcast %556 : vector<8x1xf32> to vector<8x256xf32>
    %558 = arith.mulf %555, %557 : vector<8x256xf32>
    %559 = arith.addf %531, %558 : vector<8x256xf32>
    %c16_i32_219 = arith.constant 16 : i32
    %560 = tpu.dynamic_rotate %92 by %c16_i32_219 dim 1 : vector<8x256xf32>, i32 -> vector<8x256xf32>
    %561 = vector.broadcast %227 : vector<1x256xf32> to vector<8x256xf32>
    %562 = arith.mulf %560, %561 : vector<8x256xf32>
    %563 = vector.extract_strided_slice %442 {offsets = [0, 17], sizes = [8, 1], strides = [1, 1]} : vector<8x49xf32> to vector<8x1xf32>
    %564 = vector.broadcast %563 : vector<8x1xf32> to vector<8x256xf32>
    %565 = arith.mulf %562, %564 : vector<8x256xf32>
    %566 = arith.addf %538, %565 : vector<8x256xf32>
    %c15_i32_220 = arith.constant 15 : i32
    %567 = tpu.dynamic_rotate %92 by %c15_i32_220 dim 1 : vector<8x256xf32>, i32 -> vector<8x256xf32>
    %568 = vector.broadcast %235 : vector<1x256xf32> to vector<8x256xf32>
    %569 = arith.mulf %567, %568 : vector<8x256xf32>
    %570 = vector.extract_strided_slice %442 {offsets = [0, 18], sizes = [8, 1], strides = [1, 1]} : vector<8x49xf32> to vector<8x1xf32>
    %571 = vector.broadcast %570 : vector<8x1xf32> to vector<8x256xf32>
    %572 = arith.mulf %569, %571 : vector<8x256xf32>
    %573 = arith.addf %545, %572 : vector<8x256xf32>
    %c14_i32_221 = arith.constant 14 : i32
    %574 = tpu.dynamic_rotate %92 by %c14_i32_221 dim 1 : vector<8x256xf32>, i32 -> vector<8x256xf32>
    %575 = vector.broadcast %243 : vector<1x256xf32> to vector<8x256xf32>
    %576 = arith.mulf %574, %575 : vector<8x256xf32>
    %577 = vector.extract_strided_slice %442 {offsets = [0, 19], sizes = [8, 1], strides = [1, 1]} : vector<8x49xf32> to vector<8x1xf32>
    %578 = vector.broadcast %577 : vector<8x1xf32> to vector<8x256xf32>
    %579 = arith.mulf %576, %578 : vector<8x256xf32>
    %580 = arith.addf %552, %579 : vector<8x256xf32>
    %c13_i32_222 = arith.constant 13 : i32
    %581 = tpu.dynamic_rotate %92 by %c13_i32_222 dim 1 : vector<8x256xf32>, i32 -> vector<8x256xf32>
    %582 = vector.broadcast %251 : vector<1x256xf32> to vector<8x256xf32>
    %583 = arith.mulf %581, %582 : vector<8x256xf32>
    %584 = vector.extract_strided_slice %442 {offsets = [0, 20], sizes = [8, 1], strides = [1, 1]} : vector<8x49xf32> to vector<8x1xf32>
    %585 = vector.broadcast %584 : vector<8x1xf32> to vector<8x256xf32>
    %586 = arith.mulf %583, %585 : vector<8x256xf32>
    %587 = arith.addf %559, %586 : vector<8x256xf32>
    %c3_i32_223 = arith.constant 3 : i32
    %588 = tpu.dynamic_rotate %92 by %c3_i32_223 dim 1 : vector<8x256xf32>, i32 -> vector<8x256xf32>
    %589 = vector.broadcast %256 : vector<1x256xf32> to vector<8x256xf32>
    %590 = arith.mulf %588, %589 : vector<8x256xf32>
    %591 = vector.extract_strided_slice %442 {offsets = [0, 21], sizes = [8, 1], strides = [1, 1]} : vector<8x49xf32> to vector<8x1xf32>
    %592 = vector.broadcast %591 : vector<8x1xf32> to vector<8x256xf32>
    %593 = arith.mulf %590, %592 : vector<8x256xf32>
    %594 = arith.addf %566, %593 : vector<8x256xf32>
    %c2_i32_224 = arith.constant 2 : i32
    %595 = tpu.dynamic_rotate %92 by %c2_i32_224 dim 1 : vector<8x256xf32>, i32 -> vector<8x256xf32>
    %596 = vector.broadcast %261 : vector<1x256xf32> to vector<8x256xf32>
    %597 = arith.mulf %595, %596 : vector<8x256xf32>
    %598 = vector.extract_strided_slice %442 {offsets = [0, 22], sizes = [8, 1], strides = [1, 1]} : vector<8x49xf32> to vector<8x1xf32>
    %599 = vector.broadcast %598 : vector<8x1xf32> to vector<8x256xf32>
    %600 = arith.mulf %597, %599 : vector<8x256xf32>
    %601 = arith.addf %573, %600 : vector<8x256xf32>
    %c1_i32_225 = arith.constant 1 : i32
    %602 = tpu.dynamic_rotate %92 by %c1_i32_225 dim 1 : vector<8x256xf32>, i32 -> vector<8x256xf32>
    %603 = vector.broadcast %266 : vector<1x256xf32> to vector<8x256xf32>
    %604 = arith.mulf %602, %603 : vector<8x256xf32>
    %605 = vector.extract_strided_slice %442 {offsets = [0, 23], sizes = [8, 1], strides = [1, 1]} : vector<8x49xf32> to vector<8x1xf32>
    %606 = vector.broadcast %605 : vector<8x1xf32> to vector<8x256xf32>
    %607 = arith.mulf %604, %606 : vector<8x256xf32>
    %608 = arith.addf %580, %607 : vector<8x256xf32>
    %609 = vector.extract_strided_slice %442 {offsets = [0, 24], sizes = [8, 1], strides = [1, 1]} : vector<8x49xf32> to vector<8x1xf32>
    %610 = vector.broadcast %609 : vector<8x1xf32> to vector<8x256xf32>
    %611 = arith.mulf %92, %610 : vector<8x256xf32>
    %612 = arith.addf %587, %611 : vector<8x256xf32>
    %c255_i32_226 = arith.constant 255 : i32
    %613 = tpu.dynamic_rotate %92 by %c255_i32_226 dim 1 : vector<8x256xf32>, i32 -> vector<8x256xf32>
    %614 = vector.broadcast %271 : vector<1x256xf32> to vector<8x256xf32>
    %615 = arith.mulf %613, %614 : vector<8x256xf32>
    %616 = vector.extract_strided_slice %442 {offsets = [0, 25], sizes = [8, 1], strides = [1, 1]} : vector<8x49xf32> to vector<8x1xf32>
    %617 = vector.broadcast %616 : vector<8x1xf32> to vector<8x256xf32>
    %618 = arith.mulf %615, %617 : vector<8x256xf32>
    %619 = arith.addf %594, %618 : vector<8x256xf32>
    %c254_i32 = arith.constant 254 : i32
    %620 = tpu.dynamic_rotate %92 by %c254_i32 dim 1 : vector<8x256xf32>, i32 -> vector<8x256xf32>
    %621 = vector.broadcast %276 : vector<1x256xf32> to vector<8x256xf32>
    %622 = arith.mulf %620, %621 : vector<8x256xf32>
    %623 = vector.extract_strided_slice %442 {offsets = [0, 26], sizes = [8, 1], strides = [1, 1]} : vector<8x49xf32> to vector<8x1xf32>
    %624 = vector.broadcast %623 : vector<8x1xf32> to vector<8x256xf32>
    %625 = arith.mulf %622, %624 : vector<8x256xf32>
    %626 = arith.addf %601, %625 : vector<8x256xf32>
    %c253_i32 = arith.constant 253 : i32
    %627 = tpu.dynamic_rotate %92 by %c253_i32 dim 1 : vector<8x256xf32>, i32 -> vector<8x256xf32>
    %628 = vector.broadcast %281 : vector<1x256xf32> to vector<8x256xf32>
    %629 = arith.mulf %627, %628 : vector<8x256xf32>
    %630 = vector.extract_strided_slice %442 {offsets = [0, 27], sizes = [8, 1], strides = [1, 1]} : vector<8x49xf32> to vector<8x1xf32>
    %631 = vector.broadcast %630 : vector<8x1xf32> to vector<8x256xf32>
    %632 = arith.mulf %629, %631 : vector<8x256xf32>
    %633 = arith.addf %608, %632 : vector<8x256xf32>
    %c243_i32 = arith.constant 243 : i32
    %634 = tpu.dynamic_rotate %92 by %c243_i32 dim 1 : vector<8x256xf32>, i32 -> vector<8x256xf32>
    %635 = vector.broadcast %289 : vector<1x256xf32> to vector<8x256xf32>
    %636 = arith.mulf %634, %635 : vector<8x256xf32>
    %637 = vector.extract_strided_slice %442 {offsets = [0, 28], sizes = [8, 1], strides = [1, 1]} : vector<8x49xf32> to vector<8x1xf32>
    %638 = vector.broadcast %637 : vector<8x1xf32> to vector<8x256xf32>
    %639 = arith.mulf %636, %638 : vector<8x256xf32>
    %640 = arith.addf %612, %639 : vector<8x256xf32>
    %c242_i32 = arith.constant 242 : i32
    %641 = tpu.dynamic_rotate %92 by %c242_i32 dim 1 : vector<8x256xf32>, i32 -> vector<8x256xf32>
    %642 = vector.broadcast %297 : vector<1x256xf32> to vector<8x256xf32>
    %643 = arith.mulf %641, %642 : vector<8x256xf32>
    %644 = vector.extract_strided_slice %442 {offsets = [0, 29], sizes = [8, 1], strides = [1, 1]} : vector<8x49xf32> to vector<8x1xf32>
    %645 = vector.broadcast %644 : vector<8x1xf32> to vector<8x256xf32>
    %646 = arith.mulf %643, %645 : vector<8x256xf32>
    %647 = arith.addf %619, %646 : vector<8x256xf32>
    %c241_i32_227 = arith.constant 241 : i32
    %648 = tpu.dynamic_rotate %92 by %c241_i32_227 dim 1 : vector<8x256xf32>, i32 -> vector<8x256xf32>
    %649 = vector.broadcast %305 : vector<1x256xf32> to vector<8x256xf32>
    %650 = arith.mulf %648, %649 : vector<8x256xf32>
    %651 = vector.extract_strided_slice %442 {offsets = [0, 30], sizes = [8, 1], strides = [1, 1]} : vector<8x49xf32> to vector<8x1xf32>
    %652 = vector.broadcast %651 : vector<8x1xf32> to vector<8x256xf32>
    %653 = arith.mulf %650, %652 : vector<8x256xf32>
    %654 = arith.addf %626, %653 : vector<8x256xf32>
    %c240_i32_228 = arith.constant 240 : i32
    %655 = tpu.dynamic_rotate %92 by %c240_i32_228 dim 1 : vector<8x256xf32>, i32 -> vector<8x256xf32>
    %656 = vector.broadcast %310 : vector<1x256xf32> to vector<8x256xf32>
    %657 = arith.mulf %655, %656 : vector<8x256xf32>
    %658 = vector.extract_strided_slice %442 {offsets = [0, 31], sizes = [8, 1], strides = [1, 1]} : vector<8x49xf32> to vector<8x1xf32>
    %659 = vector.broadcast %658 : vector<8x1xf32> to vector<8x256xf32>
    %660 = arith.mulf %657, %659 : vector<8x256xf32>
    %661 = arith.addf %633, %660 : vector<8x256xf32>
    %c239_i32_229 = arith.constant 239 : i32
    %662 = tpu.dynamic_rotate %92 by %c239_i32_229 dim 1 : vector<8x256xf32>, i32 -> vector<8x256xf32>
    %663 = vector.broadcast %318 : vector<1x256xf32> to vector<8x256xf32>
    %664 = arith.mulf %662, %663 : vector<8x256xf32>
    %665 = vector.extract_strided_slice %442 {offsets = [0, 32], sizes = [8, 1], strides = [1, 1]} : vector<8x49xf32> to vector<8x1xf32>
    %666 = vector.broadcast %665 : vector<8x1xf32> to vector<8x256xf32>
    %667 = arith.mulf %664, %666 : vector<8x256xf32>
    %668 = arith.addf %640, %667 : vector<8x256xf32>
    %c238_i32 = arith.constant 238 : i32
    %669 = tpu.dynamic_rotate %92 by %c238_i32 dim 1 : vector<8x256xf32>, i32 -> vector<8x256xf32>
    %670 = vector.broadcast %326 : vector<1x256xf32> to vector<8x256xf32>
    %671 = arith.mulf %669, %670 : vector<8x256xf32>
    %672 = vector.extract_strided_slice %442 {offsets = [0, 33], sizes = [8, 1], strides = [1, 1]} : vector<8x49xf32> to vector<8x1xf32>
    %673 = vector.broadcast %672 : vector<8x1xf32> to vector<8x256xf32>
    %674 = arith.mulf %671, %673 : vector<8x256xf32>
    %675 = arith.addf %647, %674 : vector<8x256xf32>
    %c237_i32 = arith.constant 237 : i32
    %676 = tpu.dynamic_rotate %92 by %c237_i32 dim 1 : vector<8x256xf32>, i32 -> vector<8x256xf32>
    %677 = vector.broadcast %334 : vector<1x256xf32> to vector<8x256xf32>
    %678 = arith.mulf %676, %677 : vector<8x256xf32>
    %679 = vector.extract_strided_slice %442 {offsets = [0, 34], sizes = [8, 1], strides = [1, 1]} : vector<8x49xf32> to vector<8x1xf32>
    %680 = vector.broadcast %679 : vector<8x1xf32> to vector<8x256xf32>
    %681 = arith.mulf %678, %680 : vector<8x256xf32>
    %682 = arith.addf %654, %681 : vector<8x256xf32>
    %c227_i32 = arith.constant 227 : i32
    %683 = tpu.dynamic_rotate %92 by %c227_i32 dim 1 : vector<8x256xf32>, i32 -> vector<8x256xf32>
    %684 = vector.broadcast %342 : vector<1x256xf32> to vector<8x256xf32>
    %685 = arith.mulf %683, %684 : vector<8x256xf32>
    %686 = vector.extract_strided_slice %442 {offsets = [0, 35], sizes = [8, 1], strides = [1, 1]} : vector<8x49xf32> to vector<8x1xf32>
    %687 = vector.broadcast %686 : vector<8x1xf32> to vector<8x256xf32>
    %688 = arith.mulf %685, %687 : vector<8x256xf32>
    %689 = arith.addf %661, %688 : vector<8x256xf32>
    %c226_i32 = arith.constant 226 : i32
    %690 = tpu.dynamic_rotate %92 by %c226_i32 dim 1 : vector<8x256xf32>, i32 -> vector<8x256xf32>
    %691 = vector.broadcast %350 : vector<1x256xf32> to vector<8x256xf32>
    %692 = arith.mulf %690, %691 : vector<8x256xf32>
    %693 = vector.extract_strided_slice %442 {offsets = [0, 36], sizes = [8, 1], strides = [1, 1]} : vector<8x49xf32> to vector<8x1xf32>
    %694 = vector.broadcast %693 : vector<8x1xf32> to vector<8x256xf32>
    %695 = arith.mulf %692, %694 : vector<8x256xf32>
    %696 = arith.addf %668, %695 : vector<8x256xf32>
    %c225_i32 = arith.constant 225 : i32
    %697 = tpu.dynamic_rotate %92 by %c225_i32 dim 1 : vector<8x256xf32>, i32 -> vector<8x256xf32>
    %698 = vector.broadcast %358 : vector<1x256xf32> to vector<8x256xf32>
    %699 = arith.mulf %697, %698 : vector<8x256xf32>
    %700 = vector.extract_strided_slice %442 {offsets = [0, 37], sizes = [8, 1], strides = [1, 1]} : vector<8x49xf32> to vector<8x1xf32>
    %701 = vector.broadcast %700 : vector<8x1xf32> to vector<8x256xf32>
    %702 = arith.mulf %699, %701 : vector<8x256xf32>
    %703 = arith.addf %675, %702 : vector<8x256xf32>
    %c224_i32 = arith.constant 224 : i32
    %704 = tpu.dynamic_rotate %92 by %c224_i32 dim 1 : vector<8x256xf32>, i32 -> vector<8x256xf32>
    %705 = vector.broadcast %363 : vector<1x256xf32> to vector<8x256xf32>
    %706 = arith.mulf %704, %705 : vector<8x256xf32>
    %707 = vector.extract_strided_slice %442 {offsets = [0, 38], sizes = [8, 1], strides = [1, 1]} : vector<8x49xf32> to vector<8x1xf32>
    %708 = vector.broadcast %707 : vector<8x1xf32> to vector<8x256xf32>
    %709 = arith.mulf %706, %708 : vector<8x256xf32>
    %710 = arith.addf %682, %709 : vector<8x256xf32>
    %c223_i32 = arith.constant 223 : i32
    %711 = tpu.dynamic_rotate %92 by %c223_i32 dim 1 : vector<8x256xf32>, i32 -> vector<8x256xf32>
    %712 = vector.broadcast %371 : vector<1x256xf32> to vector<8x256xf32>
    %713 = arith.mulf %711, %712 : vector<8x256xf32>
    %714 = vector.extract_strided_slice %442 {offsets = [0, 39], sizes = [8, 1], strides = [1, 1]} : vector<8x49xf32> to vector<8x1xf32>
    %715 = vector.broadcast %714 : vector<8x1xf32> to vector<8x256xf32>
    %716 = arith.mulf %713, %715 : vector<8x256xf32>
    %717 = arith.addf %689, %716 : vector<8x256xf32>
    %c222_i32 = arith.constant 222 : i32
    %718 = tpu.dynamic_rotate %92 by %c222_i32 dim 1 : vector<8x256xf32>, i32 -> vector<8x256xf32>
    %719 = vector.broadcast %379 : vector<1x256xf32> to vector<8x256xf32>
    %720 = arith.mulf %718, %719 : vector<8x256xf32>
    %721 = vector.extract_strided_slice %442 {offsets = [0, 40], sizes = [8, 1], strides = [1, 1]} : vector<8x49xf32> to vector<8x1xf32>
    %722 = vector.broadcast %721 : vector<8x1xf32> to vector<8x256xf32>
    %723 = arith.mulf %720, %722 : vector<8x256xf32>
    %724 = arith.addf %696, %723 : vector<8x256xf32>
    %c221_i32 = arith.constant 221 : i32
    %725 = tpu.dynamic_rotate %92 by %c221_i32 dim 1 : vector<8x256xf32>, i32 -> vector<8x256xf32>
    %726 = vector.broadcast %387 : vector<1x256xf32> to vector<8x256xf32>
    %727 = arith.mulf %725, %726 : vector<8x256xf32>
    %728 = vector.extract_strided_slice %442 {offsets = [0, 41], sizes = [8, 1], strides = [1, 1]} : vector<8x49xf32> to vector<8x1xf32>
    %729 = vector.broadcast %728 : vector<8x1xf32> to vector<8x256xf32>
    %730 = arith.mulf %727, %729 : vector<8x256xf32>
    %731 = arith.addf %703, %730 : vector<8x256xf32>
    %c211_i32 = arith.constant 211 : i32
    %732 = tpu.dynamic_rotate %92 by %c211_i32 dim 1 : vector<8x256xf32>, i32 -> vector<8x256xf32>
    %733 = vector.broadcast %395 : vector<1x256xf32> to vector<8x256xf32>
    %734 = arith.mulf %732, %733 : vector<8x256xf32>
    %735 = vector.extract_strided_slice %442 {offsets = [0, 42], sizes = [8, 1], strides = [1, 1]} : vector<8x49xf32> to vector<8x1xf32>
    %736 = vector.broadcast %735 : vector<8x1xf32> to vector<8x256xf32>
    %737 = arith.mulf %734, %736 : vector<8x256xf32>
    %738 = arith.addf %710, %737 : vector<8x256xf32>
    %c210_i32 = arith.constant 210 : i32
    %739 = tpu.dynamic_rotate %92 by %c210_i32 dim 1 : vector<8x256xf32>, i32 -> vector<8x256xf32>
    %740 = vector.broadcast %403 : vector<1x256xf32> to vector<8x256xf32>
    %741 = arith.mulf %739, %740 : vector<8x256xf32>
    %742 = vector.extract_strided_slice %442 {offsets = [0, 43], sizes = [8, 1], strides = [1, 1]} : vector<8x49xf32> to vector<8x1xf32>
    %743 = vector.broadcast %742 : vector<8x1xf32> to vector<8x256xf32>
    %744 = arith.mulf %741, %743 : vector<8x256xf32>
    %745 = arith.addf %717, %744 : vector<8x256xf32>
    %c209_i32 = arith.constant 209 : i32
    %746 = tpu.dynamic_rotate %92 by %c209_i32 dim 1 : vector<8x256xf32>, i32 -> vector<8x256xf32>
    %747 = vector.broadcast %411 : vector<1x256xf32> to vector<8x256xf32>
    %748 = arith.mulf %746, %747 : vector<8x256xf32>
    %749 = vector.extract_strided_slice %442 {offsets = [0, 44], sizes = [8, 1], strides = [1, 1]} : vector<8x49xf32> to vector<8x1xf32>
    %750 = vector.broadcast %749 : vector<8x1xf32> to vector<8x256xf32>
    %751 = arith.mulf %748, %750 : vector<8x256xf32>
    %752 = arith.addf %724, %751 : vector<8x256xf32>
    %c208_i32 = arith.constant 208 : i32
    %753 = tpu.dynamic_rotate %92 by %c208_i32 dim 1 : vector<8x256xf32>, i32 -> vector<8x256xf32>
    %754 = vector.broadcast %416 : vector<1x256xf32> to vector<8x256xf32>
    %755 = arith.mulf %753, %754 : vector<8x256xf32>
    %756 = vector.extract_strided_slice %442 {offsets = [0, 45], sizes = [8, 1], strides = [1, 1]} : vector<8x49xf32> to vector<8x1xf32>
    %757 = vector.broadcast %756 : vector<8x1xf32> to vector<8x256xf32>
    %758 = arith.mulf %755, %757 : vector<8x256xf32>
    %759 = arith.addf %731, %758 : vector<8x256xf32>
    %c207_i32 = arith.constant 207 : i32
    %760 = tpu.dynamic_rotate %92 by %c207_i32 dim 1 : vector<8x256xf32>, i32 -> vector<8x256xf32>
    %761 = vector.broadcast %424 : vector<1x256xf32> to vector<8x256xf32>
    %762 = arith.mulf %760, %761 : vector<8x256xf32>
    %763 = vector.extract_strided_slice %442 {offsets = [0, 46], sizes = [8, 1], strides = [1, 1]} : vector<8x49xf32> to vector<8x1xf32>
    %764 = vector.broadcast %763 : vector<8x1xf32> to vector<8x256xf32>
    %765 = arith.mulf %762, %764 : vector<8x256xf32>
    %766 = arith.addf %738, %765 : vector<8x256xf32>
    %c206_i32 = arith.constant 206 : i32
    %767 = tpu.dynamic_rotate %92 by %c206_i32 dim 1 : vector<8x256xf32>, i32 -> vector<8x256xf32>
    %768 = vector.broadcast %432 : vector<1x256xf32> to vector<8x256xf32>
    %769 = arith.mulf %767, %768 : vector<8x256xf32>
    %770 = vector.extract_strided_slice %442 {offsets = [0, 47], sizes = [8, 1], strides = [1, 1]} : vector<8x49xf32> to vector<8x1xf32>
    %771 = vector.broadcast %770 : vector<8x1xf32> to vector<8x256xf32>
    %772 = arith.mulf %769, %771 : vector<8x256xf32>
    %773 = arith.addf %745, %772 : vector<8x256xf32>
    %c205_i32 = arith.constant 205 : i32
    %774 = tpu.dynamic_rotate %92 by %c205_i32 dim 1 : vector<8x256xf32>, i32 -> vector<8x256xf32>
    %775 = vector.broadcast %440 : vector<1x256xf32> to vector<8x256xf32>
    %776 = arith.mulf %774, %775 : vector<8x256xf32>
    %777 = vector.extract_strided_slice %442 {offsets = [0, 48], sizes = [8, 1], strides = [1, 1]} : vector<8x49xf32> to vector<8x1xf32>
    %778 = vector.broadcast %777 : vector<8x1xf32> to vector<8x256xf32>
    %779 = arith.mulf %776, %778 : vector<8x256xf32>
    %780 = arith.addf %752, %779 : vector<8x256xf32>
    %781 = arith.addf %780, %759 : vector<8x256xf32>
    %782 = arith.addf %766, %773 : vector<8x256xf32>
    %783 = arith.addf %781, %782 : vector<8x256xf32>
    %784 = vector.broadcast %444 : vector<8x1xf32> to vector<8x256xf32>
    %785 = arith.addf %783, %784 : vector<8x256xf32>
    %c0_230 = arith.constant 0 : index
    %c0_231 = arith.constant 0 : index
    %786 = vector.load %arg3[%c0_230, %c0_231] : memref<48x8xbf16, #tpu.memory_space<vmem>>, vector<48x8xbf16>
    %787 = arith.truncf %785 : vector<8x256xf32> to vector<8x256xbf16>
    %cst_232 = arith.constant dense<0.000000e+00> : vector<48x256xf32>
    %788 = tpu.matmul %786, %787, %cst_232 {dimension_numbers = #tpu.dot_dimension_numbers<[1], [0], [0], [1], [0, 0, 1, 1], [], []>} : vector<48x8xbf16>, vector<8x256xbf16>, vector<48x256xf32> -> vector<48x256xf32>
    %c0_233 = arith.constant 0 : index
    %c0_234 = arith.constant 0 : index
    %789 = vector.load %arg7[%c0_233, %c0_234] : memref<48x1xf32, #tpu.memory_space<vmem>>, vector<48x1xf32>
    %790 = vector.broadcast %789 : vector<48x1xf32> to vector<48x256xf32>
    %791 = arith.addf %788, %790 : vector<48x256xf32>
    %792 = vector.extract_strided_slice %791 {offsets = [0, 0], sizes = [24, 256], strides = [1, 1]} : vector<48x256xf32> to vector<24x256xf32>
    %793 = vector.extract_strided_slice %791 {offsets = [24, 0], sizes = [24, 256], strides = [1, 1]} : vector<48x256xf32> to vector<24x256xf32>
    %794 = arith.negf %792 : vector<24x256xf32>
    %795 = math.exp %794 : vector<24x256xf32>
    %cst_235 = arith.constant 1.000000e+00 : f32
    %796 = vector.broadcast %cst_235 : f32 to vector<24x256xf32>
    %797 = arith.addf %796, %795 : vector<24x256xf32>
    %798 = arith.divf %796, %797 : vector<24x256xf32>
    %799 = arith.mulf %792, %798 : vector<24x256xf32>
    %800 = arith.mulf %799, %793 : vector<24x256xf32>
    %c0_236 = arith.constant 0 : index
    %c0_237 = arith.constant 0 : index
    %801 = vector.load %arg4[%c0_236, %c0_237] : memref<8x24xbf16, #tpu.memory_space<vmem>>, vector<8x24xbf16>
    %802 = arith.truncf %800 : vector<24x256xf32> to vector<24x256xbf16>
    %cst_238 = arith.constant dense<0.000000e+00> : vector<8x256xf32>
    %803 = tpu.matmul %801, %802, %cst_238 {dimension_numbers = #tpu.dot_dimension_numbers<[1], [0], [0], [1], [0, 0, 1, 1], [], []>} : vector<8x24xbf16>, vector<24x256xbf16>, vector<8x256xf32> -> vector<8x256xf32>
    %c2 = arith.constant 2 : index
    %c0_239 = arith.constant 0 : index
    %c0_240 = arith.constant 0 : index
    %804 = vector.load %arg6[%c2, %c0_239, %c0_240] : memref<4x8x1xf32, #tpu.memory_space<vmem>>, vector<1x8x1xf32>
    %805 = vector.shape_cast %804 : vector<1x8x1xf32> to vector<8x1xf32>
    %806 = vector.broadcast %805 : vector<8x1xf32> to vector<8x256xf32>
    %807 = arith.addf %803, %806 : vector<8x256xf32>
    %c1_241 = arith.constant 1 : index
    %c0_242 = arith.constant 0 : index
    %c0_243 = arith.constant 0 : index
    %808 = vector.load %arg5[%c1_241, %c0_242, %c0_243] : memref<2x8x49xf32, #tpu.memory_space<vmem>>, vector<1x8x49xf32>
    %809 = vector.shape_cast %808 : vector<1x8x49xf32> to vector<8x49xf32>
    %c3 = arith.constant 3 : index
    %c0_244 = arith.constant 0 : index
    %c0_245 = arith.constant 0 : index
    %810 = vector.load %arg6[%c3, %c0_244, %c0_245] : memref<4x8x1xf32, #tpu.memory_space<vmem>>, vector<1x8x1xf32>
    %811 = vector.shape_cast %810 : vector<1x8x1xf32> to vector<8x1xf32>
    %c51_i32_246 = arith.constant 51 : i32
    %812 = tpu.dynamic_rotate %807 by %c51_i32_246 dim 1 : vector<8x256xf32>, i32 -> vector<8x256xf32>
    %813 = vector.broadcast %100 : vector<1x256xf32> to vector<8x256xf32>
    %814 = arith.mulf %812, %813 : vector<8x256xf32>
    %815 = vector.extract_strided_slice %809 {offsets = [0, 0], sizes = [8, 1], strides = [1, 1]} : vector<8x49xf32> to vector<8x1xf32>
    %816 = vector.broadcast %815 : vector<8x1xf32> to vector<8x256xf32>
    %817 = arith.mulf %814, %816 : vector<8x256xf32>
    %c50_i32_247 = arith.constant 50 : i32
    %818 = tpu.dynamic_rotate %807 by %c50_i32_247 dim 1 : vector<8x256xf32>, i32 -> vector<8x256xf32>
    %819 = vector.broadcast %108 : vector<1x256xf32> to vector<8x256xf32>
    %820 = arith.mulf %818, %819 : vector<8x256xf32>
    %821 = vector.extract_strided_slice %809 {offsets = [0, 1], sizes = [8, 1], strides = [1, 1]} : vector<8x49xf32> to vector<8x1xf32>
    %822 = vector.broadcast %821 : vector<8x1xf32> to vector<8x256xf32>
    %823 = arith.mulf %820, %822 : vector<8x256xf32>
    %c49_i32_248 = arith.constant 49 : i32
    %824 = tpu.dynamic_rotate %807 by %c49_i32_248 dim 1 : vector<8x256xf32>, i32 -> vector<8x256xf32>
    %825 = vector.broadcast %116 : vector<1x256xf32> to vector<8x256xf32>
    %826 = arith.mulf %824, %825 : vector<8x256xf32>
    %827 = vector.extract_strided_slice %809 {offsets = [0, 2], sizes = [8, 1], strides = [1, 1]} : vector<8x49xf32> to vector<8x1xf32>
    %828 = vector.broadcast %827 : vector<8x1xf32> to vector<8x256xf32>
    %829 = arith.mulf %826, %828 : vector<8x256xf32>
    %c48_i32_249 = arith.constant 48 : i32
    %830 = tpu.dynamic_rotate %807 by %c48_i32_249 dim 1 : vector<8x256xf32>, i32 -> vector<8x256xf32>
    %831 = vector.broadcast %121 : vector<1x256xf32> to vector<8x256xf32>
    %832 = arith.mulf %830, %831 : vector<8x256xf32>
    %833 = vector.extract_strided_slice %809 {offsets = [0, 3], sizes = [8, 1], strides = [1, 1]} : vector<8x49xf32> to vector<8x1xf32>
    %834 = vector.broadcast %833 : vector<8x1xf32> to vector<8x256xf32>
    %835 = arith.mulf %832, %834 : vector<8x256xf32>
    %c47_i32_250 = arith.constant 47 : i32
    %836 = tpu.dynamic_rotate %807 by %c47_i32_250 dim 1 : vector<8x256xf32>, i32 -> vector<8x256xf32>
    %837 = vector.broadcast %129 : vector<1x256xf32> to vector<8x256xf32>
    %838 = arith.mulf %836, %837 : vector<8x256xf32>
    %839 = vector.extract_strided_slice %809 {offsets = [0, 4], sizes = [8, 1], strides = [1, 1]} : vector<8x49xf32> to vector<8x1xf32>
    %840 = vector.broadcast %839 : vector<8x1xf32> to vector<8x256xf32>
    %841 = arith.mulf %838, %840 : vector<8x256xf32>
    %842 = arith.addf %817, %841 : vector<8x256xf32>
    %c46_i32_251 = arith.constant 46 : i32
    %843 = tpu.dynamic_rotate %807 by %c46_i32_251 dim 1 : vector<8x256xf32>, i32 -> vector<8x256xf32>
    %844 = vector.broadcast %137 : vector<1x256xf32> to vector<8x256xf32>
    %845 = arith.mulf %843, %844 : vector<8x256xf32>
    %846 = vector.extract_strided_slice %809 {offsets = [0, 5], sizes = [8, 1], strides = [1, 1]} : vector<8x49xf32> to vector<8x1xf32>
    %847 = vector.broadcast %846 : vector<8x1xf32> to vector<8x256xf32>
    %848 = arith.mulf %845, %847 : vector<8x256xf32>
    %849 = arith.addf %823, %848 : vector<8x256xf32>
    %c45_i32_252 = arith.constant 45 : i32
    %850 = tpu.dynamic_rotate %807 by %c45_i32_252 dim 1 : vector<8x256xf32>, i32 -> vector<8x256xf32>
    %851 = vector.broadcast %145 : vector<1x256xf32> to vector<8x256xf32>
    %852 = arith.mulf %850, %851 : vector<8x256xf32>
    %853 = vector.extract_strided_slice %809 {offsets = [0, 6], sizes = [8, 1], strides = [1, 1]} : vector<8x49xf32> to vector<8x1xf32>
    %854 = vector.broadcast %853 : vector<8x1xf32> to vector<8x256xf32>
    %855 = arith.mulf %852, %854 : vector<8x256xf32>
    %856 = arith.addf %829, %855 : vector<8x256xf32>
    %c35_i32_253 = arith.constant 35 : i32
    %857 = tpu.dynamic_rotate %807 by %c35_i32_253 dim 1 : vector<8x256xf32>, i32 -> vector<8x256xf32>
    %858 = vector.broadcast %153 : vector<1x256xf32> to vector<8x256xf32>
    %859 = arith.mulf %857, %858 : vector<8x256xf32>
    %860 = vector.extract_strided_slice %809 {offsets = [0, 7], sizes = [8, 1], strides = [1, 1]} : vector<8x49xf32> to vector<8x1xf32>
    %861 = vector.broadcast %860 : vector<8x1xf32> to vector<8x256xf32>
    %862 = arith.mulf %859, %861 : vector<8x256xf32>
    %863 = arith.addf %835, %862 : vector<8x256xf32>
    %c34_i32_254 = arith.constant 34 : i32
    %864 = tpu.dynamic_rotate %807 by %c34_i32_254 dim 1 : vector<8x256xf32>, i32 -> vector<8x256xf32>
    %865 = vector.broadcast %161 : vector<1x256xf32> to vector<8x256xf32>
    %866 = arith.mulf %864, %865 : vector<8x256xf32>
    %867 = vector.extract_strided_slice %809 {offsets = [0, 8], sizes = [8, 1], strides = [1, 1]} : vector<8x49xf32> to vector<8x1xf32>
    %868 = vector.broadcast %867 : vector<8x1xf32> to vector<8x256xf32>
    %869 = arith.mulf %866, %868 : vector<8x256xf32>
    %870 = arith.addf %842, %869 : vector<8x256xf32>
    %c33_i32_255 = arith.constant 33 : i32
    %871 = tpu.dynamic_rotate %807 by %c33_i32_255 dim 1 : vector<8x256xf32>, i32 -> vector<8x256xf32>
    %872 = vector.broadcast %169 : vector<1x256xf32> to vector<8x256xf32>
    %873 = arith.mulf %871, %872 : vector<8x256xf32>
    %874 = vector.extract_strided_slice %809 {offsets = [0, 9], sizes = [8, 1], strides = [1, 1]} : vector<8x49xf32> to vector<8x1xf32>
    %875 = vector.broadcast %874 : vector<8x1xf32> to vector<8x256xf32>
    %876 = arith.mulf %873, %875 : vector<8x256xf32>
    %877 = arith.addf %849, %876 : vector<8x256xf32>
    %c32_i32_256 = arith.constant 32 : i32
    %878 = tpu.dynamic_rotate %807 by %c32_i32_256 dim 1 : vector<8x256xf32>, i32 -> vector<8x256xf32>
    %879 = vector.broadcast %174 : vector<1x256xf32> to vector<8x256xf32>
    %880 = arith.mulf %878, %879 : vector<8x256xf32>
    %881 = vector.extract_strided_slice %809 {offsets = [0, 10], sizes = [8, 1], strides = [1, 1]} : vector<8x49xf32> to vector<8x1xf32>
    %882 = vector.broadcast %881 : vector<8x1xf32> to vector<8x256xf32>
    %883 = arith.mulf %880, %882 : vector<8x256xf32>
    %884 = arith.addf %856, %883 : vector<8x256xf32>
    %c31_i32_257 = arith.constant 31 : i32
    %885 = tpu.dynamic_rotate %807 by %c31_i32_257 dim 1 : vector<8x256xf32>, i32 -> vector<8x256xf32>
    %886 = vector.broadcast %182 : vector<1x256xf32> to vector<8x256xf32>
    %887 = arith.mulf %885, %886 : vector<8x256xf32>
    %888 = vector.extract_strided_slice %809 {offsets = [0, 11], sizes = [8, 1], strides = [1, 1]} : vector<8x49xf32> to vector<8x1xf32>
    %889 = vector.broadcast %888 : vector<8x1xf32> to vector<8x256xf32>
    %890 = arith.mulf %887, %889 : vector<8x256xf32>
    %891 = arith.addf %863, %890 : vector<8x256xf32>
    %c30_i32_258 = arith.constant 30 : i32
    %892 = tpu.dynamic_rotate %807 by %c30_i32_258 dim 1 : vector<8x256xf32>, i32 -> vector<8x256xf32>
    %893 = vector.broadcast %190 : vector<1x256xf32> to vector<8x256xf32>
    %894 = arith.mulf %892, %893 : vector<8x256xf32>
    %895 = vector.extract_strided_slice %809 {offsets = [0, 12], sizes = [8, 1], strides = [1, 1]} : vector<8x49xf32> to vector<8x1xf32>
    %896 = vector.broadcast %895 : vector<8x1xf32> to vector<8x256xf32>
    %897 = arith.mulf %894, %896 : vector<8x256xf32>
    %898 = arith.addf %870, %897 : vector<8x256xf32>
    %c29_i32_259 = arith.constant 29 : i32
    %899 = tpu.dynamic_rotate %807 by %c29_i32_259 dim 1 : vector<8x256xf32>, i32 -> vector<8x256xf32>
    %900 = vector.broadcast %198 : vector<1x256xf32> to vector<8x256xf32>
    %901 = arith.mulf %899, %900 : vector<8x256xf32>
    %902 = vector.extract_strided_slice %809 {offsets = [0, 13], sizes = [8, 1], strides = [1, 1]} : vector<8x49xf32> to vector<8x1xf32>
    %903 = vector.broadcast %902 : vector<8x1xf32> to vector<8x256xf32>
    %904 = arith.mulf %901, %903 : vector<8x256xf32>
    %905 = arith.addf %877, %904 : vector<8x256xf32>
    %c19_i32_260 = arith.constant 19 : i32
    %906 = tpu.dynamic_rotate %807 by %c19_i32_260 dim 1 : vector<8x256xf32>, i32 -> vector<8x256xf32>
    %907 = vector.broadcast %206 : vector<1x256xf32> to vector<8x256xf32>
    %908 = arith.mulf %906, %907 : vector<8x256xf32>
    %909 = vector.extract_strided_slice %809 {offsets = [0, 14], sizes = [8, 1], strides = [1, 1]} : vector<8x49xf32> to vector<8x1xf32>
    %910 = vector.broadcast %909 : vector<8x1xf32> to vector<8x256xf32>
    %911 = arith.mulf %908, %910 : vector<8x256xf32>
    %912 = arith.addf %884, %911 : vector<8x256xf32>
    %c18_i32_261 = arith.constant 18 : i32
    %913 = tpu.dynamic_rotate %807 by %c18_i32_261 dim 1 : vector<8x256xf32>, i32 -> vector<8x256xf32>
    %914 = vector.broadcast %214 : vector<1x256xf32> to vector<8x256xf32>
    %915 = arith.mulf %913, %914 : vector<8x256xf32>
    %916 = vector.extract_strided_slice %809 {offsets = [0, 15], sizes = [8, 1], strides = [1, 1]} : vector<8x49xf32> to vector<8x1xf32>
    %917 = vector.broadcast %916 : vector<8x1xf32> to vector<8x256xf32>
    %918 = arith.mulf %915, %917 : vector<8x256xf32>
    %919 = arith.addf %891, %918 : vector<8x256xf32>
    %c17_i32_262 = arith.constant 17 : i32
    %920 = tpu.dynamic_rotate %807 by %c17_i32_262 dim 1 : vector<8x256xf32>, i32 -> vector<8x256xf32>
    %921 = vector.broadcast %222 : vector<1x256xf32> to vector<8x256xf32>
    %922 = arith.mulf %920, %921 : vector<8x256xf32>
    %923 = vector.extract_strided_slice %809 {offsets = [0, 16], sizes = [8, 1], strides = [1, 1]} : vector<8x49xf32> to vector<8x1xf32>
    %924 = vector.broadcast %923 : vector<8x1xf32> to vector<8x256xf32>
    %925 = arith.mulf %922, %924 : vector<8x256xf32>
    %926 = arith.addf %898, %925 : vector<8x256xf32>
    %c16_i32_263 = arith.constant 16 : i32
    %927 = tpu.dynamic_rotate %807 by %c16_i32_263 dim 1 : vector<8x256xf32>, i32 -> vector<8x256xf32>
    %928 = vector.broadcast %227 : vector<1x256xf32> to vector<8x256xf32>
    %929 = arith.mulf %927, %928 : vector<8x256xf32>
    %930 = vector.extract_strided_slice %809 {offsets = [0, 17], sizes = [8, 1], strides = [1, 1]} : vector<8x49xf32> to vector<8x1xf32>
    %931 = vector.broadcast %930 : vector<8x1xf32> to vector<8x256xf32>
    %932 = arith.mulf %929, %931 : vector<8x256xf32>
    %933 = arith.addf %905, %932 : vector<8x256xf32>
    %c15_i32_264 = arith.constant 15 : i32
    %934 = tpu.dynamic_rotate %807 by %c15_i32_264 dim 1 : vector<8x256xf32>, i32 -> vector<8x256xf32>
    %935 = vector.broadcast %235 : vector<1x256xf32> to vector<8x256xf32>
    %936 = arith.mulf %934, %935 : vector<8x256xf32>
    %937 = vector.extract_strided_slice %809 {offsets = [0, 18], sizes = [8, 1], strides = [1, 1]} : vector<8x49xf32> to vector<8x1xf32>
    %938 = vector.broadcast %937 : vector<8x1xf32> to vector<8x256xf32>
    %939 = arith.mulf %936, %938 : vector<8x256xf32>
    %940 = arith.addf %912, %939 : vector<8x256xf32>
    %c14_i32_265 = arith.constant 14 : i32
    %941 = tpu.dynamic_rotate %807 by %c14_i32_265 dim 1 : vector<8x256xf32>, i32 -> vector<8x256xf32>
    %942 = vector.broadcast %243 : vector<1x256xf32> to vector<8x256xf32>
    %943 = arith.mulf %941, %942 : vector<8x256xf32>
    %944 = vector.extract_strided_slice %809 {offsets = [0, 19], sizes = [8, 1], strides = [1, 1]} : vector<8x49xf32> to vector<8x1xf32>
    %945 = vector.broadcast %944 : vector<8x1xf32> to vector<8x256xf32>
    %946 = arith.mulf %943, %945 : vector<8x256xf32>
    %947 = arith.addf %919, %946 : vector<8x256xf32>
    %c13_i32_266 = arith.constant 13 : i32
    %948 = tpu.dynamic_rotate %807 by %c13_i32_266 dim 1 : vector<8x256xf32>, i32 -> vector<8x256xf32>
    %949 = vector.broadcast %251 : vector<1x256xf32> to vector<8x256xf32>
    %950 = arith.mulf %948, %949 : vector<8x256xf32>
    %951 = vector.extract_strided_slice %809 {offsets = [0, 20], sizes = [8, 1], strides = [1, 1]} : vector<8x49xf32> to vector<8x1xf32>
    %952 = vector.broadcast %951 : vector<8x1xf32> to vector<8x256xf32>
    %953 = arith.mulf %950, %952 : vector<8x256xf32>
    %954 = arith.addf %926, %953 : vector<8x256xf32>
    %c3_i32_267 = arith.constant 3 : i32
    %955 = tpu.dynamic_rotate %807 by %c3_i32_267 dim 1 : vector<8x256xf32>, i32 -> vector<8x256xf32>
    %956 = vector.broadcast %256 : vector<1x256xf32> to vector<8x256xf32>
    %957 = arith.mulf %955, %956 : vector<8x256xf32>
    %958 = vector.extract_strided_slice %809 {offsets = [0, 21], sizes = [8, 1], strides = [1, 1]} : vector<8x49xf32> to vector<8x1xf32>
    %959 = vector.broadcast %958 : vector<8x1xf32> to vector<8x256xf32>
    %960 = arith.mulf %957, %959 : vector<8x256xf32>
    %961 = arith.addf %933, %960 : vector<8x256xf32>
    %c2_i32_268 = arith.constant 2 : i32
    %962 = tpu.dynamic_rotate %807 by %c2_i32_268 dim 1 : vector<8x256xf32>, i32 -> vector<8x256xf32>
    %963 = vector.broadcast %261 : vector<1x256xf32> to vector<8x256xf32>
    %964 = arith.mulf %962, %963 : vector<8x256xf32>
    %965 = vector.extract_strided_slice %809 {offsets = [0, 22], sizes = [8, 1], strides = [1, 1]} : vector<8x49xf32> to vector<8x1xf32>
    %966 = vector.broadcast %965 : vector<8x1xf32> to vector<8x256xf32>
    %967 = arith.mulf %964, %966 : vector<8x256xf32>
    %968 = arith.addf %940, %967 : vector<8x256xf32>
    %c1_i32_269 = arith.constant 1 : i32
    %969 = tpu.dynamic_rotate %807 by %c1_i32_269 dim 1 : vector<8x256xf32>, i32 -> vector<8x256xf32>
    %970 = vector.broadcast %266 : vector<1x256xf32> to vector<8x256xf32>
    %971 = arith.mulf %969, %970 : vector<8x256xf32>
    %972 = vector.extract_strided_slice %809 {offsets = [0, 23], sizes = [8, 1], strides = [1, 1]} : vector<8x49xf32> to vector<8x1xf32>
    %973 = vector.broadcast %972 : vector<8x1xf32> to vector<8x256xf32>
    %974 = arith.mulf %971, %973 : vector<8x256xf32>
    %975 = arith.addf %947, %974 : vector<8x256xf32>
    %976 = vector.extract_strided_slice %809 {offsets = [0, 24], sizes = [8, 1], strides = [1, 1]} : vector<8x49xf32> to vector<8x1xf32>
    %977 = vector.broadcast %976 : vector<8x1xf32> to vector<8x256xf32>
    %978 = arith.mulf %807, %977 : vector<8x256xf32>
    %979 = arith.addf %954, %978 : vector<8x256xf32>
    %c255_i32_270 = arith.constant 255 : i32
    %980 = tpu.dynamic_rotate %807 by %c255_i32_270 dim 1 : vector<8x256xf32>, i32 -> vector<8x256xf32>
    %981 = vector.broadcast %271 : vector<1x256xf32> to vector<8x256xf32>
    %982 = arith.mulf %980, %981 : vector<8x256xf32>
    %983 = vector.extract_strided_slice %809 {offsets = [0, 25], sizes = [8, 1], strides = [1, 1]} : vector<8x49xf32> to vector<8x1xf32>
    %984 = vector.broadcast %983 : vector<8x1xf32> to vector<8x256xf32>
    %985 = arith.mulf %982, %984 : vector<8x256xf32>
    %986 = arith.addf %961, %985 : vector<8x256xf32>
    %c254_i32_271 = arith.constant 254 : i32
    %987 = tpu.dynamic_rotate %807 by %c254_i32_271 dim 1 : vector<8x256xf32>, i32 -> vector<8x256xf32>
    %988 = vector.broadcast %276 : vector<1x256xf32> to vector<8x256xf32>
    %989 = arith.mulf %987, %988 : vector<8x256xf32>
    %990 = vector.extract_strided_slice %809 {offsets = [0, 26], sizes = [8, 1], strides = [1, 1]} : vector<8x49xf32> to vector<8x1xf32>
    %991 = vector.broadcast %990 : vector<8x1xf32> to vector<8x256xf32>
    %992 = arith.mulf %989, %991 : vector<8x256xf32>
    %993 = arith.addf %968, %992 : vector<8x256xf32>
    %c253_i32_272 = arith.constant 253 : i32
    %994 = tpu.dynamic_rotate %807 by %c253_i32_272 dim 1 : vector<8x256xf32>, i32 -> vector<8x256xf32>
    %995 = vector.broadcast %281 : vector<1x256xf32> to vector<8x256xf32>
    %996 = arith.mulf %994, %995 : vector<8x256xf32>
    %997 = vector.extract_strided_slice %809 {offsets = [0, 27], sizes = [8, 1], strides = [1, 1]} : vector<8x49xf32> to vector<8x1xf32>
    %998 = vector.broadcast %997 : vector<8x1xf32> to vector<8x256xf32>
    %999 = arith.mulf %996, %998 : vector<8x256xf32>
    %1000 = arith.addf %975, %999 : vector<8x256xf32>
    %c243_i32_273 = arith.constant 243 : i32
    %1001 = tpu.dynamic_rotate %807 by %c243_i32_273 dim 1 : vector<8x256xf32>, i32 -> vector<8x256xf32>
    %1002 = vector.broadcast %289 : vector<1x256xf32> to vector<8x256xf32>
    %1003 = arith.mulf %1001, %1002 : vector<8x256xf32>
    %1004 = vector.extract_strided_slice %809 {offsets = [0, 28], sizes = [8, 1], strides = [1, 1]} : vector<8x49xf32> to vector<8x1xf32>
    %1005 = vector.broadcast %1004 : vector<8x1xf32> to vector<8x256xf32>
    %1006 = arith.mulf %1003, %1005 : vector<8x256xf32>
    %1007 = arith.addf %979, %1006 : vector<8x256xf32>
    %c242_i32_274 = arith.constant 242 : i32
    %1008 = tpu.dynamic_rotate %807 by %c242_i32_274 dim 1 : vector<8x256xf32>, i32 -> vector<8x256xf32>
    %1009 = vector.broadcast %297 : vector<1x256xf32> to vector<8x256xf32>
    %1010 = arith.mulf %1008, %1009 : vector<8x256xf32>
    %1011 = vector.extract_strided_slice %809 {offsets = [0, 29], sizes = [8, 1], strides = [1, 1]} : vector<8x49xf32> to vector<8x1xf32>
    %1012 = vector.broadcast %1011 : vector<8x1xf32> to vector<8x256xf32>
    %1013 = arith.mulf %1010, %1012 : vector<8x256xf32>
    %1014 = arith.addf %986, %1013 : vector<8x256xf32>
    %c241_i32_275 = arith.constant 241 : i32
    %1015 = tpu.dynamic_rotate %807 by %c241_i32_275 dim 1 : vector<8x256xf32>, i32 -> vector<8x256xf32>
    %1016 = vector.broadcast %305 : vector<1x256xf32> to vector<8x256xf32>
    %1017 = arith.mulf %1015, %1016 : vector<8x256xf32>
    %1018 = vector.extract_strided_slice %809 {offsets = [0, 30], sizes = [8, 1], strides = [1, 1]} : vector<8x49xf32> to vector<8x1xf32>
    %1019 = vector.broadcast %1018 : vector<8x1xf32> to vector<8x256xf32>
    %1020 = arith.mulf %1017, %1019 : vector<8x256xf32>
    %1021 = arith.addf %993, %1020 : vector<8x256xf32>
    %c240_i32_276 = arith.constant 240 : i32
    %1022 = tpu.dynamic_rotate %807 by %c240_i32_276 dim 1 : vector<8x256xf32>, i32 -> vector<8x256xf32>
    %1023 = vector.broadcast %310 : vector<1x256xf32> to vector<8x256xf32>
    %1024 = arith.mulf %1022, %1023 : vector<8x256xf32>
    %1025 = vector.extract_strided_slice %809 {offsets = [0, 31], sizes = [8, 1], strides = [1, 1]} : vector<8x49xf32> to vector<8x1xf32>
    %1026 = vector.broadcast %1025 : vector<8x1xf32> to vector<8x256xf32>
    %1027 = arith.mulf %1024, %1026 : vector<8x256xf32>
    %1028 = arith.addf %1000, %1027 : vector<8x256xf32>
    %c239_i32_277 = arith.constant 239 : i32
    %1029 = tpu.dynamic_rotate %807 by %c239_i32_277 dim 1 : vector<8x256xf32>, i32 -> vector<8x256xf32>
    %1030 = vector.broadcast %318 : vector<1x256xf32> to vector<8x256xf32>
    %1031 = arith.mulf %1029, %1030 : vector<8x256xf32>
    %1032 = vector.extract_strided_slice %809 {offsets = [0, 32], sizes = [8, 1], strides = [1, 1]} : vector<8x49xf32> to vector<8x1xf32>
    %1033 = vector.broadcast %1032 : vector<8x1xf32> to vector<8x256xf32>
    %1034 = arith.mulf %1031, %1033 : vector<8x256xf32>
    %1035 = arith.addf %1007, %1034 : vector<8x256xf32>
    %c238_i32_278 = arith.constant 238 : i32
    %1036 = tpu.dynamic_rotate %807 by %c238_i32_278 dim 1 : vector<8x256xf32>, i32 -> vector<8x256xf32>
    %1037 = vector.broadcast %326 : vector<1x256xf32> to vector<8x256xf32>
    %1038 = arith.mulf %1036, %1037 : vector<8x256xf32>
    %1039 = vector.extract_strided_slice %809 {offsets = [0, 33], sizes = [8, 1], strides = [1, 1]} : vector<8x49xf32> to vector<8x1xf32>
    %1040 = vector.broadcast %1039 : vector<8x1xf32> to vector<8x256xf32>
    %1041 = arith.mulf %1038, %1040 : vector<8x256xf32>
    %1042 = arith.addf %1014, %1041 : vector<8x256xf32>
    %c237_i32_279 = arith.constant 237 : i32
    %1043 = tpu.dynamic_rotate %807 by %c237_i32_279 dim 1 : vector<8x256xf32>, i32 -> vector<8x256xf32>
    %1044 = vector.broadcast %334 : vector<1x256xf32> to vector<8x256xf32>
    %1045 = arith.mulf %1043, %1044 : vector<8x256xf32>
    %1046 = vector.extract_strided_slice %809 {offsets = [0, 34], sizes = [8, 1], strides = [1, 1]} : vector<8x49xf32> to vector<8x1xf32>
    %1047 = vector.broadcast %1046 : vector<8x1xf32> to vector<8x256xf32>
    %1048 = arith.mulf %1045, %1047 : vector<8x256xf32>
    %1049 = arith.addf %1021, %1048 : vector<8x256xf32>
    %c227_i32_280 = arith.constant 227 : i32
    %1050 = tpu.dynamic_rotate %807 by %c227_i32_280 dim 1 : vector<8x256xf32>, i32 -> vector<8x256xf32>
    %1051 = vector.broadcast %342 : vector<1x256xf32> to vector<8x256xf32>
    %1052 = arith.mulf %1050, %1051 : vector<8x256xf32>
    %1053 = vector.extract_strided_slice %809 {offsets = [0, 35], sizes = [8, 1], strides = [1, 1]} : vector<8x49xf32> to vector<8x1xf32>
    %1054 = vector.broadcast %1053 : vector<8x1xf32> to vector<8x256xf32>
    %1055 = arith.mulf %1052, %1054 : vector<8x256xf32>
    %1056 = arith.addf %1028, %1055 : vector<8x256xf32>
    %c226_i32_281 = arith.constant 226 : i32
    %1057 = tpu.dynamic_rotate %807 by %c226_i32_281 dim 1 : vector<8x256xf32>, i32 -> vector<8x256xf32>
    %1058 = vector.broadcast %350 : vector<1x256xf32> to vector<8x256xf32>
    %1059 = arith.mulf %1057, %1058 : vector<8x256xf32>
    %1060 = vector.extract_strided_slice %809 {offsets = [0, 36], sizes = [8, 1], strides = [1, 1]} : vector<8x49xf32> to vector<8x1xf32>
    %1061 = vector.broadcast %1060 : vector<8x1xf32> to vector<8x256xf32>
    %1062 = arith.mulf %1059, %1061 : vector<8x256xf32>
    %1063 = arith.addf %1035, %1062 : vector<8x256xf32>
    %c225_i32_282 = arith.constant 225 : i32
    %1064 = tpu.dynamic_rotate %807 by %c225_i32_282 dim 1 : vector<8x256xf32>, i32 -> vector<8x256xf32>
    %1065 = vector.broadcast %358 : vector<1x256xf32> to vector<8x256xf32>
    %1066 = arith.mulf %1064, %1065 : vector<8x256xf32>
    %1067 = vector.extract_strided_slice %809 {offsets = [0, 37], sizes = [8, 1], strides = [1, 1]} : vector<8x49xf32> to vector<8x1xf32>
    %1068 = vector.broadcast %1067 : vector<8x1xf32> to vector<8x256xf32>
    %1069 = arith.mulf %1066, %1068 : vector<8x256xf32>
    %1070 = arith.addf %1042, %1069 : vector<8x256xf32>
    %c224_i32_283 = arith.constant 224 : i32
    %1071 = tpu.dynamic_rotate %807 by %c224_i32_283 dim 1 : vector<8x256xf32>, i32 -> vector<8x256xf32>
    %1072 = vector.broadcast %363 : vector<1x256xf32> to vector<8x256xf32>
    %1073 = arith.mulf %1071, %1072 : vector<8x256xf32>
    %1074 = vector.extract_strided_slice %809 {offsets = [0, 38], sizes = [8, 1], strides = [1, 1]} : vector<8x49xf32> to vector<8x1xf32>
    %1075 = vector.broadcast %1074 : vector<8x1xf32> to vector<8x256xf32>
    %1076 = arith.mulf %1073, %1075 : vector<8x256xf32>
    %1077 = arith.addf %1049, %1076 : vector<8x256xf32>
    %c223_i32_284 = arith.constant 223 : i32
    %1078 = tpu.dynamic_rotate %807 by %c223_i32_284 dim 1 : vector<8x256xf32>, i32 -> vector<8x256xf32>
    %1079 = vector.broadcast %371 : vector<1x256xf32> to vector<8x256xf32>
    %1080 = arith.mulf %1078, %1079 : vector<8x256xf32>
    %1081 = vector.extract_strided_slice %809 {offsets = [0, 39], sizes = [8, 1], strides = [1, 1]} : vector<8x49xf32> to vector<8x1xf32>
    %1082 = vector.broadcast %1081 : vector<8x1xf32> to vector<8x256xf32>
    %1083 = arith.mulf %1080, %1082 : vector<8x256xf32>
    %1084 = arith.addf %1056, %1083 : vector<8x256xf32>
    %c222_i32_285 = arith.constant 222 : i32
    %1085 = tpu.dynamic_rotate %807 by %c222_i32_285 dim 1 : vector<8x256xf32>, i32 -> vector<8x256xf32>
    %1086 = vector.broadcast %379 : vector<1x256xf32> to vector<8x256xf32>
    %1087 = arith.mulf %1085, %1086 : vector<8x256xf32>
    %1088 = vector.extract_strided_slice %809 {offsets = [0, 40], sizes = [8, 1], strides = [1, 1]} : vector<8x49xf32> to vector<8x1xf32>
    %1089 = vector.broadcast %1088 : vector<8x1xf32> to vector<8x256xf32>
    %1090 = arith.mulf %1087, %1089 : vector<8x256xf32>
    %1091 = arith.addf %1063, %1090 : vector<8x256xf32>
    %c221_i32_286 = arith.constant 221 : i32
    %1092 = tpu.dynamic_rotate %807 by %c221_i32_286 dim 1 : vector<8x256xf32>, i32 -> vector<8x256xf32>
    %1093 = vector.broadcast %387 : vector<1x256xf32> to vector<8x256xf32>
    %1094 = arith.mulf %1092, %1093 : vector<8x256xf32>
    %1095 = vector.extract_strided_slice %809 {offsets = [0, 41], sizes = [8, 1], strides = [1, 1]} : vector<8x49xf32> to vector<8x1xf32>
    %1096 = vector.broadcast %1095 : vector<8x1xf32> to vector<8x256xf32>
    %1097 = arith.mulf %1094, %1096 : vector<8x256xf32>
    %1098 = arith.addf %1070, %1097 : vector<8x256xf32>
    %c211_i32_287 = arith.constant 211 : i32
    %1099 = tpu.dynamic_rotate %807 by %c211_i32_287 dim 1 : vector<8x256xf32>, i32 -> vector<8x256xf32>
    %1100 = vector.broadcast %395 : vector<1x256xf32> to vector<8x256xf32>
    %1101 = arith.mulf %1099, %1100 : vector<8x256xf32>
    %1102 = vector.extract_strided_slice %809 {offsets = [0, 42], sizes = [8, 1], strides = [1, 1]} : vector<8x49xf32> to vector<8x1xf32>
    %1103 = vector.broadcast %1102 : vector<8x1xf32> to vector<8x256xf32>
    %1104 = arith.mulf %1101, %1103 : vector<8x256xf32>
    %1105 = arith.addf %1077, %1104 : vector<8x256xf32>
    %c210_i32_288 = arith.constant 210 : i32
    %1106 = tpu.dynamic_rotate %807 by %c210_i32_288 dim 1 : vector<8x256xf32>, i32 -> vector<8x256xf32>
    %1107 = vector.broadcast %403 : vector<1x256xf32> to vector<8x256xf32>
    %1108 = arith.mulf %1106, %1107 : vector<8x256xf32>
    %1109 = vector.extract_strided_slice %809 {offsets = [0, 43], sizes = [8, 1], strides = [1, 1]} : vector<8x49xf32> to vector<8x1xf32>
    %1110 = vector.broadcast %1109 : vector<8x1xf32> to vector<8x256xf32>
    %1111 = arith.mulf %1108, %1110 : vector<8x256xf32>
    %1112 = arith.addf %1084, %1111 : vector<8x256xf32>
    %c209_i32_289 = arith.constant 209 : i32
    %1113 = tpu.dynamic_rotate %807 by %c209_i32_289 dim 1 : vector<8x256xf32>, i32 -> vector<8x256xf32>
    %1114 = vector.broadcast %411 : vector<1x256xf32> to vector<8x256xf32>
    %1115 = arith.mulf %1113, %1114 : vector<8x256xf32>
    %1116 = vector.extract_strided_slice %809 {offsets = [0, 44], sizes = [8, 1], strides = [1, 1]} : vector<8x49xf32> to vector<8x1xf32>
    %1117 = vector.broadcast %1116 : vector<8x1xf32> to vector<8x256xf32>
    %1118 = arith.mulf %1115, %1117 : vector<8x256xf32>
    %1119 = arith.addf %1091, %1118 : vector<8x256xf32>
    %c208_i32_290 = arith.constant 208 : i32
    %1120 = tpu.dynamic_rotate %807 by %c208_i32_290 dim 1 : vector<8x256xf32>, i32 -> vector<8x256xf32>
    %1121 = vector.broadcast %416 : vector<1x256xf32> to vector<8x256xf32>
    %1122 = arith.mulf %1120, %1121 : vector<8x256xf32>
    %1123 = vector.extract_strided_slice %809 {offsets = [0, 45], sizes = [8, 1], strides = [1, 1]} : vector<8x49xf32> to vector<8x1xf32>
    %1124 = vector.broadcast %1123 : vector<8x1xf32> to vector<8x256xf32>
    %1125 = arith.mulf %1122, %1124 : vector<8x256xf32>
    %1126 = arith.addf %1098, %1125 : vector<8x256xf32>
    %c207_i32_291 = arith.constant 207 : i32
    %1127 = tpu.dynamic_rotate %807 by %c207_i32_291 dim 1 : vector<8x256xf32>, i32 -> vector<8x256xf32>
    %1128 = vector.broadcast %424 : vector<1x256xf32> to vector<8x256xf32>
    %1129 = arith.mulf %1127, %1128 : vector<8x256xf32>
    %1130 = vector.extract_strided_slice %809 {offsets = [0, 46], sizes = [8, 1], strides = [1, 1]} : vector<8x49xf32> to vector<8x1xf32>
    %1131 = vector.broadcast %1130 : vector<8x1xf32> to vector<8x256xf32>
    %1132 = arith.mulf %1129, %1131 : vector<8x256xf32>
    %1133 = arith.addf %1105, %1132 : vector<8x256xf32>
    %c206_i32_292 = arith.constant 206 : i32
    %1134 = tpu.dynamic_rotate %807 by %c206_i32_292 dim 1 : vector<8x256xf32>, i32 -> vector<8x256xf32>
    %1135 = vector.broadcast %432 : vector<1x256xf32> to vector<8x256xf32>
    %1136 = arith.mulf %1134, %1135 : vector<8x256xf32>
    %1137 = vector.extract_strided_slice %809 {offsets = [0, 47], sizes = [8, 1], strides = [1, 1]} : vector<8x49xf32> to vector<8x1xf32>
    %1138 = vector.broadcast %1137 : vector<8x1xf32> to vector<8x256xf32>
    %1139 = arith.mulf %1136, %1138 : vector<8x256xf32>
    %1140 = arith.addf %1112, %1139 : vector<8x256xf32>
    %c205_i32_293 = arith.constant 205 : i32
    %1141 = tpu.dynamic_rotate %807 by %c205_i32_293 dim 1 : vector<8x256xf32>, i32 -> vector<8x256xf32>
    %1142 = vector.broadcast %440 : vector<1x256xf32> to vector<8x256xf32>
    %1143 = arith.mulf %1141, %1142 : vector<8x256xf32>
    %1144 = vector.extract_strided_slice %809 {offsets = [0, 48], sizes = [8, 1], strides = [1, 1]} : vector<8x49xf32> to vector<8x1xf32>
    %1145 = vector.broadcast %1144 : vector<8x1xf32> to vector<8x256xf32>
    %1146 = arith.mulf %1143, %1145 : vector<8x256xf32>
    %1147 = arith.addf %1119, %1146 : vector<8x256xf32>
    %1148 = arith.addf %1147, %1126 : vector<8x256xf32>
    %1149 = arith.addf %1133, %1140 : vector<8x256xf32>
    %1150 = arith.addf %1148, %1149 : vector<8x256xf32>
    %1151 = vector.broadcast %811 : vector<8x1xf32> to vector<8x256xf32>
    %1152 = arith.addf %1150, %1151 : vector<8x256xf32>
    %1153 = arith.addf %92, %1152 : vector<8x256xf32>
    %c0_294 = arith.constant 0 : index
    %c0_295 = arith.constant 0 : index
    %c0_296 = arith.constant 0 : index
    %1154 = vector.load %arg8[%c0_294, %c0_295, %c0_296] : memref<1x8x256xf32, #tpu.memory_space<vmem>>, vector<1x8x256xf32>
    %1155 = vector.shape_cast %1154 : vector<1x8x256xf32> to vector<8x256xf32>
    %1156 = vector.shape_cast %1153 : vector<8x256xf32> to vector<1x8x256xf32>
    tpu.vector_store %arg8[%c0_294, %c0_295, %c0_296], %1156 {strides = array<i32>} : memref<1x8x256xf32, #tpu.memory_space<vmem>>, vector<1x8x256xf32>,
    return
  }
  func.func @transform_0(%arg0: i32) -> (i32, i32, i32) {
    %c0_i32 = arith.constant 0 : i32
    %c0_i32_0 = arith.constant 0 : i32
    %c0_i32_1 = arith.constant 0 : i32
    return %arg0, %c0_i32, %c0_i32_0 : i32, i32, i32
  }
  func.func @transform_1(%arg0: i32) -> (i32, i32) {
    %c0_i32 = arith.constant 0 : i32
    %c0_i32_0 = arith.constant 0 : i32
    %c0_i32_1 = arith.constant 0 : i32
    return %c0_i32, %c0_i32_0 : i32, i32
  }
  func.func @transform_2(%arg0: i32) -> (i32, i32) {
    %c0_i32 = arith.constant 0 : i32
    %c0_i32_0 = arith.constant 0 : i32
    %c0_i32_1 = arith.constant 0 : i32
    return %c0_i32, %c0_i32_0 : i32, i32
  }
  func.func @transform_3(%arg0: i32) -> (i32, i32) {
    %c0_i32 = arith.constant 0 : i32
    %c0_i32_0 = arith.constant 0 : i32
    %c0_i32_1 = arith.constant 0 : i32
    return %c0_i32, %c0_i32_0 : i32, i32
  }
  func.func @transform_4(%arg0: i32) -> (i32, i32, i32) {
    %c0_i32 = arith.constant 0 : i32
    %c0_i32_0 = arith.constant 0 : i32
    %c0_i32_1 = arith.constant 0 : i32
    %c0_i32_2 = arith.constant 0 : i32
    return %c0_i32, %c0_i32_0, %c0_i32_1 : i32, i32, i32
  }
  func.func @transform_5(%arg0: i32) -> (i32, i32, i32) {
    %c0_i32 = arith.constant 0 : i32
    %c0_i32_0 = arith.constant 0 : i32
    %c0_i32_1 = arith.constant 0 : i32
    %c0_i32_2 = arith.constant 0 : i32
    return %c0_i32, %c0_i32_0, %c0_i32_1 : i32, i32, i32
  }
  func.func @transform_6(%arg0: i32) -> (i32, i32) {
    %c0_i32 = arith.constant 0 : i32
    %c0_i32_0 = arith.constant 0 : i32
    %c0_i32_1 = arith.constant 0 : i32
    return %c0_i32, %c0_i32_0 : i32, i32
  }
  func.func @transform_7(%arg0: i32) -> (i32, i32, i32) {
    %c0_i32 = arith.constant 0 : i32
    %c0_i32_0 = arith.constant 0 : i32
    %c0_i32_1 = arith.constant 0 : i32
    return %arg0, %c0_i32, %c0_i32_0 : i32, i32, i32
  }
}

</mosaic_0001>

<llo_original>
// kernel: tpu_custom_call.1
$region0: #{tpu_custom_call.1}
  #allocation0 [shape = 'u32[]', space=smem, size = 0x4, offset = 0x4, fixed_abs, tag = 'smem constant byte address 0x4 - core index']
  #allocation1 [shape = 'u32[144,128]{1,0:T(1,128)}', space=vmem, size = 0x12000, scoped, tag = 'internal scratch']
  %s0 = inlined_call_operand.vmem [shape: f32[2,8,256], index: 0, kind: input, shape index: {}]
  %s1 = inlined_call_operand.vmem [shape: bf16[8,72], index: 1, kind: input, shape index: {}]
  %s2 = inlined_call_operand.vmem [shape: bf16[48,8], index: 2, kind: input, shape index: {}]
  %s3 = inlined_call_operand.vmem [shape: bf16[8,24], index: 3, kind: input, shape index: {}]
  %s4 = inlined_call_operand.vmem [shape: f32[2,8,49], index: 4, kind: input, shape index: {}]
  %s5 = inlined_call_operand.vmem [shape: f32[4,8,1], index: 5, kind: input, shape index: {}]
  %s6 = inlined_call_operand.vmem [shape: f32[48,1], index: 6, kind: input, shape index: {}]
  %s7 = inlined_call_operand.hbm [shape: f32[2,8,256], index: 7, kind: output, shape index: {}]
  %s8 = sld [smem:[#allocation0]]
  $region61: #{tpu_custom_call.1} parent=0
    _
  %s10 = ssub.s32 1, %s8
  %s11 = scalar_select 0, %s10, %s8
  $region1: #{tpu_custom_call.1} parent=0
    #allocation2 [shape = 'u8[16384]{0}', space=vmem, size = 0x4000, scoped, tag = 'output window, operand 0']
    #allocation3 [shape = 's32[2]{0}', space=sflag, size = 0x8, scoped, tag = 'scoped memory for tpu_custom_call.1']
    %12 = vsyncpa [#allocation3], 0
    %s13 = scalar_lea.sflag [#allocation3], 1
    %14 = vsyncpa %s13, 0
    loop: start=0, step=1, limit=4
    $region2: #{tpu_custom_call.1} parent=1 // loop_pre_header
      _
    $region3: #{tpu_custom_call.1} parent=1 // loop_header
      %s16 = sphi 0, %s20
      %p17 = scmp.ge.s32.totalorder %s16, 4
      %s26 = sphi 0, %s28
      %s29 = sphi 0, %s26
      %s30 = sphi 0, %s29
      %s46 = sphi 0, %s30
      %s50 = sphi 0, %s50
      %s52 = sphi 0, %s50
      %s53 = sphi 0, %s52
      %s67 = sphi 0, %s53
      %s71 = sphi 0, %s71
      %s73 = sphi 0, %s71
      %s74 = sphi 0, %s73
      %s88 = sphi 0, %s74
      %s92 = sphi 0, %s92
      %s94 = sphi 0, %s92
      %s95 = sphi 0, %s94
      %s109 = sphi 0, %s95
      %s113 = sphi 0, %s113
      %s115 = sphi 0, %s113
      %s116 = sphi 0, %s115
      %s130 = sphi 0, %s116
      %s134 = sphi 0, %s134
      %s136 = sphi 0, %s134
      %s137 = sphi 0, %s136
      %s151 = sphi 0, %s137
      %s155 = sphi 0, %s155
      %s157 = sphi 0, %s155
      %s158 = sphi 0, %s157
      %s172 = sphi 0, %s158
      %s178 = sphi 0, %s180
      %s181 = sphi 0, %s178
      %s182 = sphi 0, %s181
      %s198 = sphi 0, %s182
    $region4: #{tpu_custom_call.1} parent=1 // loop_header_branch
      %19 = sbr.rel (%p17) target = $region8
    $region5: #{tpu_custom_call.1} parent=1 // loop_body
      %s21 = ssub.s32 %s16, 1
      %s22 = ssub.s32 %s16, 2
      %s23 = sadd.s32 %s16, 1
      %s24 = ssub.s32 %s16, %s23
      %p25 = scmp.eq.s32.totalorder %s24, 0
      %s27 = sadd.s32 %s26, 1
      %s28 = scalar_select %p25, %s26, %s27
      %p31 = pneg %p25
      %p32 = scmp.eq.s32.totalorder %s16, 1
      %p33 = por %p31, %p32
      %p34 = scmp.ne.s32.totalorder %s26, %s29
      %p35 = scmp.eq.s32.totalorder %s16, 0
      %p36 = por %p34, %p35
      %p37 = scmp.ne.s32.totalorder %s26, %s29
      %p38 = scmp.eq.s32.totalorder %s21, 1
      %p39 = por %p37, %p38
      %p40 = scmp.ne.s32.totalorder %s29, %s30
      %p41 = scmp.eq.s32.totalorder %s21, 0
      %p42 = por %p40, %p41
      %p43 = scmp.ne.s32.totalorder %s29, %s30
      %p44 = scmp.eq.s32.totalorder %s22, 1
      %p45 = por %p43, %p44
      %p47 = scmp.ne.s32.totalorder %s30, %s46
      %p48 = scmp.eq.s32.totalorder %s22, 0
      %p49 = por %p47, %p48
      %s51 = sadd.s32 %s50, 1
      %p54 = scmp.eq.s32.totalorder %s16, 1
      %p55 = scmp.ne.s32.totalorder %s50, %s52
      %p56 = scmp.eq.s32.totalorder %s16, 0
      %p57 = por %p55, %p56
      %p58 = scmp.ne.s32.totalorder %s50, %s52
      %p59 = scmp.eq.s32.totalorder %s21, 1
      %p60 = por %p58, %p59
      %p61 = scmp.ne.s32.totalorder %s52, %s53
      %p62 = scmp.eq.s32.totalorder %s21, 0
      %p63 = por %p61, %p62
      %p64 = scmp.ne.s32.totalorder %s52, %s53
      %p65 = scmp.eq.s32.totalorder %s22, 1
      %p66 = por %p64, %p65
      %p68 = scmp.ne.s32.totalorder %s53, %s67
      %p69 = scmp.eq.s32.totalorder %s22, 0
      %p70 = por %p68, %p69
      %s72 = sadd.s32 %s71, 1
      %p75 = scmp.eq.s32.totalorder %s16, 1
      %p76 = scmp.ne.s32.totalorder %s71, %s73
      %p77 = scmp.eq.s32.totalorder %s16, 0
      %p78 = por %p76, %p77
      %p79 = scmp.ne.s32.totalorder %s71, %s73
      %p80 = scmp.eq.s32.totalorder %s21, 1
      %p81 = por %p79, %p80
      %p82 = scmp.ne.s32.totalorder %s73, %s74
      %p83 = scmp.eq.s32.totalorder %s21, 0
      %p84 = por %p82, %p83
      %p85 = scmp.ne.s32.totalorder %s73, %s74
      %p86 = scmp.eq.s32.totalorder %s22, 1
      %p87 = por %p85, %p86
      %p89 = scmp.ne.s32.totalorder %s74, %s88
      %p90 = scmp.eq.s32.totalorder %s22, 0
      %p91 = por %p89, %p90
      %s93 = sadd.s32 %s92, 1
      %p96 = scmp.eq.s32.totalorder %s16, 1
      %p97 = scmp.ne.s32.totalorder %s92, %s94
      %p98 = scmp.eq.s32.totalorder %s16, 0
      %p99 = por %p97, %p98
      %p100 = scmp.ne.s32.totalorder %s92, %s94
      %p101 = scmp.eq.s32.totalorder %s21, 1
      %p102 = por %p100, %p101
      %p103 = scmp.ne.s32.totalorder %s94, %s95
      %p104 = scmp.eq.s32.totalorder %s21, 0
      %p105 = por %p103, %p104
      %p106 = scmp.ne.s32.totalorder %s94, %s95
      %p107 = scmp.eq.s32.totalorder %s22, 1
      %p108 = por %p106, %p107
      %p110 = scmp.ne.s32.totalorder %s95, %s109
      %p111 = scmp.eq.s32.totalorder %s22, 0
      %p112 = por %p110, %p111
      %s114 = sadd.s32 %s113, 1
      %p117 = scmp.eq.s32.totalorder %s16, 1
      %p118 = scmp.ne.s32.totalorder %s113, %s115
      %p119 = scmp.eq.s32.totalorder %s16, 0
      %p120 = por %p118, %p119
      %p121 = scmp.ne.s32.totalorder %s113, %s115
      %p122 = scmp.eq.s32.totalorder %s21, 1
      %p123 = por %p121, %p122
      %p124 = scmp.ne.s32.totalorder %s115, %s116
      %p125 = scmp.eq.s32.totalorder %s21, 0
      %p126 = por %p124, %p125
      %p127 = scmp.ne.s32.totalorder %s115, %s116
      %p128 = scmp.eq.s32.totalorder %s22, 1
      %p129 = por %p127, %p128
      %p131 = scmp.ne.s32.totalorder %s116, %s130
      %p132 = scmp.eq.s32.totalorder %s22, 0
      %p133 = por %p131, %p132
      %s135 = sadd.s32 %s134, 1
      %p138 = scmp.eq.s32.totalorder %s16, 1
      %p139 = scmp.ne.s32.totalorder %s134, %s136
      %p140 = scmp.eq.s32.totalorder %s16, 0
      %p141 = por %p139, %p140
      %p142 = scmp.ne.s32.totalorder %s134, %s136
      %p143 = scmp.eq.s32.totalorder %s21, 1
      %p144 = por %p142, %p143
      %p145 = scmp.ne.s32.totalorder %s136, %s137
      %p146 = scmp.eq.s32.totalorder %s21, 0
      %p147 = por %p145, %p146
      %p148 = scmp.ne.s32.totalorder %s136, %s137
      %p149 = scmp.eq.s32.totalorder %s22, 1
      %p150 = por %p148, %p149
      %p152 = scmp.ne.s32.totalorder %s137, %s151
      %p153 = scmp.eq.s32.totalorder %s22, 0
      %p154 = por %p152, %p153
      %s156 = sadd.s32 %s155, 1
      %p159 = scmp.eq.s32.totalorder %s16, 1
      %p160 = scmp.ne.s32.totalorder %s155, %s157
      %p161 = scmp.eq.s32.totalorder %s16, 0
      %p162 = por %p160, %p161
      %p163 = scmp.ne.s32.totalorder %s155, %s157
      %p164 = scmp.eq.s32.totalorder %s21, 1
      %p165 = por %p163, %p164
      %p166 = scmp.ne.s32.totalorder %s157, %s158
      %p167 = scmp.eq.s32.totalorder %s21, 0
      %p168 = por %p166, %p167
      %p169 = scmp.ne.s32.totalorder %s157, %s158
      %p170 = scmp.eq.s32.totalorder %s22, 1
      %p171 = por %p169, %p170
      %p173 = scmp.ne.s32.totalorder %s158, %s172
      %p174 = scmp.eq.s32.totalorder %s22, 0
      %p175 = por %p173, %p174
      %s176 = ssub.s32 %s16, %s23
      %p177 = scmp.eq.s32.totalorder %s176, 0
      %s179 = sadd.s32 %s178, 1
      %s180 = scalar_select %p177, %s178, %s179
      %p183 = pneg %p177
      %p184 = scmp.eq.s32.totalorder %s16, 1
      %p185 = por %p183, %p184
      %p186 = scmp.ne.s32.totalorder %s178, %s181
      %p187 = scmp.eq.s32.totalorder %s16, 0
      %p188 = por %p186, %p187
      %p189 = scmp.ne.s32.totalorder %s178, %s181
      %p190 = scmp.eq.s32.totalorder %s21, 1
      %p191 = por %p189, %p190
      %p192 = scmp.ne.s32.totalorder %s181, %s182
      %p193 = scmp.eq.s32.totalorder %s21, 0
      %p194 = por %p192, %p193
      %p195 = scmp.ne.s32.totalorder %s181, %s182
      %p196 = scmp.eq.s32.totalorder %s22, 1
      %p197 = por %p195, %p196
      %p199 = scmp.ne.s32.totalorder %s182, %s198
      %p200 = scmp.eq.s32.totalorder %s22, 0
      %p201 = por %p199, %p200
      %p202 = scmp.le.s32.totalorder 1, %s16
      %p203 = scmp.lt.s32.totalorder %s16, 3
      %p204 = pnand %p202, %p203
      %p205 = pneg %p204
      // Predicated region
      $region9: #{tpu_custom_call.1} parent=5 // pred_check
        _
      $region10: #{tpu_custom_call.1} parent=5 // pred_check_branch
        %207 = sbr.rel (%p204) target = $region12
      $region11: #{tpu_custom_call.1} parent=5 // pred_region
        %s208 = ssub.s32 %s16, 1
        // Predicated region
        $region13: #{tpu_custom_call.1} parent=11 // pred_check
          %p209 = pneg %p63
        $region14: #{tpu_custom_call.1} parent=11 // pred_check_branch
          %211 = sbr.rel (%p209) target = $region16
        $region15: #{tpu_custom_call.1} parent=11 // pred_region
          _
        $region16: #{tpu_custom_call.1} parent=11 // pred_fallthru
          _
        // Predicated region
        $region17: #{tpu_custom_call.1} parent=11 // pred_check
          %p212 = pneg %p84
        $region18: #{tpu_custom_call.1} parent=11 // pred_check_branch
          %214 = sbr.rel (%p212) target = $region20
        $region19: #{tpu_custom_call.1} parent=11 // pred_region
          _
        $region20: #{tpu_custom_call.1} parent=11 // pred_fallthru
          _
        // Predicated region
        $region21: #{tpu_custom_call.1} parent=11 // pred_check
          %p215 = pneg %p105
        $region22: #{tpu_custom_call.1} parent=11 // pred_check_branch
          %217 = sbr.rel (%p215) target = $region24
        $region23: #{tpu_custom_call.1} parent=11 // pred_region
          _
        $region24: #{tpu_custom_call.1} parent=11 // pred_fallthru
          _
        // Predicated region
        $region25: #{tpu_custom_call.1} parent=11 // pred_check
          %p218 = pneg %p126
        $region26: #{tpu_custom_call.1} parent=11 // pred_check_branch
          %220 = sbr.rel (%p218) target = $region28
        $region27: #{tpu_custom_call.1} parent=11 // pred_region
          _
        $region28: #{tpu_custom_call.1} parent=11 // pred_fallthru
          _
        // Predicated region
        $region29: #{tpu_custom_call.1} parent=11 // pred_check
          %p221 = pneg %p147
        $region30: #{tpu_custom_call.1} parent=11 // pred_check_branch
          %223 = sbr.rel (%p221) target = $region32
        $region31: #{tpu_custom_call.1} parent=11 // pred_region
          _
        $region32: #{tpu_custom_call.1} parent=11 // pred_fallthru
          _
        // Predicated region
        $region33: #{tpu_custom_call.1} parent=11 // pred_check
          %p224 = pneg %p168
        $region34: #{tpu_custom_call.1} parent=11 // pred_check_branch
          %226 = sbr.rel (%p224) target = $region36
        $region35: #{tpu_custom_call.1} parent=11 // pred_region
          _
        $region36: #{tpu_custom_call.1} parent=11 // pred_fallthru
          _
      $region12: #{tpu_custom_call.1} parent=5 // pred_fallthru
        _
      %p227 = scmp.lt.s32.totalorder %s16, 2
      // Predicated region
      $region37: #{tpu_custom_call.1} parent=5 // pred_check
        %p228 = pneg %p227
      $region38: #{tpu_custom_call.1} parent=5 // pred_check_branch
        %230 = sbr.rel (%p228) target = $region40
      $region39: #{tpu_custom_call.1} parent=5 // pred_region
        // Predicated region
        $region41: #{tpu_custom_call.1} parent=39 // pred_check
          %p231 = pneg %p36
        $region42: #{tpu_custom_call.1} parent=39 // pred_check_branch
          %233 = sbr.rel (%p231) target = $region44
        $region43: #{tpu_custom_call.1} parent=39 // pred_region
          %p234 = scmp.lt.s32.totalorder %s16, 1
          %s235 = scalar_select %p234, %s16, 1
          %s236 = smul.addr %s235, 2
          %s237 = smul.addr %s236, 8
          %s238 = scalar_lea.vmem %s0, %s237
        $region44: #{tpu_custom_call.1} parent=39 // pred_fallthru
          _
      $region40: #{tpu_custom_call.1} parent=5 // pred_fallthru
        _
      %p239 = scmp.le.s32.totalorder 1, %s16
      %p240 = scmp.lt.s32.totalorder %s16, 3
      %p241 = pnand %p239, %p240
      %p242 = pneg %p241
      // Predicated region
      $region45: #{tpu_custom_call.1} parent=5 // pred_check
        _
      $region46: #{tpu_custom_call.1} parent=5 // pred_check_branch
        %244 = sbr.rel (%p241) target = $region48
      $region47: #{tpu_custom_call.1} parent=5 // pred_region
        %s245 = ssub.s32 %s16, 1
        %p246 = scmp.lt.s32.totalorder %s21, 1
        %s247 = scalar_select %p246, %s21, 1
        %s248 = smul.addr %s247, 2
        %s249 = smul.addr %s248, 8
        %s250 = scalar_lea.vmem %s0, %s249
        %p251 = pneg %p42
        %p252 = pneg %p39
        %p253 = pneg %p63
        %p254 = pneg %p60
        %p255 = pneg %p84
        %p256 = pneg %p81
        %p257 = pneg %p105
        %p258 = pneg %p102
        %p259 = pneg %p126
        %p260 = pneg %p123
        %p261 = pneg %p147
        %p262 = pneg %p144
        %p263 = pneg %p168
        %p264 = pneg %p165
        %p265 = pneg %p194
        %p266 = pneg %p191
        %s267 = sand.u32 %s181, 1
        %s268 = scalar_lea.sflag [#allocation3], %s267
        %s269 = sand.u32 %s181, 1
        %s270 = smul.addr %s269, 16
        %s271 = scalar_lea.vmem [#allocation2], %s270
        %p272 = scmp.lt.s32.totalorder %s21, 1
        %s273 = scalar_select %p272, %s21, 1
        %s274 = smul.addr %s273, 2
        %s275 = smul.addr %s274, 8
        %s276 = scalar_lea.vmem %s0, %s275
        %v278 = vlaneseq
        %v279 = vand.u32 %v278, 127
        %v280 = vadd.s32 %v279, 128
        %v281 = vand.u32 %v279, 255
        %v282 = vand.u32 %v280, 255
        %v283 = vand.u32 %v281, 15
        %v284 = vand.u32 %v282, 15
        %v285 = vshra.s32 %v281, 4
        %v286 = vshra.s32 %v282, 4
        %v287 = vld [vmem:[%s276] sm:$0xff]
        %v288 = vld [vmem:[%s276 + $0x8] sm:$0xff]
        %vm289 = vcmp.ge.s32.totalorder %v285, 1
        %vm290 = vcmp.ge.s32.totalorder %v286, 1
        %vm291 = vcmp.ge.s32.totalorder %v283, 1
        %vm292 = vcmp.ge.s32.totalorder %v284, 1
        %vm293 = vmand %vm289, %vm291
        %vm294 = vmand %vm290, %vm292
        %v295 = vsel %vm293, 1.0, 0.0
        %v296 = vsel %vm294, 1.0, 0.0
        %v297 = vsel %vm289, 1.0, 0.0
        %v298 = vsel %vm290, 1.0, 0.0
        %vm299 = vcmp.lt.s32.totalorder %v283, 15
        %vm300 = vcmp.lt.s32.totalorder %v284, 15
        %vm301 = vmand %vm289, %vm299
        %vm302 = vmand %vm290, %vm300
        %v303 = vsel %vm301, 1.0, 0.0
        %v304 = vsel %vm302, 1.0, 0.0
        %v305 = vsel %vm291, 1.0, 0.0
        %v306 = vsel %vm292, 1.0, 0.0
        %v307 = vsel %vm299, 1.0, 0.0
        %v308 = vsel %vm300, 1.0, 0.0
        %vm309 = vcmp.lt.s32.totalorder %v285, 15
        %vm310 = vcmp.lt.s32.totalorder %v286, 15
        %vm311 = vmand %vm309, %vm291
        %vm312 = vmand %vm310, %vm292
        %v313 = vsel %vm311, 1.0, 0.0
        %v314 = vsel %vm312, 1.0, 0.0
        %v315 = vsel %vm309, 1.0, 0.0
        %v316 = vsel %vm310, 1.0, 0.0
        %vm317 = vmand %vm309, %vm299
        %vm318 = vmand %vm310, %vm300
        %v319 = vsel %vm317, 1.0, 0.0
        %v320 = vsel %vm318, 1.0, 0.0
        %321 = vrot.lane.b32.xlu0 %v287, 17
        %v322 = vpop.permute.xlu0 %321
        %323 = vrot.lane.b32.xlu0 %v288, 17
        %v324 = vpop.permute.xlu0 %323
        %vm325 = vcmp.lt.s32.totalorder %v279, 17
        %v326 = vsel %vm325, %v322, %v324
        %v327 = vsel %vm325, %v324, %v322
        %v328 = vmul.f32 %v327, %v295
        %v329 = vmul.f32 %v326, %v296
        %330 = vrot.lane.b32.xlu0 %v287, 16
        %v331 = vpop.permute.xlu0 %330
        %332 = vrot.lane.b32.xlu0 %v288, 16
        %v333 = vpop.permute.xlu0 %332
        %vm334 = vcmp.lt.s32.totalorder %v279, 16
        %v335 = vsel %vm334, %v331, %v333
        %v336 = vsel %vm334, %v333, %v331
        %v337 = vmul.f32 %v336, %v297
        %v338 = vmul.f32 %v335, %v298
        %339 = vrot.lane.b32.xlu0 %v287, 15
        %v340 = vpop.permute.xlu0 %339
        %341 = vrot.lane.b32.xlu0 %v288, 15
        %v342 = vpop.permute.xlu0 %341
        %vm343 = vcmp.lt.s32.totalorder %v279, 15
        %v344 = vsel %vm343, %v340, %v342
        %v345 = vsel %vm343, %v342, %v340
        %v346 = vmul.f32 %v345, %v303
        %v347 = vmul.f32 %v344, %v304
        %348 = vrot.lane.b32.xlu0 %v287, 1
        %v349 = vpop.permute.xlu0 %348
        %350 = vrot.lane.b32.xlu0 %v288, 1
        %v351 = vpop.permute.xlu0 %350
        %vm352 = vcmp.lt.s32.totalorder %v279, 1
        %v353 = vsel %vm352, %v349, %v351
        %v354 = vsel %vm352, %v351, %v349
        %v355 = vmul.f32 %v354, %v305
        %v356 = vmul.f32 %v353, %v306
        %357 = vrot.lane.b32.xlu0 %v287, 127
        %v358 = vpop.permute.xlu0 %357
        %359 = vrot.lane.b32.xlu0 %v288, 127
        %v360 = vpop.permute.xlu0 %359
        %vm361 = vcmp.lt.s32.totalorder %v279, 127
        %v362 = vsel %vm361, %v358, %v360
        %v363 = vsel %vm361, %v360, %v358
        %v364 = vmul.f32 %v362, %v307
        %v365 = vmul.f32 %v363, %v308
        %366 = vrot.lane.b32.xlu0 %v287, 113
        %v367 = vpop.permute.xlu0 %366
        %368 = vrot.lane.b32.xlu0 %v288, 113
        %v369 = vpop.permute.xlu0 %368
        %vm370 = vcmp.lt.s32.totalorder %v279, 113
        %v371 = vsel %vm370, %v367, %v369
        %v372 = vsel %vm370, %v369, %v367
        %v373 = vmul.f32 %v371, %v313
        %v374 = vmul.f32 %v372, %v314
        %375 = vrot.lane.b32.xlu0 %v287, 112
        %v376 = vpop.permute.xlu0 %375
        %377 = vrot.lane.b32.xlu0 %v288, 112
        %v378 = vpop.permute.xlu0 %377
        %vm379 = vcmp.lt.s32.totalorder %v279, 112
        %v380 = vsel %vm379, %v376, %v378
        %v381 = vsel %vm379, %v378, %v376
        %v382 = vmul.f32 %v380, %v315
        %v383 = vmul.f32 %v381, %v316
        %384 = vrot.lane.b32.xlu0 %v287, 111
        %v385 = vpop.permute.xlu0 %384
        %386 = vrot.lane.b32.xlu0 %v288, 111
        %v387 = vpop.permute.xlu0 %386
        %vm388 = vcmp.lt.s32.totalorder %v279, 111
        %v389 = vsel %vm388, %v385, %v387
        %v390 = vsel %vm388, %v387, %v385
        %v391 = vmul.f32 %v389, %v319
        %v392 = vmul.f32 %v390, %v320
        %v393 = vpack.c.bf16 %v337, %v328
        %v394 = vpack.c.bf16 %v338, %v329
        %v395 = vpack.c.bf16 %v355, %v346
        %v396 = vpack.c.bf16 %v356, %v347
        %v397 = vpack.c.bf16 %v364, %v287
        %v398 = vpack.c.bf16 %v365, %v288
        %v399 = vpack.c.bf16 %v382, %v373
        %v400 = vpack.c.bf16 %v383, %v374
        %v401 = vpack.c.bf16 %v391, %v391
        %v402 = vpack.c.bf16 %v392, %v392
        %v403 = vld [vmem:[%s1] sm:$0xf]
        %v404 = vld [vmem:[%s5] sm:$0xff]
        %406 = vset.pattern.permute.xlu0 0
        %407 = vperm.xlu0 %406, %v404
        %v408 = vpop.permute.xlu0 %407
        %vm410 = vcmask 588800
        %v412 = vsel %vm410, %v403, 0
        %vm414 = vcmask 1043456
        %v416 = vsel %vm414, %v401, 0
        %v419 = vsel %vm414, %v402, 0
        %421 = vmatprep.subr.bf16.mxu0 0
        %422 = vmatpush1.bf16.msra.mxu0 0
        %423 = vmatprep.subr.bf16.mxu0 0
        %424 = vmatpush1.bf16.msra.mxu0 0
        %425 = vmatprep.subr.bf16.mxu0 0
        %426 = vmatpush1.bf16.msra.mxu0 0
        %427 = vmatprep.subr.bf16.mxu0 %v419
        %428 = vmatpush1.bf16.msra.mxu0 %v416
        %429 = vmatprep.subr.bf16.mxu0 %v400
        %430 = vmatpush1.bf16.msra.mxu0 %v399
        %431 = vmatprep.subr.bf16.mxu0 %v398
        %432 = vmatpush1.bf16.msra.mxu0 %v397
        %433 = vmatprep.subr.bf16.mxu0 %v396
        %434 = vmatpush1.bf16.msra.mxu0 %v395
        %435 = vmatprep.subr.bf16.mxu0 %v394
        %436 = vmatpush1.bf16.msra.mxu0 %v393
        %437 = vmatprep.subr.bf16.mxu0 0
        %438 = vmatpush2.bf16.msra.mxu0 0
        %439 = vmatprep.subr.bf16.mxu0 0
        %440 = vmatpush2.bf16.msra.mxu0 0
        %441 = vmatprep.subr.bf16.mxu0 0
        %442 = vmatpush2.bf16.msra.mxu0 0
        %443 = vmatprep.subr.bf16.mxu0 0
        %444 = vmatpush2.bf16.msra.mxu0 0
        %445 = vmatprep.subr.bf16.mxu0 0
        %446 = vmatpush2.bf16.msra.mxu0 0
        %447 = vmatprep.subr.bf16.mxu0 0
        %448 = vmatpush2.bf16.msra.mxu0 0
        %449 = vmatprep.subr.bf16.mxu0 0
        %450 = vmatpush2.bf16.msra.mxu0 0
        %451 = vmatprep.subr.bf16.mxu0 0
        %452 = vmatpush2.bf16.msra.mxu0 0
        %453 = vmatprep.mubr.bf16.mxu0 0
        %454 = vmatmul.mubr.bf16.gmra.mxu0 %v412
        %v455 = vpop.f32.mrf.mxu0
        %v456 = vadd.f32 %v408, %v455
        %v457 = vpop.f32.mrf.mxu0
        %v458 = vadd.f32 %v408, %v457
        %v459 = vpop.f32.mrf.mxu0
        %v460 = vpop.f32.mrf.mxu0
        %461 = vdwg.mxu0
        %vm462 = vcmp.ge.s32.totalorder %v285, 3
        %vm463 = vcmp.ge.s32.totalorder %v286, 3
        %vm464 = vcmp.ge.s32.totalorder %v283, 3
        %vm465 = vcmp.ge.s32.totalorder %v284, 3
        %vm466 = vmand %vm462, %vm464
        %vm467 = vmand %vm463, %vm465
        %v468 = vsel %vm466, 1.0, 0.0
        %v469 = vsel %vm467, 1.0, 0.0
        %vm470 = vcmp.ge.s32.totalorder %v283, 2
        %vm471 = vcmp.ge.s32.totalorder %v284, 2
        %vm472 = vmand %vm462, %vm470
        %vm473 = vmand %vm463, %vm471
        %v474 = vsel %vm472, 1.0, 0.0
        %v475 = vsel %vm473, 1.0, 0.0
        %vm476 = vmand %vm462, %vm291
        %vm477 = vmand %vm463, %vm292
        %v478 = vsel %vm476, 1.0, 0.0
        %v479 = vsel %vm477, 1.0, 0.0
        %v480 = vsel %vm462, 1.0, 0.0
        %v481 = vsel %vm463, 1.0, 0.0
        %vm482 = vmand %vm462, %vm299
        %vm483 = vmand %vm463, %vm300
        %v484 = vsel %vm482, 1.0, 0.0
        %v485 = vsel %vm483, 1.0, 0.0
        %vm486 = vcmp.lt.s32.totalorder %v283, 14
        %vm487 = vcmp.lt.s32.totalorder %v284, 14
        %vm488 = vmand %vm462, %vm486
        %vm489 = vmand %vm463, %vm487
        %v490 = vsel %vm488, 1.0, 0.0
        %v491 = vsel %vm489, 1.0, 0.0
        %vm492 = vcmp.lt.s32.totalorder %v283, 13
        %vm493 = vcmp.lt.s32.totalorder %v284, 13
        %vm494 = vmand %vm462, %vm492
        %vm495 = vmand %vm463, %vm493
        %v496 = vsel %vm494, 1.0, 0.0
        %v497 = vsel %vm495, 1.0, 0.0
        %vm498 = vcmp.ge.s32.totalorder %v285, 2
        %vm499 = vcmp.ge.s32.totalorder %v286, 2
        %vm500 = vmand %vm498, %vm464
        %vm501 = vmand %vm499, %vm465
        %v502 = vsel %vm500, 1.0, 0.0
        %v503 = vsel %vm501, 1.0, 0.0
        %vm504 = vmand %vm498, %vm470
        %vm505 = vmand %vm499, %vm471
        %v506 = vsel %vm504, 1.0, 0.0
        %v507 = vsel %vm505, 1.0, 0.0
        %vm508 = vmand %vm498, %vm291
        %vm509 = vmand %vm499, %vm292
        %v510 = vsel %vm508, 1.0, 0.0
        %v511 = vsel %vm509, 1.0, 0.0
        %v512 = vsel %vm498, 1.0, 0.0
        %v513 = vsel %vm499, 1.0, 0.0
        %vm514 = vmand %vm498, %vm299
        %vm515 = vmand %vm499, %vm300
        %v516 = vsel %vm514, 1.0, 0.0
        %v517 = vsel %vm515, 1.0, 0.0
        %vm518 = vmand %vm498, %vm486
        %vm519 = vmand %vm499, %vm487
        %v520 = vsel %vm518, 1.0, 0.0
        %v521 = vsel %vm519, 1.0, 0.0
        %vm522 = vmand %vm498, %vm492
        %vm523 = vmand %vm499, %vm493
        %v524 = vsel %vm522, 1.0, 0.0
        %v525 = vsel %vm523, 1.0, 0.0
        %vm526 = vmand %vm289, %vm464
        %vm527 = vmand %vm290, %vm465
        %v528 = vsel %vm526, 1.0, 0.0
        %v529 = vsel %vm527, 1.0, 0.0
        %vm530 = vmand %vm289, %vm470
        %vm531 = vmand %vm290, %vm471
        %v532 = vsel %vm530, 1.0, 0.0
        %v533 = vsel %vm531, 1.0, 0.0
        %vm534 = vmand %vm289, %vm486
        %vm535 = vmand %vm290, %vm487
        %v536 = vsel %vm534, 1.0, 0.0
        %v537 = vsel %vm535, 1.0, 0.0
        %vm538 = vmand %vm289, %vm492
        %vm539 = vmand %vm290, %vm493
        %v540 = vsel %vm538, 1.0, 0.0
        %v541 = vsel %vm539, 1.0, 0.0
        %v542 = vsel %vm464, 1.0, 0.0
        %v543 = vsel %vm465, 1.0, 0.0
        %v544 = vsel %vm470, 1.0, 0.0
        %v545 = vsel %vm471, 1.0, 0.0
        %v546 = vsel %vm486, 1.0, 0.0
        %v547 = vsel %vm487, 1.0, 0.0
        %v548 = vsel %vm492, 1.0, 0.0
        %v549 = vsel %vm493, 1.0, 0.0
        %vm550 = vmand %vm309, %vm464
        %vm551 = vmand %vm310, %vm465
        %v552 = vsel %vm550, 1.0, 0.0
        %v553 = vsel %vm551, 1.0, 0.0
        %vm554 = vmand %vm309, %vm470
        %vm555 = vmand %vm310, %vm471
        %v556 = vsel %vm554, 1.0, 0.0
        %v557 = vsel %vm555, 1.0, 0.0
        %vm558 = vmand %vm309, %vm486
        %vm559 = vmand %vm310, %vm487
        %v560 = vsel %vm558, 1.0, 0.0
        %v561 = vsel %vm559, 1.0, 0.0
        %vm562 = vmand %vm309, %vm492
        %vm563 = vmand %vm310, %vm493
        %v564 = vsel %vm562, 1.0, 0.0
        %v565 = vsel %vm563, 1.0, 0.0
        %vm566 = vcmp.lt.s32.totalorder %v285, 14
        %vm567 = vcmp.lt.s32.totalorder %v286, 14
        %vm568 = vmand %vm566, %vm464
        %vm569 = vmand %vm567, %vm465
        %v570 = vsel %vm568, 1.0, 0.0
        %v571 = vsel %vm569, 1.0, 0.0
        %vm572 = vmand %vm566, %vm470
        %vm573 = vmand %vm567, %vm471
        %v574 = vsel %vm572, 1.0, 0.0
        %v575 = vsel %vm573, 1.0, 0.0
        %vm576 = vmand %vm566, %vm291
        %vm577 = vmand %vm567, %vm292
        %v578 = vsel %vm576, 1.0, 0.0
        %v579 = vsel %vm577, 1.0, 0.0
        %v580 = vsel %vm566, 1.0, 0.0
        %v581 = vsel %vm567, 1.0, 0.0
        %vm582 = vmand %vm566, %vm299
        %vm583 = vmand %vm567, %vm300
        %v584 = vsel %vm582, 1.0, 0.0
        %v585 = vsel %vm583, 1.0, 0.0
        %vm586 = vmand %vm566, %vm486
        %vm587 = vmand %vm567, %vm487
        %v588 = vsel %vm586, 1.0, 0.0
        %v589 = vsel %vm587, 1.0, 0.0
        %vm590 = vmand %vm566, %vm492
        %vm591 = vmand %vm567, %vm493
        %v592 = vsel %vm590, 1.0, 0.0
        %v593 = vsel %vm591, 1.0, 0.0
        %vm594 = vcmp.lt.s32.totalorder %v285, 13
        %vm595 = vcmp.lt.s32.totalorder %v286, 13
        %vm596 = vmand %vm594, %vm464
        %vm597 = vmand %vm595, %vm465
        %v598 = vsel %vm596, 1.0, 0.0
        %v599 = vsel %vm597, 1.0, 0.0
        %vm600 = vmand %vm594, %vm470
        %vm601 = vmand %vm595, %vm471
        %v602 = vsel %vm600, 1.0, 0.0
        %v603 = vsel %vm601, 1.0, 0.0
        %vm604 = vmand %vm594, %vm291
        %vm605 = vmand %vm595, %vm292
        %v606 = vsel %vm604, 1.0, 0.0
        %v607 = vsel %vm605, 1.0, 0.0
        %v608 = vsel %vm594, 1.0, 0.0
        %v609 = vsel %vm595, 1.0, 0.0
        %vm610 = vmand %vm594, %vm299
        %vm611 = vmand %vm595, %vm300
        %v612 = vsel %vm610, 1.0, 0.0
        %v613 = vsel %vm611, 1.0, 0.0
        %vm614 = vmand %vm594, %vm486
        %vm615 = vmand %vm595, %vm487
        %v616 = vsel %vm614, 1.0, 0.0
        %v617 = vsel %vm615, 1.0, 0.0
        %vm618 = vmand %vm594, %vm492
        %vm619 = vmand %vm595, %vm493
        %v620 = vsel %vm618, 1.0, 0.0
        %v621 = vsel %vm619, 1.0, 0.0
        %v622 = vld [vmem:[%s4] sm:$0xff]
        %s623 = scalar_lea.vmem %s5, 8
        %v624 = vld [vmem:[%s623] sm:$0xff]
        %625 = vrot.lane.b32.xlu0 %v456, 51
        %v626 = vpop.permute.xlu0 %625
        %627 = vrot.lane.b32.xlu0 %v458, 51
        %v628 = vpop.permute.xlu0 %627
        %vm629 = vcmp.lt.s32.totalorder %v279, 51
        %v630 = vsel %vm629, %v626, %v628
        %v631 = vsel %vm629, %v628, %v626
        %v632 = vmul.f32 %v631, %v468
        %v633 = vmul.f32 %v630, %v469
        %635 = vset.pattern.permute.xlu0 0
        %636 = vperm.xlu0 %635, %v622
        %v637 = vpop.permute.xlu0 %636
        %v639 = vmul.f32 %v632, %v637
        %v640 = vmul.f32 %v633, %v637
        %641 = vrot.lane.b32.xlu0 %v456, 50
        %v642 = vpop.permute.xlu0 %641
        %643 = vrot.lane.b32.xlu0 %v458, 50
        %v644 = vpop.permute.xlu0 %643
        %vm645 = vcmp.lt.s32.totalorder %v279, 50
        %v646 = vsel %vm645, %v642, %v644
        %v647 = vsel %vm645, %v644, %v642
        %v648 = vmul.f32 %v647, %v474
        %v649 = vmul.f32 %v646, %v475
        %650 = vset.pattern.permute.xlu0 1
        %651 = vperm.xlu0 %650, %v622
        %v652 = vpop.permute.xlu0 %651
        %v654 = vmul.f32 %v648, %v652
        %v655 = vmul.f32 %v649, %v652
        %656 = vrot.lane.b32.xlu0 %v456, 49
        %v657 = vpop.permute.xlu0 %656
        %658 = vrot.lane.b32.xlu0 %v458, 49
        %v659 = vpop.permute.xlu0 %658
        %vm660 = vcmp.lt.s32.totalorder %v279, 49
        %v661 = vsel %vm660, %v657, %v659
        %v662 = vsel %vm660, %v659, %v657
        %v663 = vmul.f32 %v662, %v478
        %v664 = vmul.f32 %v661, %v479
        %665 = vset.pattern.permute.xlu0 2
        %666 = vperm.xlu0 %665, %v622
        %v667 = vpop.permute.xlu0 %666
        %v669 = vmul.f32 %v663, %v667
        %v670 = vmul.f32 %v664, %v667
        %671 = vrot.lane.b32.xlu0 %v456, 48
        %v672 = vpop.permute.xlu0 %671
        %673 = vrot.lane.b32.xlu0 %v458, 48
        %v674 = vpop.permute.xlu0 %673
        %vm675 = vcmp.lt.s32.totalorder %v279, 48
        %v676 = vsel %vm675, %v672, %v674
        %v677 = vsel %vm675, %v674, %v672
        %v678 = vmul.f32 %v677, %v480
        %v679 = vmul.f32 %v676, %v481
        %680 = vset.pattern.permute.xlu0 3
        %681 = vperm.xlu0 %680, %v622
        %v682 = vpop.permute.xlu0 %681
        %v684 = vmul.f32 %v678, %v682
        %v685 = vmul.f32 %v679, %v682
        %686 = vrot.lane.b32.xlu0 %v456, 47
        %v687 = vpop.permute.xlu0 %686
        %688 = vrot.lane.b32.xlu0 %v458, 47
        %v689 = vpop.permute.xlu0 %688
        %vm690 = vcmp.lt.s32.totalorder %v279, 47
        %v691 = vsel %vm690, %v687, %v689
        %v692 = vsel %vm690, %v689, %v687
        %v693 = vmul.f32 %v692, %v484
        %v694 = vmul.f32 %v691, %v485
        %695 = vset.pattern.permute.xlu0 4
        %696 = vperm.xlu0 %695, %v622
        %v697 = vpop.permute.xlu0 %696
        %v699 = vmul.f32 %v693, %v697
        %v700 = vmul.f32 %v694, %v697
        %v701 = vadd.f32 %v639, %v699
        %v702 = vadd.f32 %v640, %v700
        %703 = vrot.lane.b32.xlu0 %v456, 46
        %v704 = vpop.permute.xlu0 %703
        %705 = vrot.lane.b32.xlu0 %v458, 46
        %v706 = vpop.permute.xlu0 %705
        %vm707 = vcmp.lt.s32.totalorder %v279, 46
        %v708 = vsel %vm707, %v704, %v706
        %v709 = vsel %vm707, %v706, %v704
        %v710 = vmul.f32 %v709, %v490
        %v711 = vmul.f32 %v708, %v491
        %712 = vset.pattern.permute.xlu0 5
        %713 = vperm.xlu0 %712, %v622
        %v714 = vpop.permute.xlu0 %713
        %v716 = vmul.f32 %v710, %v714
        %v717 = vmul.f32 %v711, %v714
        %v718 = vadd.f32 %v654, %v716
        %v719 = vadd.f32 %v655, %v717
        %720 = vrot.lane.b32.xlu0 %v456, 45
        %v721 = vpop.permute.xlu0 %720
        %722 = vrot.lane.b32.xlu0 %v458, 45
        %v723 = vpop.permute.xlu0 %722
        %vm724 = vcmp.lt.s32.totalorder %v279, 45
        %v725 = vsel %vm724, %v721, %v723
        %v726 = vsel %vm724, %v723, %v721
        %v727 = vmul.f32 %v726, %v496
        %v728 = vmul.f32 %v725, %v497
        %729 = vset.pattern.permute.xlu0 6
        %730 = vperm.xlu0 %729, %v622
        %v731 = vpop.permute.xlu0 %730
        %v733 = vmul.f32 %v727, %v731
        %v734 = vmul.f32 %v728, %v731
        %v735 = vadd.f32 %v669, %v733
        %v736 = vadd.f32 %v670, %v734
        %737 = vrot.lane.b32.xlu0 %v456, 35
        %v738 = vpop.permute.xlu0 %737
        %739 = vrot.lane.b32.xlu0 %v458, 35
        %v740 = vpop.permute.xlu0 %739
        %vm741 = vcmp.lt.s32.totalorder %v279, 35
        %v742 = vsel %vm741, %v738, %v740
        %v743 = vsel %vm741, %v740, %v738
        %v744 = vmul.f32 %v743, %v502
        %v745 = vmul.f32 %v742, %v503
        %746 = vset.pattern.permute.xlu0 7
        %747 = vperm.xlu0 %746, %v622
        %v748 = vpop.permute.xlu0 %747
        %v750 = vmul.f32 %v744, %v748
        %v751 = vmul.f32 %v745, %v748
        %v752 = vadd.f32 %v684, %v750
        %v753 = vadd.f32 %v685, %v751
        %754 = vrot.lane.b32.xlu0 %v456, 34
        %v755 = vpop.permute.xlu0 %754
        %756 = vrot.lane.b32.xlu0 %v458, 34
        %v757 = vpop.permute.xlu0 %756
        %vm758 = vcmp.lt.s32.totalorder %v279, 34
        %v759 = vsel %vm758, %v755, %v757
        %v760 = vsel %vm758, %v757, %v755
        %v761 = vmul.f32 %v760, %v506
        %v762 = vmul.f32 %v759, %v507
        %763 = vset.pattern.permute.xlu0 8
        %764 = vperm.xlu0 %763, %v622
        %v765 = vpop.permute.xlu0 %764
        %v767 = vmul.f32 %v761, %v765
        %v768 = vmul.f32 %v762, %v765
        %v769 = vadd.f32 %v701, %v767
        %v770 = vadd.f32 %v702, %v768
        %771 = vrot.lane.b32.xlu0 %v456, 33
        %v772 = vpop.permute.xlu0 %771
        %773 = vrot.lane.b32.xlu0 %v458, 33
        %v774 = vpop.permute.xlu0 %773
        %vm775 = vcmp.lt.s32.totalorder %v279, 33
        %v776 = vsel %vm775, %v772, %v774
        %v777 = vsel %vm775, %v774, %v772
        %v778 = vmul.f32 %v777, %v510
        %v779 = vmul.f32 %v776, %v511
        %780 = vset.pattern.permute.xlu0 9
        %781 = vperm.xlu0 %780, %v622
        %v782 = vpop.permute.xlu0 %781
        %v784 = vmul.f32 %v778, %v782
        %v785 = vmul.f32 %v779, %v782
        %v786 = vadd.f32 %v718, %v784
        %v787 = vadd.f32 %v719, %v785
        %788 = vrot.lane.b32.xlu0 %v456, 32
        %v789 = vpop.permute.xlu0 %788
        %790 = vrot.lane.b32.xlu0 %v458, 32
        %v791 = vpop.permute.xlu0 %790
        %vm792 = vcmp.lt.s32.totalorder %v279, 32
        %v793 = vsel %vm792, %v789, %v791
        %v794 = vsel %vm792, %v791, %v789
        %v795 = vmul.f32 %v794, %v512
        %v796 = vmul.f32 %v793, %v513
        %797 = vset.pattern.permute.xlu0 10
        %798 = vperm.xlu0 %797, %v622
        %v799 = vpop.permute.xlu0 %798
        %v801 = vmul.f32 %v795, %v799
        %v802 = vmul.f32 %v796, %v799
        %v803 = vadd.f32 %v735, %v801
        %v804 = vadd.f32 %v736, %v802
        %805 = vrot.lane.b32.xlu0 %v456, 31
        %v806 = vpop.permute.xlu0 %805
        %807 = vrot.lane.b32.xlu0 %v458, 31
        %v808 = vpop.permute.xlu0 %807
        %vm809 = vcmp.lt.s32.totalorder %v279, 31
        %v810 = vsel %vm809, %v806, %v808
        %v811 = vsel %vm809, %v808, %v806
        %v812 = vmul.f32 %v811, %v516
        %v813 = vmul.f32 %v810, %v517
        %814 = vset.pattern.permute.xlu0 11
        %815 = vperm.xlu0 %814, %v622
        %v816 = vpop.permute.xlu0 %815
        %v818 = vmul.f32 %v812, %v816
        %v819 = vmul.f32 %v813, %v816
        %v820 = vadd.f32 %v752, %v818
        %v821 = vadd.f32 %v753, %v819
        %822 = vrot.lane.b32.xlu0 %v456, 30
        %v823 = vpop.permute.xlu0 %822
        %824 = vrot.lane.b32.xlu0 %v458, 30
        %v825 = vpop.permute.xlu0 %824
        %vm826 = vcmp.lt.s32.totalorder %v279, 30
        %v827 = vsel %vm826, %v823, %v825
        %v828 = vsel %vm826, %v825, %v823
        %v829 = vmul.f32 %v828, %v520
        %v830 = vmul.f32 %v827, %v521
        %831 = vset.pattern.permute.xlu0 12
        %832 = vperm.xlu0 %831, %v622
        %v833 = vpop.permute.xlu0 %832
        %v835 = vmul.f32 %v829, %v833
        %v836 = vmul.f32 %v830, %v833
        %v837 = vadd.f32 %v769, %v835
        %v838 = vadd.f32 %v770, %v836
        %839 = vrot.lane.b32.xlu0 %v456, 29
        %v840 = vpop.permute.xlu0 %839
        %841 = vrot.lane.b32.xlu0 %v458, 29
        %v842 = vpop.permute.xlu0 %841
        %vm843 = vcmp.lt.s32.totalorder %v279, 29
        %v844 = vsel %vm843, %v840, %v842
        %v845 = vsel %vm843, %v842, %v840
        %v846 = vmul.f32 %v845, %v524
        %v847 = vmul.f32 %v844, %v525
        %848 = vset.pattern.permute.xlu0 13
        %849 = vperm.xlu0 %848, %v622
        %v850 = vpop.permute.xlu0 %849
        %v852 = vmul.f32 %v846, %v850
        %v853 = vmul.f32 %v847, %v850
        %v854 = vadd.f32 %v786, %v852
        %v855 = vadd.f32 %v787, %v853
        %856 = vrot.lane.b32.xlu0 %v456, 19
        %v857 = vpop.permute.xlu0 %856
        %858 = vrot.lane.b32.xlu0 %v458, 19
        %v859 = vpop.permute.xlu0 %858
        %vm860 = vcmp.lt.s32.totalorder %v279, 19
        %v861 = vsel %vm860, %v857, %v859
        %v862 = vsel %vm860, %v859, %v857
        %v863 = vmul.f32 %v862, %v528
        %v864 = vmul.f32 %v861, %v529
        %865 = vset.pattern.permute.xlu0 14
        %866 = vperm.xlu0 %865, %v622
        %v867 = vpop.permute.xlu0 %866
        %v869 = vmul.f32 %v863, %v867
        %v870 = vmul.f32 %v864, %v867
        %v871 = vadd.f32 %v803, %v869
        %v872 = vadd.f32 %v804, %v870
        %873 = vrot.lane.b32.xlu0 %v456, 18
        %v874 = vpop.permute.xlu0 %873
        %875 = vrot.lane.b32.xlu0 %v458, 18
        %v876 = vpop.permute.xlu0 %875
        %vm877 = vcmp.lt.s32.totalorder %v279, 18
        %v878 = vsel %vm877, %v874, %v876
        %v879 = vsel %vm877, %v876, %v874
        %v880 = vmul.f32 %v879, %v532
        %v881 = vmul.f32 %v878, %v533
        %882 = vset.pattern.permute.xlu0 15
        %883 = vperm.xlu0 %882, %v622
        %v884 = vpop.permute.xlu0 %883
        %v886 = vmul.f32 %v880, %v884
        %v887 = vmul.f32 %v881, %v884
        %v888 = vadd.f32 %v820, %v886
        %v889 = vadd.f32 %v821, %v887
        %890 = vrot.lane.b32.xlu0 %v456, 17
        %v891 = vpop.permute.xlu0 %890
        %892 = vrot.lane.b32.xlu0 %v458, 17
        %v893 = vpop.permute.xlu0 %892
        %v894 = vsel %vm325, %v891, %v893
        %v895 = vsel %vm325, %v893, %v891
        %v896 = vmul.f32 %v895, %v295
        %v897 = vmul.f32 %v894, %v296
        %898 = vset.pattern.permute.xlu0 16
        %899 = vperm.xlu0 %898, %v622
        %v900 = vpop.permute.xlu0 %899
        %v902 = vmul.f32 %v896, %v900
        %v903 = vmul.f32 %v897, %v900
        %v904 = vadd.f32 %v837, %v902
        %v905 = vadd.f32 %v838, %v903
        %906 = vrot.lane.b32.xlu0 %v456, 16
        %v907 = vpop.permute.xlu0 %906
        %908 = vrot.lane.b32.xlu0 %v458, 16
        %v909 = vpop.permute.xlu0 %908
        %v910 = vsel %vm334, %v907, %v909
        %v911 = vsel %vm334, %v909, %v907
        %v912 = vmul.f32 %v911, %v297
        %v913 = vmul.f32 %v910, %v298
        %914 = vset.pattern.permute.xlu0 17
        %915 = vperm.xlu0 %914, %v622
        %v916 = vpop.permute.xlu0 %915
        %v918 = vmul.f32 %v912, %v916
        %v919 = vmul.f32 %v913, %v916
        %v920 = vadd.f32 %v854, %v918
        %v921 = vadd.f32 %v855, %v919
        %922 = vrot.lane.b32.xlu0 %v456, 15
        %v923 = vpop.permute.xlu0 %922
        %924 = vrot.lane.b32.xlu0 %v458, 15
        %v925 = vpop.permute.xlu0 %924
        %v926 = vsel %vm343, %v923, %v925
        %v927 = vsel %vm343, %v925, %v923
        %v928 = vmul.f32 %v927, %v303
        %v929 = vmul.f32 %v926, %v304
        %930 = vset.pattern.permute.xlu0 18
        %931 = vperm.xlu0 %930, %v622
        %v932 = vpop.permute.xlu0 %931
        %v934 = vmul.f32 %v928, %v932
        %v935 = vmul.f32 %v929, %v932
        %v936 = vadd.f32 %v871, %v934
        %v937 = vadd.f32 %v872, %v935
        %938 = vrot.lane.b32.xlu0 %v456, 14
        %v939 = vpop.permute.xlu0 %938
        %940 = vrot.lane.b32.xlu0 %v458, 14
        %v941 = vpop.permute.xlu0 %940
        %vm942 = vcmp.lt.s32.totalorder %v279, 14
        %v943 = vsel %vm942, %v939, %v941
        %v944 = vsel %vm942, %v941, %v939
        %v945 = vmul.f32 %v944, %v536
        %v946 = vmul.f32 %v943, %v537
        %947 = vset.pattern.permute.xlu0 19
        %948 = vperm.xlu0 %947, %v622
        %v949 = vpop.permute.xlu0 %948
        %v951 = vmul.f32 %v945, %v949
        %v952 = vmul.f32 %v946, %v949
        %v953 = vadd.f32 %v888, %v951
        %v954 = vadd.f32 %v889, %v952
        %955 = vrot.lane.b32.xlu0 %v456, 13
        %v956 = vpop.permute.xlu0 %955
        %957 = vrot.lane.b32.xlu0 %v458, 13
        %v958 = vpop.permute.xlu0 %957
        %vm959 = vcmp.lt.s32.totalorder %v279, 13
        %v960 = vsel %vm959, %v956, %v958
        %v961 = vsel %vm959, %v958, %v956
        %v962 = vmul.f32 %v961, %v540
        %v963 = vmul.f32 %v960, %v541
        %964 = vset.pattern.permute.xlu0 20
        %965 = vperm.xlu0 %964, %v622
        %v966 = vpop.permute.xlu0 %965
        %v968 = vmul.f32 %v962, %v966
        %v969 = vmul.f32 %v963, %v966
        %v970 = vadd.f32 %v904, %v968
        %v971 = vadd.f32 %v905, %v969
        %972 = vrot.lane.b32.xlu0 %v456, 3
        %v973 = vpop.permute.xlu0 %972
        %974 = vrot.lane.b32.xlu0 %v458, 3
        %v975 = vpop.permute.xlu0 %974
        %vm976 = vcmp.lt.s32.totalorder %v279, 3
        %v977 = vsel %vm976, %v973, %v975
        %v978 = vsel %vm976, %v975, %v973
        %v979 = vmul.f32 %v978, %v542
        %v980 = vmul.f32 %v977, %v543
        %981 = vset.pattern.permute.xlu0 21
        %982 = vperm.xlu0 %981, %v622
        %v983 = vpop.permute.xlu0 %982
        %v985 = vmul.f32 %v979, %v983
        %v986 = vmul.f32 %v980, %v983
        %v987 = vadd.f32 %v920, %v985
        %v988 = vadd.f32 %v921, %v986
        %989 = vrot.lane.b32.xlu0 %v456, 2
        %v990 = vpop.permute.xlu0 %989
        %991 = vrot.lane.b32.xlu0 %v458, 2
        %v992 = vpop.permute.xlu0 %991
        %vm993 = vcmp.lt.s32.totalorder %v279, 2
        %v994 = vsel %vm993, %v990, %v992
        %v995 = vsel %vm993, %v992, %v990
        %v996 = vmul.f32 %v995, %v544
        %v997 = vmul.f32 %v994, %v545
        %998 = vset.pattern.permute.xlu0 22
        %999 = vperm.xlu0 %998, %v622
        %v1000 = vpop.permute.xlu0 %999
        %v1002 = vmul.f32 %v996, %v1000
        %v1003 = vmul.f32 %v997, %v1000
        %v1004 = vadd.f32 %v936, %v1002
        %v1005 = vadd.f32 %v937, %v1003
        %1006 = vrot.lane.b32.xlu0 %v456, 1
        %v1007 = vpop.permute.xlu0 %1006
        %1008 = vrot.lane.b32.xlu0 %v458, 1
        %v1009 = vpop.permute.xlu0 %1008
        %v1010 = vsel %vm352, %v1007, %v1009
        %v1011 = vsel %vm352, %v1009, %v1007
        %v1012 = vmul.f32 %v1011, %v305
        %v1013 = vmul.f32 %v1010, %v306
        %1014 = vset.pattern.permute.xlu0 23
        %1015 = vperm.xlu0 %1014, %v622
        %v1016 = vpop.permute.xlu0 %1015
        %v1018 = vmul.f32 %v1012, %v1016
        %v1019 = vmul.f32 %v1013, %v1016
        %v1020 = vadd.f32 %v953, %v1018
        %v1021 = vadd.f32 %v954, %v1019
        %1022 = vset.pattern.permute.xlu0 24
        %1023 = vperm.xlu0 %1022, %v622
        %v1024 = vpop.permute.xlu0 %1023
        %v1026 = vmul.f32 %v456, %v1024
        %v1027 = vmul.f32 %v458, %v1024
        %v1028 = vadd.f32 %v970, %v1026
        %v1029 = vadd.f32 %v971, %v1027
        %1030 = vrot.lane.b32.xlu0 %v456, 127
        %v1031 = vpop.permute.xlu0 %1030
        %1032 = vrot.lane.b32.xlu0 %v458, 127
        %v1033 = vpop.permute.xlu0 %1032
        %v1034 = vsel %vm361, %v1031, %v1033
        %v1035 = vsel %vm361, %v1033, %v1031
        %v1036 = vmul.f32 %v1034, %v307
        %v1037 = vmul.f32 %v1035, %v308
        %1038 = vset.pattern.permute.xlu0 25
        %1039 = vperm.xlu0 %1038, %v622
        %v1040 = vpop.permute.xlu0 %1039
        %v1042 = vmul.f32 %v1036, %v1040
        %v1043 = vmul.f32 %v1037, %v1040
        %v1044 = vadd.f32 %v987, %v1042
        %v1045 = vadd.f32 %v988, %v1043
        %1046 = vrot.lane.b32.xlu0 %v456, 126
        %v1047 = vpop.permute.xlu0 %1046
        %1048 = vrot.lane.b32.xlu0 %v458, 126
        %v1049 = vpop.permute.xlu0 %1048
        %vm1050 = vcmp.lt.s32.totalorder %v279, 126
        %v1051 = vsel %vm1050, %v1047, %v1049
        %v1052 = vsel %vm1050, %v1049, %v1047
        %v1053 = vmul.f32 %v1051, %v546
        %v1054 = vmul.f32 %v1052, %v547
        %1055 = vset.pattern.permute.xlu0 26
        %1056 = vperm.xlu0 %1055, %v622
        %v1057 = vpop.permute.xlu0 %1056
        %v1059 = vmul.f32 %v1053, %v1057
        %v1060 = vmul.f32 %v1054, %v1057
        %v1061 = vadd.f32 %v1004, %v1059
        %v1062 = vadd.f32 %v1005, %v1060
        %1063 = vrot.lane.b32.xlu0 %v456, 125
        %v1064 = vpop.permute.xlu0 %1063
        %1065 = vrot.lane.b32.xlu0 %v458, 125
        %v1066 = vpop.permute.xlu0 %1065
        %vm1067 = vcmp.lt.s32.totalorder %v279, 125
        %v1068 = vsel %vm1067, %v1064, %v1066
        %v1069 = vsel %vm1067, %v1066, %v1064
        %v1070 = vmul.f32 %v1068, %v548
        %v1071 = vmul.f32 %v1069, %v549
        %1072 = vset.pattern.permute.xlu0 27
        %1073 = vperm.xlu0 %1072, %v622
        %v1074 = vpop.permute.xlu0 %1073
        %v1076 = vmul.f32 %v1070, %v1074
        %v1077 = vmul.f32 %v1071, %v1074
        %v1078 = vadd.f32 %v1020, %v1076
        %v1079 = vadd.f32 %v1021, %v1077
        %1080 = vrot.lane.b32.xlu0 %v456, 115
        %v1081 = vpop.permute.xlu0 %1080
        %1082 = vrot.lane.b32.xlu0 %v458, 115
        %v1083 = vpop.permute.xlu0 %1082
        %vm1084 = vcmp.lt.s32.totalorder %v279, 115
        %v1085 = vsel %vm1084, %v1081, %v1083
        %v1086 = vsel %vm1084, %v1083, %v1081
        %v1087 = vmul.f32 %v1085, %v552
        %v1088 = vmul.f32 %v1086, %v553
        %1089 = vset.pattern.permute.xlu0 28
        %1090 = vperm.xlu0 %1089, %v622
        %v1091 = vpop.permute.xlu0 %1090
        %v1093 = vmul.f32 %v1087, %v1091
        %v1094 = vmul.f32 %v1088, %v1091
        %v1095 = vadd.f32 %v1028, %v1093
        %v1096 = vadd.f32 %v1029, %v1094
        %1097 = vrot.lane.b32.xlu0 %v456, 114
        %v1098 = vpop.permute.xlu0 %1097
        %1099 = vrot.lane.b32.xlu0 %v458, 114
        %v1100 = vpop.permute.xlu0 %1099
        %vm1101 = vcmp.lt.s32.totalorder %v279, 114
        %v1102 = vsel %vm1101, %v1098, %v1100
        %v1103 = vsel %vm1101, %v1100, %v1098
        %v1104 = vmul.f32 %v1102, %v556
        %v1105 = vmul.f32 %v1103, %v557
        %1106 = vset.pattern.permute.xlu0 29
        %1107 = vperm.xlu0 %1106, %v622
        %v1108 = vpop.permute.xlu0 %1107
        %v1110 = vmul.f32 %v1104, %v1108
        %v1111 = vmul.f32 %v1105, %v1108
        %v1112 = vadd.f32 %v1044, %v1110
        %v1113 = vadd.f32 %v1045, %v1111
        %1114 = vrot.lane.b32.xlu0 %v456, 113
        %v1115 = vpop.permute.xlu0 %1114
        %1116 = vrot.lane.b32.xlu0 %v458, 113
        %v1117 = vpop.permute.xlu0 %1116
        %v1118 = vsel %vm370, %v1115, %v1117
        %v1119 = vsel %vm370, %v1117, %v1115
        %v1120 = vmul.f32 %v1118, %v313
        %v1121 = vmul.f32 %v1119, %v314
        %1122 = vset.pattern.permute.xlu0 30
        %1123 = vperm.xlu0 %1122, %v622
        %v1124 = vpop.permute.xlu0 %1123
        %v1126 = vmul.f32 %v1120, %v1124
        %v1127 = vmul.f32 %v1121, %v1124
        %v1128 = vadd.f32 %v1061, %v1126
        %v1129 = vadd.f32 %v1062, %v1127
        %1130 = vrot.lane.b32.xlu0 %v456, 112
        %v1131 = vpop.permute.xlu0 %1130
        %1132 = vrot.lane.b32.xlu0 %v458, 112
        %v1133 = vpop.permute.xlu0 %1132
        %v1134 = vsel %vm379, %v1131, %v1133
        %v1135 = vsel %vm379, %v1133, %v1131
        %v1136 = vmul.f32 %v1134, %v315
        %v1137 = vmul.f32 %v1135, %v316
        %1138 = vset.pattern.permute.xlu0 31
        %1139 = vperm.xlu0 %1138, %v622
        %v1140 = vpop.permute.xlu0 %1139
        %v1142 = vmul.f32 %v1136, %v1140
        %v1143 = vmul.f32 %v1137, %v1140
        %v1144 = vadd.f32 %v1078, %v1142
        %v1145 = vadd.f32 %v1079, %v1143
        %1146 = vrot.lane.b32.xlu0 %v456, 111
        %v1147 = vpop.permute.xlu0 %1146
        %1148 = vrot.lane.b32.xlu0 %v458, 111
        %v1149 = vpop.permute.xlu0 %1148
        %v1150 = vsel %vm388, %v1147, %v1149
        %v1151 = vsel %vm388, %v1149, %v1147
        %v1152 = vmul.f32 %v1150, %v319
        %v1153 = vmul.f32 %v1151, %v320
        %1154 = vset.pattern.permute.xlu0 32
        %1155 = vperm.xlu0 %1154, %v622
        %v1156 = vpop.permute.xlu0 %1155
        %v1158 = vmul.f32 %v1152, %v1156
        %v1159 = vmul.f32 %v1153, %v1156
        %v1160 = vadd.f32 %v1095, %v1158
        %v1161 = vadd.f32 %v1096, %v1159
        %1162 = vrot.lane.b32.xlu0 %v456, 110
        %v1163 = vpop.permute.xlu0 %1162
        %1164 = vrot.lane.b32.xlu0 %v458, 110
        %v1165 = vpop.permute.xlu0 %1164
        %vm1166 = vcmp.lt.s32.totalorder %v279, 110
        %v1167 = vsel %vm1166, %v1163, %v1165
        %v1168 = vsel %vm1166, %v1165, %v1163
        %v1169 = vmul.f32 %v1167, %v560
        %v1170 = vmul.f32 %v1168, %v561
        %1171 = vset.pattern.permute.xlu0 33
        %1172 = vperm.xlu0 %1171, %v622
        %v1173 = vpop.permute.xlu0 %1172
        %v1175 = vmul.f32 %v1169, %v1173
        %v1176 = vmul.f32 %v1170, %v1173
        %v1177 = vadd.f32 %v1112, %v1175
        %v1178 = vadd.f32 %v1113, %v1176
        %1179 = vrot.lane.b32.xlu0 %v456, 109
        %v1180 = vpop.permute.xlu0 %1179
        %1181 = vrot.lane.b32.xlu0 %v458, 109
        %v1182 = vpop.permute.xlu0 %1181
        %vm1183 = vcmp.lt.s32.totalorder %v279, 109
        %v1184 = vsel %vm1183, %v1180, %v1182
        %v1185 = vsel %vm1183, %v1182, %v1180
        %v1186 = vmul.f32 %v1184, %v564
        %v1187 = vmul.f32 %v1185, %v565
        %1188 = vset.pattern.permute.xlu0 34
        %1189 = vperm.xlu0 %1188, %v622
        %v1190 = vpop.permute.xlu0 %1189
        %v1192 = vmul.f32 %v1186, %v1190
        %v1193 = vmul.f32 %v1187, %v1190
        %v1194 = vadd.f32 %v1128, %v1192
        %v1195 = vadd.f32 %v1129, %v1193
        %1196 = vrot.lane.b32.xlu0 %v456, 99
        %v1197 = vpop.permute.xlu0 %1196
        %1198 = vrot.lane.b32.xlu0 %v458, 99
        %v1199 = vpop.permute.xlu0 %1198
        %vm1200 = vcmp.lt.s32.totalorder %v279, 99
        %v1201 = vsel %vm1200, %v1197, %v1199
        %v1202 = vsel %vm1200, %v1199, %v1197
        %v1203 = vmul.f32 %v1201, %v570
        %v1204 = vmul.f32 %v1202, %v571
        %1205 = vset.pattern.permute.xlu0 35
        %1206 = vperm.xlu0 %1205, %v622
        %v1207 = vpop.permute.xlu0 %1206
        %v1209 = vmul.f32 %v1203, %v1207
        %v1210 = vmul.f32 %v1204, %v1207
        %v1211 = vadd.f32 %v1144, %v1209
        %v1212 = vadd.f32 %v1145, %v1210
        %1213 = vrot.lane.b32.xlu0 %v456, 98
        %v1214 = vpop.permute.xlu0 %1213
        %1215 = vrot.lane.b32.xlu0 %v458, 98
        %v1216 = vpop.permute.xlu0 %1215
        %vm1217 = vcmp.lt.s32.totalorder %v279, 98
        %v1218 = vsel %vm1217, %v1214, %v1216
        %v1219 = vsel %vm1217, %v1216, %v1214
        %v1220 = vmul.f32 %v1218, %v574
        %v1221 = vmul.f32 %v1219, %v575
        %1222 = vset.pattern.permute.xlu0 36
        %1223 = vperm.xlu0 %1222, %v622
        %v1224 = vpop.permute.xlu0 %1223
        %v1226 = vmul.f32 %v1220, %v1224
        %v1227 = vmul.f32 %v1221, %v1224
        %v1228 = vadd.f32 %v1160, %v1226
        %v1229 = vadd.f32 %v1161, %v1227
        %1230 = vrot.lane.b32.xlu0 %v456, 97
        %v1231 = vpop.permute.xlu0 %1230
        %1232 = vrot.lane.b32.xlu0 %v458, 97
        %v1233 = vpop.permute.xlu0 %1232
        %vm1234 = vcmp.lt.s32.totalorder %v279, 97
        %v1235 = vsel %vm1234, %v1231, %v1233
        %v1236 = vsel %vm1234, %v1233, %v1231
        %v1237 = vmul.f32 %v1235, %v578
        %v1238 = vmul.f32 %v1236, %v579
        %1239 = vset.pattern.permute.xlu0 37
        %1240 = vperm.xlu0 %1239, %v622
        %v1241 = vpop.permute.xlu0 %1240
        %v1243 = vmul.f32 %v1237, %v1241
        %v1244 = vmul.f32 %v1238, %v1241
        %v1245 = vadd.f32 %v1177, %v1243
        %v1246 = vadd.f32 %v1178, %v1244
        %1247 = vrot.lane.b32.xlu0 %v456, 96
        %v1248 = vpop.permute.xlu0 %1247
        %1249 = vrot.lane.b32.xlu0 %v458, 96
        %v1250 = vpop.permute.xlu0 %1249
        %vm1251 = vcmp.lt.s32.totalorder %v279, 96
        %v1252 = vsel %vm1251, %v1248, %v1250
        %v1253 = vsel %vm1251, %v1250, %v1248
        %v1254 = vmul.f32 %v1252, %v580
        %v1255 = vmul.f32 %v1253, %v581
        %1256 = vset.pattern.permute.xlu0 38
        %1257 = vperm.xlu0 %1256, %v622
        %v1258 = vpop.permute.xlu0 %1257
        %v1260 = vmul.f32 %v1254, %v1258
        %v1261 = vmul.f32 %v1255, %v1258
        %v1262 = vadd.f32 %v1194, %v1260
        %v1263 = vadd.f32 %v1195, %v1261
        %1264 = vrot.lane.b32.xlu0 %v456, 95
        %v1265 = vpop.permute.xlu0 %1264
        %1266 = vrot.lane.b32.xlu0 %v458, 95
        %v1267 = vpop.permute.xlu0 %1266
        %vm1268 = vcmp.lt.s32.totalorder %v279, 95
        %v1269 = vsel %vm1268, %v1265, %v1267
        %v1270 = vsel %vm1268, %v1267, %v1265
        %v1271 = vmul.f32 %v1269, %v584
        %v1272 = vmul.f32 %v1270, %v585
        %1273 = vset.pattern.permute.xlu0 39
        %1274 = vperm.xlu0 %1273, %v622
        %v1275 = vpop.permute.xlu0 %1274
        %v1277 = vmul.f32 %v1271, %v1275
        %v1278 = vmul.f32 %v1272, %v1275
        %v1279 = vadd.f32 %v1211, %v1277
        %v1280 = vadd.f32 %v1212, %v1278
        %1281 = vrot.lane.b32.xlu0 %v456, 94
        %v1282 = vpop.permute.xlu0 %1281
        %1283 = vrot.lane.b32.xlu0 %v458, 94
        %v1284 = vpop.permute.xlu0 %1283
        %vm1285 = vcmp.lt.s32.totalorder %v279, 94
        %v1286 = vsel %vm1285, %v1282, %v1284
        %v1287 = vsel %vm1285, %v1284, %v1282
        %v1288 = vmul.f32 %v1286, %v588
        %v1289 = vmul.f32 %v1287, %v589
        %1290 = vset.pattern.permute.xlu0 40
        %1291 = vperm.xlu0 %1290, %v622
        %v1292 = vpop.permute.xlu0 %1291
        %v1294 = vmul.f32 %v1288, %v1292
        %v1295 = vmul.f32 %v1289, %v1292
        %v1296 = vadd.f32 %v1228, %v1294
        %v1297 = vadd.f32 %v1229, %v1295
        %1298 = vrot.lane.b32.xlu0 %v456, 93
        %v1299 = vpop.permute.xlu0 %1298
        %1300 = vrot.lane.b32.xlu0 %v458, 93
        %v1301 = vpop.permute.xlu0 %1300
        %vm1302 = vcmp.lt.s32.totalorder %v279, 93
        %v1303 = vsel %vm1302, %v1299, %v1301
        %v1304 = vsel %vm1302, %v1301, %v1299
        %v1305 = vmul.f32 %v1303, %v592
        %v1306 = vmul.f32 %v1304, %v593
        %1307 = vset.pattern.permute.xlu0 41
        %1308 = vperm.xlu0 %1307, %v622
        %v1309 = vpop.permute.xlu0 %1308
        %v1311 = vmul.f32 %v1305, %v1309
        %v1312 = vmul.f32 %v1306, %v1309
        %v1313 = vadd.f32 %v1245, %v1311
        %v1314 = vadd.f32 %v1246, %v1312
        %1315 = vrot.lane.b32.xlu0 %v456, 83
        %v1316 = vpop.permute.xlu0 %1315
        %1317 = vrot.lane.b32.xlu0 %v458, 83
        %v1318 = vpop.permute.xlu0 %1317
        %vm1319 = vcmp.lt.s32.totalorder %v279, 83
        %v1320 = vsel %vm1319, %v1316, %v1318
        %v1321 = vsel %vm1319, %v1318, %v1316
        %v1322 = vmul.f32 %v1320, %v598
        %v1323 = vmul.f32 %v1321, %v599
        %1324 = vset.pattern.permute.xlu0 42
        %1325 = vperm.xlu0 %1324, %v622
        %v1326 = vpop.permute.xlu0 %1325
        %v1328 = vmul.f32 %v1322, %v1326
        %v1329 = vmul.f32 %v1323, %v1326
        %v1330 = vadd.f32 %v1262, %v1328
        %v1331 = vadd.f32 %v1263, %v1329
        %1332 = vrot.lane.b32.xlu0 %v456, 82
        %v1333 = vpop.permute.xlu0 %1332
        %1334 = vrot.lane.b32.xlu0 %v458, 82
        %v1335 = vpop.permute.xlu0 %1334
        %vm1336 = vcmp.lt.s32.totalorder %v279, 82
        %v1337 = vsel %vm1336, %v1333, %v1335
        %v1338 = vsel %vm1336, %v1335, %v1333
        %v1339 = vmul.f32 %v1337, %v602
        %v1340 = vmul.f32 %v1338, %v603
        %1341 = vset.pattern.permute.xlu0 43
        %1342 = vperm.xlu0 %1341, %v622
        %v1343 = vpop.permute.xlu0 %1342
        %v1345 = vmul.f32 %v1339, %v1343
        %v1346 = vmul.f32 %v1340, %v1343
        %v1347 = vadd.f32 %v1279, %v1345
        %v1348 = vadd.f32 %v1280, %v1346
        %1349 = vrot.lane.b32.xlu0 %v456, 81
        %v1350 = vpop.permute.xlu0 %1349
        %1351 = vrot.lane.b32.xlu0 %v458, 81
        %v1352 = vpop.permute.xlu0 %1351
        %vm1353 = vcmp.lt.s32.totalorder %v279, 81
        %v1354 = vsel %vm1353, %v1350, %v1352
        %v1355 = vsel %vm1353, %v1352, %v1350
        %v1356 = vmul.f32 %v1354, %v606
        %v1357 = vmul.f32 %v1355, %v607
        %1358 = vset.pattern.permute.xlu0 44
        %1359 = vperm.xlu0 %1358, %v622
        %v1360 = vpop.permute.xlu0 %1359
        %v1362 = vmul.f32 %v1356, %v1360
        %v1363 = vmul.f32 %v1357, %v1360
        %v1364 = vadd.f32 %v1296, %v1362
        %v1365 = vadd.f32 %v1297, %v1363
        %1366 = vrot.lane.b32.xlu0 %v456, 80
        %v1367 = vpop.permute.xlu0 %1366
        %1368 = vrot.lane.b32.xlu0 %v458, 80
        %v1369 = vpop.permute.xlu0 %1368
        %vm1370 = vcmp.lt.s32.totalorder %v279, 80
        %v1371 = vsel %vm1370, %v1367, %v1369
        %v1372 = vsel %vm1370, %v1369, %v1367
        %v1373 = vmul.f32 %v1371, %v608
        %v1374 = vmul.f32 %v1372, %v609
        %1375 = vset.pattern.permute.xlu0 45
        %1376 = vperm.xlu0 %1375, %v622
        %v1377 = vpop.permute.xlu0 %1376
        %v1379 = vmul.f32 %v1373, %v1377
        %v1380 = vmul.f32 %v1374, %v1377
        %v1381 = vadd.f32 %v1313, %v1379
        %v1382 = vadd.f32 %v1314, %v1380
        %1383 = vrot.lane.b32.xlu0 %v456, 79
        %v1384 = vpop.permute.xlu0 %1383
        %1385 = vrot.lane.b32.xlu0 %v458, 79
        %v1386 = vpop.permute.xlu0 %1385
        %vm1387 = vcmp.lt.s32.totalorder %v279, 79
        %v1388 = vsel %vm1387, %v1384, %v1386
        %v1389 = vsel %vm1387, %v1386, %v1384
        %v1390 = vmul.f32 %v1388, %v612
        %v1391 = vmul.f32 %v1389, %v613
        %1392 = vset.pattern.permute.xlu0 46
        %1393 = vperm.xlu0 %1392, %v622
        %v1394 = vpop.permute.xlu0 %1393
        %v1396 = vmul.f32 %v1390, %v1394
        %v1397 = vmul.f32 %v1391, %v1394
        %v1398 = vadd.f32 %v1330, %v1396
        %v1399 = vadd.f32 %v1331, %v1397
        %1400 = vrot.lane.b32.xlu0 %v456, 78
        %v1401 = vpop.permute.xlu0 %1400
        %1402 = vrot.lane.b32.xlu0 %v458, 78
        %v1403 = vpop.permute.xlu0 %1402
        %vm1404 = vcmp.lt.s32.totalorder %v279, 78
        %v1405 = vsel %vm1404, %v1401, %v1403
        %v1406 = vsel %vm1404, %v1403, %v1401
        %v1407 = vmul.f32 %v1405, %v616
        %v1408 = vmul.f32 %v1406, %v617
        %1409 = vset.pattern.permute.xlu0 47
        %1410 = vperm.xlu0 %1409, %v622
        %v1411 = vpop.permute.xlu0 %1410
        %v1413 = vmul.f32 %v1407, %v1411
        %v1414 = vmul.f32 %v1408, %v1411
        %v1415 = vadd.f32 %v1347, %v1413
        %v1416 = vadd.f32 %v1348, %v1414
        %1417 = vrot.lane.b32.xlu0 %v456, 77
        %v1418 = vpop.permute.xlu0 %1417
        %1419 = vrot.lane.b32.xlu0 %v458, 77
        %v1420 = vpop.permute.xlu0 %1419
        %vm1421 = vcmp.lt.s32.totalorder %v279, 77
        %v1422 = vsel %vm1421, %v1418, %v1420
        %v1423 = vsel %vm1421, %v1420, %v1418
        %v1424 = vmul.f32 %v1422, %v620
        %v1425 = vmul.f32 %v1423, %v621
        %1426 = vset.pattern.permute.xlu0 48
        %1427 = vperm.xlu0 %1426, %v622
        %v1428 = vpop.permute.xlu0 %1427
        %v1430 = vmul.f32 %v1424, %v1428
        %v1431 = vmul.f32 %v1425, %v1428
        %v1432 = vadd.f32 %v1364, %v1430
        %v1433 = vadd.f32 %v1365, %v1431
        %v1434 = vadd.f32 %v1432, %v1381
        %v1435 = vadd.f32 %v1433, %v1382
        %v1436 = vadd.f32 %v1398, %v1415
        %v1437 = vadd.f32 %v1399, %v1416
        %v1438 = vadd.f32 %v1434, %v1436
        %v1439 = vadd.f32 %v1435, %v1437
        %1441 = vset.pattern.permute.xlu0 0
        %1442 = vperm.xlu0 %1441, %v624
        %v1443 = vpop.permute.xlu0 %1442
        %v1445 = vadd.f32 %v1438, %v1443
        %v1446 = vadd.f32 %v1439, %v1443
        %v1447 = vld [vmem:[%s2] sm:$0xf]
        %v1448 = vld [vmem:[%s2 + $0x4] sm:$0xf]
        %v1449 = vld [vmem:[%s2 + $0x8] sm:$0xf]
        %v1450 = vld [vmem:[%s2 + $0xc] sm:$0xf]
        %v1451 = vld [vmem:[%s2 + $0x10] sm:$0xf]
        %v1452 = vld [vmem:[%s2 + $0x14] sm:$0xf]
        %v1453 = vpack.c.bf16 %v1445, %v1445
        %v1454 = vpack.c.bf16 %v1446, %v1446
        %v1455 = vld [vmem:[%s6] sm:$0xff]
        %v1456 = vld [vmem:[%s6 + $0x8] sm:$0xff]
        %v1457 = vld [vmem:[%s6 + $0x10] sm:$0xff]
        %v1458 = vld [vmem:[%s6 + $0x18] sm:$0xff]
        %v1459 = vld [vmem:[%s6 + $0x20] sm:$0xff]
        %v1460 = vld [vmem:[%s6 + $0x28] sm:$0xff]
        %1462 = vset.pattern.permute.xlu0 0
        %1463 = vperm.xlu0 %1462, %v1455
        %v1464 = vpop.permute.xlu0 %1463
        %1467 = vset.pattern.permute.xlu0 0
        %1468 = vperm.xlu0 %1467, %v1456
        %v1469 = vpop.permute.xlu0 %1468
        %1472 = vset.pattern.permute.xlu0 0
        %1473 = vperm.xlu0 %1472, %v1457
        %v1474 = vpop.permute.xlu0 %1473
        %1477 = vset.pattern.permute.xlu0 0
        %1478 = vperm.xlu0 %1477, %v1458
        %v1479 = vpop.permute.xlu0 %1478
        %1482 = vset.pattern.permute.xlu0 0
        %1483 = vperm.xlu0 %1482, %v1459
        %v1484 = vpop.permute.xlu0 %1483
        %1487 = vset.pattern.permute.xlu0 0
        %1488 = vperm.xlu0 %1487, %v1460
        %v1489 = vpop.permute.xlu0 %1488
        %v1497 = vunpack.c.l.b16 %v1447
        %v1498 = vunpack.c.l.b16 %v1448
        %v1499 = vunpack.c.l.b16 %v1449
        %v1500 = vunpack.c.l.b16 %v1450
        %v1501 = vunpack.c.l.b16 %v1451
        %v1502 = vunpack.c.l.b16 %v1452
        %v1503 = vpack.c.b16 %v1498, %v1497
        %v1504 = vpack.c.b16 %v1500, %v1499
        %v1505 = vpack.c.b16 %v1502, %v1501
        %vm1506 = vcmask 64512
        %v1508 = vsel %vm1506, %v1503, 0
        %v1511 = vsel %vm1506, %v1504, 0
        %v1514 = vsel %vm1506, %v1505, 0
        %v1517 = vsel %vm414, %v1453, 0
        %v1520 = vsel %vm414, %v1454, 0
        %1522 = vmatprep.subr.bf16.mxu0 0
        %1523 = vmatpush1.bf16.msra.mxu0 0
        %1524 = vmatprep.subr.bf16.mxu0 0
        %1525 = vmatpush1.bf16.msra.mxu0 0
        %1526 = vmatprep.subr.bf16.mxu0 0
        %1527 = vmatpush1.bf16.msra.mxu0 0
        %1528 = vmatprep.subr.bf16.mxu0 0
        %1529 = vmatpush1.bf16.msra.mxu0 0
        %1530 = vmatprep.subr.bf16.mxu0 0
        %1531 = vmatpush1.bf16.msra.mxu0 0
        %1532 = vmatprep.subr.bf16.mxu0 0
        %1533 = vmatpush1.bf16.msra.mxu0 0
        %1534 = vmatprep.subr.bf16.mxu0 0
        %1535 = vmatpush1.bf16.msra.mxu0 0
        %1536 = vmatprep.subr.bf16.mxu0 %v1520
        %1537 = vmatpush1.bf16.msra.mxu0 %v1517
        %1538 = vmatprep.subr.bf16.mxu0 0
        %1539 = vmatpush2.bf16.msra.mxu0 0
        %1540 = vmatprep.subr.bf16.mxu0 0
        %1541 = vmatpush2.bf16.msra.mxu0 0
        %1542 = vmatprep.subr.bf16.mxu0 0
        %1543 = vmatpush2.bf16.msra.mxu0 0
        %1544 = vmatprep.subr.bf16.mxu0 0
        %1545 = vmatpush2.bf16.msra.mxu0 0
        %1546 = vmatprep.subr.bf16.mxu0 0
        %1547 = vmatpush2.bf16.msra.mxu0 0
        %1548 = vmatprep.subr.bf16.mxu0 0
        %1549 = vmatpush2.bf16.msra.mxu0 0
        %1550 = vmatprep.subr.bf16.mxu0 0
        %1551 = vmatpush2.bf16.msra.mxu0 0
        %1552 = vmatprep.subr.bf16.mxu0 0
        %1553 = vmatpush2.bf16.msra.mxu0 0
        %1554 = vmatprep.mubr.bf16.mxu0 0
        %1555 = vmatmul.mubr.bf16.gmra.mxu0 %v1508
        %v1556 = vpop.f32.mrf.mxu0
        %v1557 = vadd.f32 %v1464, %v1556
        %v1558 = vpop.f32.mrf.mxu0
        %v1559 = vadd.f32 %v1464, %v1558
        %v1560 = vpop.f32.mrf.mxu0
        %v1561 = vadd.f32 %v1469, %v1560
        %v1562 = vpop.f32.mrf.mxu0
        %v1563 = vadd.f32 %v1469, %v1562
        %1564 = vmatprep.mubr.bf16.mxu0 0
        %1565 = vmatmul.mubr.bf16.gmra.mxu0 %v1511
        %v1566 = vpop.f32.mrf.mxu0
        %v1567 = vadd.f32 %v1474, %v1566
        %v1568 = vpop.f32.mrf.mxu0
        %v1569 = vadd.f32 %v1474, %v1568
        %v1570 = vpop.f32.mrf.mxu0
        %v1571 = vadd.f32 %v1479, %v1570
        %v1572 = vpop.f32.mrf.mxu0
        %v1573 = vadd.f32 %v1479, %v1572
        %1574 = vmatprep.mubr.bf16.mxu0 0
        %1575 = vmatmul.mubr.bf16.gmra.mxu0 %v1514
        %v1576 = vpop.f32.mrf.mxu0
        %v1577 = vadd.f32 %v1484, %v1576
        %v1578 = vpop.f32.mrf.mxu0
        %v1579 = vadd.f32 %v1484, %v1578
        %v1580 = vpop.f32.mrf.mxu0
        %v1581 = vadd.f32 %v1489, %v1580
        %v1582 = vpop.f32.mrf.mxu0
        %v1583 = vadd.f32 %v1489, %v1582
        %1584 = vdwg.mxu0
        %v1585 = vxor.u32 %v1557, 2147483648
        %v1586 = vxor.u32 %v1559, 2147483648
        %v1587 = vxor.u32 %v1561, 2147483648
        %v1588 = vxor.u32 %v1563, 2147483648
        %v1589 = vxor.u32 %v1567, 2147483648
        %v1590 = vxor.u32 %v1569, 2147483648
        %v1591 = vmul.f32 %v1585, 1.442695
        %v1592 = vpow.pop %v1591
        %v1593 = vmul.f32 %v1586, 1.442695
        %v1594 = vpow.pop %v1593
        %v1595 = vmul.f32 %v1587, 1.442695
        %v1596 = vpow.pop %v1595
        %v1597 = vmul.f32 %v1588, 1.442695
        %v1598 = vpow.pop %v1597
        %v1599 = vmul.f32 %v1589, 1.442695
        %v1600 = vpow.pop %v1599
        %v1601 = vmul.f32 %v1590, 1.442695
        %v1602 = vpow.pop %v1601
        %v1603 = vadd.f32 %v1592, 1.0
        %v1604 = vadd.f32 %v1594, 1.0
        %v1605 = vadd.f32 %v1596, 1.0
        %v1606 = vadd.f32 %v1598, 1.0
        %v1607 = vadd.f32 %v1600, 1.0
        %v1608 = vadd.f32 %v1602, 1.0
        %v1609 = vrcp.pop %v1603
        %v1610 = vmul.f32 1.0, %v1609
        %v1611 = vrcp.pop %v1604
        %v1612 = vmul.f32 1.0, %v1611
        %v1613 = vrcp.pop %v1605
        %v1614 = vmul.f32 1.0, %v1613
        %v1615 = vrcp.pop %v1606
        %v1616 = vmul.f32 1.0, %v1615
        %v1617 = vrcp.pop %v1607
        %v1618 = vmul.f32 1.0, %v1617
        %v1619 = vrcp.pop %v1608
        %v1620 = vmul.f32 1.0, %v1619
        %v1621 = vmul.f32 %v1557, %v1610
        %v1622 = vmul.f32 %v1559, %v1612
        %v1623 = vmul.f32 %v1561, %v1614
        %v1624 = vmul.f32 %v1563, %v1616
        %v1625 = vmul.f32 %v1567, %v1618
        %v1626 = vmul.f32 %v1569, %v1620
        %v1627 = vmul.f32 %v1621, %v1571
        %v1628 = vmul.f32 %v1622, %v1573
        %v1629 = vmul.f32 %v1623, %v1577
        %v1630 = vmul.f32 %v1624, %v1579
        %v1631 = vmul.f32 %v1625, %v1581
        %v1632 = vmul.f32 %v1626, %v1583
        %v1633 = vld [vmem:[%s3] sm:$0xf]
        %v1634 = vpack.c.bf16 %v1629, %v1627
        %v1635 = vpack.c.bf16 %v1630, %v1628
        %v1636 = vpack.c.bf16 %v1631, %v1631
        %v1637 = vpack.c.bf16 %v1632, %v1632
        %s1638 = scalar_lea.vmem %s5, 16
        %v1639 = vld [vmem:[%s1638] sm:$0xff]
        %1641 = vset.pattern.permute.xlu0 0
        %1642 = vperm.xlu0 %1641, %v1639
        %v1643 = vpop.permute.xlu0 %1642
        %vm1645 = vcmask 195584
        %v1647 = vsel %vm1645, %v1633, 0
        %v1650 = vsel %vm414, %v1636, 0
        %v1653 = vsel %vm414, %v1637, 0
        %1655 = vmatprep.subr.bf16.mxu0 0
        %1656 = vmatpush1.bf16.msra.mxu0 0
        %1657 = vmatprep.subr.bf16.mxu0 0
        %1658 = vmatpush1.bf16.msra.mxu0 0
        %1659 = vmatprep.subr.bf16.mxu0 0
        %1660 = vmatpush1.bf16.msra.mxu0 0
        %1661 = vmatprep.subr.bf16.mxu0 0
        %1662 = vmatpush1.bf16.msra.mxu0 0
        %1663 = vmatprep.subr.bf16.mxu0 0
        %1664 = vmatpush1.bf16.msra.mxu0 0
        %1665 = vmatprep.subr.bf16.mxu0 0
        %1666 = vmatpush1.bf16.msra.mxu0 0
        %1667 = vmatprep.subr.bf16.mxu0 %v1653
        %1668 = vmatpush1.bf16.msra.mxu0 %v1650
        %1669 = vmatprep.subr.bf16.mxu0 %v1635
        %1670 = vmatpush1.bf16.msra.mxu0 %v1634
        %1671 = vmatprep.subr.bf16.mxu0 0
        %1672 = vmatpush2.bf16.msra.mxu0 0
        %1673 = vmatprep.subr.bf16.mxu0 0
        %1674 = vmatpush2.bf16.msra.mxu0 0
        %1675 = vmatprep.subr.bf16.mxu0 0
        %1676 = vmatpush2.bf16.msra.mxu0 0
        %1677 = vmatprep.subr.bf16.mxu0 0
        %1678 = vmatpush2.bf16.msra.mxu0 0
        %1679 = vmatprep.subr.bf16.mxu0 0
        %1680 = vmatpush2.bf16.msra.mxu0 0
        %1681 = vmatprep.subr.bf16.mxu0 0
        %1682 = vmatpush2.bf16.msra.mxu0 0
        %1683 = vmatprep.subr.bf16.mxu0 0
        %1684 = vmatpush2.bf16.msra.mxu0 0
        %1685 = vmatprep.subr.bf16.mxu0 0
        %1686 = vmatpush2.bf16.msra.mxu0 0
        %1687 = vmatprep.mubr.bf16.mxu0 0
        %1688 = vmatmul.mubr.bf16.gmra.mxu0 %v1647
        %v1689 = vpop.f32.mrf.mxu0
        %v1690 = vadd.f32 %v1643, %v1689
        %v1691 = vpop.f32.mrf.mxu0
        %v1692 = vadd.f32 %v1643, %v1691
        %v1693 = vpop.f32.mrf.mxu0
        %v1694 = vpop.f32.mrf.mxu0
        %1695 = vdwg.mxu0
        %s1696 = scalar_lea.vmem %s4, 8
        %v1697 = vld [vmem:[%s1696] sm:$0xff]
        %s1698 = scalar_lea.vmem %s5, 24
        %v1699 = vld [vmem:[%s1698] sm:$0xff]
        %1700 = vrot.lane.b32.xlu0 %v1690, 51
        %v1701 = vpop.permute.xlu0 %1700
        %1702 = vrot.lane.b32.xlu0 %v1692, 51
        %v1703 = vpop.permute.xlu0 %1702
        %v1704 = vsel %vm629, %v1701, %v1703
        %v1705 = vsel %vm629, %v1703, %v1701
        %v1706 = vmul.f32 %v1705, %v468
        %v1707 = vmul.f32 %v1704, %v469
        %1709 = vset.pattern.permute.xlu0 0
        %1710 = vperm.xlu0 %1709, %v1697
        %v1711 = vpop.permute.xlu0 %1710
        %v1713 = vmul.f32 %v1706, %v1711
        %v1714 = vmul.f32 %v1707, %v1711
        %1715 = vrot.lane.b32.xlu0 %v1690, 50
        %v1716 = vpop.permute.xlu0 %1715
        %1717 = vrot.lane.b32.xlu0 %v1692, 50
        %v1718 = vpop.permute.xlu0 %1717
        %v1719 = vsel %vm645, %v1716, %v1718
        %v1720 = vsel %vm645, %v1718, %v1716
        %v1721 = vmul.f32 %v1720, %v474
        %v1722 = vmul.f32 %v1719, %v475
        %1723 = vset.pattern.permute.xlu0 1
        %1724 = vperm.xlu0 %1723, %v1697
        %v1725 = vpop.permute.xlu0 %1724
        %v1727 = vmul.f32 %v1721, %v1725
        %v1728 = vmul.f32 %v1722, %v1725
        %1729 = vrot.lane.b32.xlu0 %v1690, 49
        %v1730 = vpop.permute.xlu0 %1729
        %1731 = vrot.lane.b32.xlu0 %v1692, 49
        %v1732 = vpop.permute.xlu0 %1731
        %v1733 = vsel %vm660, %v1730, %v1732
        %v1734 = vsel %vm660, %v1732, %v1730
        %v1735 = vmul.f32 %v1734, %v478
        %v1736 = vmul.f32 %v1733, %v479
        %1737 = vset.pattern.permute.xlu0 2
        %1738 = vperm.xlu0 %1737, %v1697
        %v1739 = vpop.permute.xlu0 %1738
        %v1741 = vmul.f32 %v1735, %v1739
        %v1742 = vmul.f32 %v1736, %v1739
        %1743 = vrot.lane.b32.xlu0 %v1690, 48
        %v1744 = vpop.permute.xlu0 %1743
        %1745 = vrot.lane.b32.xlu0 %v1692, 48
        %v1746 = vpop.permute.xlu0 %1745
        %v1747 = vsel %vm675, %v1744, %v1746
        %v1748 = vsel %vm675, %v1746, %v1744
        %v1749 = vmul.f32 %v1748, %v480
        %v1750 = vmul.f32 %v1747, %v481
        %1751 = vset.pattern.permute.xlu0 3
        %1752 = vperm.xlu0 %1751, %v1697
        %v1753 = vpop.permute.xlu0 %1752
        %v1755 = vmul.f32 %v1749, %v1753
        %v1756 = vmul.f32 %v1750, %v1753
        %1757 = vrot.lane.b32.xlu0 %v1690, 47
        %v1758 = vpop.permute.xlu0 %1757
        %1759 = vrot.lane.b32.xlu0 %v1692, 47
        %v1760 = vpop.permute.xlu0 %1759
        %v1761 = vsel %vm690, %v1758, %v1760
        %v1762 = vsel %vm690, %v1760, %v1758
        %v1763 = vmul.f32 %v1762, %v484
        %v1764 = vmul.f32 %v1761, %v485
        %1765 = vset.pattern.permute.xlu0 4
        %1766 = vperm.xlu0 %1765, %v1697
        %v1767 = vpop.permute.xlu0 %1766
        %v1769 = vmul.f32 %v1763, %v1767
        %v1770 = vmul.f32 %v1764, %v1767
        %v1771 = vadd.f32 %v1713, %v1769
        %v1772 = vadd.f32 %v1714, %v1770
        %1773 = vrot.lane.b32.xlu0 %v1690, 46
        %v1774 = vpop.permute.xlu0 %1773
        %1775 = vrot.lane.b32.xlu0 %v1692, 46
        %v1776 = vpop.permute.xlu0 %1775
        %v1777 = vsel %vm707, %v1774, %v1776
        %v1778 = vsel %vm707, %v1776, %v1774
        %v1779 = vmul.f32 %v1778, %v490
        %v1780 = vmul.f32 %v1777, %v491
        %1781 = vset.pattern.permute.xlu0 5
        %1782 = vperm.xlu0 %1781, %v1697
        %v1783 = vpop.permute.xlu0 %1782
        %v1785 = vmul.f32 %v1779, %v1783
        %v1786 = vmul.f32 %v1780, %v1783
        %v1787 = vadd.f32 %v1727, %v1785
        %v1788 = vadd.f32 %v1728, %v1786
        %1789 = vrot.lane.b32.xlu0 %v1690, 45
        %v1790 = vpop.permute.xlu0 %1789
        %1791 = vrot.lane.b32.xlu0 %v1692, 45
        %v1792 = vpop.permute.xlu0 %1791
        %v1793 = vsel %vm724, %v1790, %v1792
        %v1794 = vsel %vm724, %v1792, %v1790
        %v1795 = vmul.f32 %v1794, %v496
        %v1796 = vmul.f32 %v1793, %v497
        %1797 = vset.pattern.permute.xlu0 6
        %1798 = vperm.xlu0 %1797, %v1697
        %v1799 = vpop.permute.xlu0 %1798
        %v1801 = vmul.f32 %v1795, %v1799
        %v1802 = vmul.f32 %v1796, %v1799
        %v1803 = vadd.f32 %v1741, %v1801
        %v1804 = vadd.f32 %v1742, %v1802
        %1805 = vrot.lane.b32.xlu0 %v1690, 35
        %v1806 = vpop.permute.xlu0 %1805
        %1807 = vrot.lane.b32.xlu0 %v1692, 35
        %v1808 = vpop.permute.xlu0 %1807
        %v1809 = vsel %vm741, %v1806, %v1808
        %v1810 = vsel %vm741, %v1808, %v1806
        %v1811 = vmul.f32 %v1810, %v502
        %v1812 = vmul.f32 %v1809, %v503
        %1813 = vset.pattern.permute.xlu0 7
        %1814 = vperm.xlu0 %1813, %v1697
        %v1815 = vpop.permute.xlu0 %1814
        %v1817 = vmul.f32 %v1811, %v1815
        %v1818 = vmul.f32 %v1812, %v1815
        %v1819 = vadd.f32 %v1755, %v1817
        %v1820 = vadd.f32 %v1756, %v1818
        %1821 = vrot.lane.b32.xlu0 %v1690, 34
        %v1822 = vpop.permute.xlu0 %1821
        %1823 = vrot.lane.b32.xlu0 %v1692, 34
        %v1824 = vpop.permute.xlu0 %1823
        %v1825 = vsel %vm758, %v1822, %v1824
        %v1826 = vsel %vm758, %v1824, %v1822
        %v1827 = vmul.f32 %v1826, %v506
        %v1828 = vmul.f32 %v1825, %v507
        %1829 = vset.pattern.permute.xlu0 8
        %1830 = vperm.xlu0 %1829, %v1697
        %v1831 = vpop.permute.xlu0 %1830
        %v1833 = vmul.f32 %v1827, %v1831
        %v1834 = vmul.f32 %v1828, %v1831
        %v1835 = vadd.f32 %v1771, %v1833
        %v1836 = vadd.f32 %v1772, %v1834
        %1837 = vrot.lane.b32.xlu0 %v1690, 33
        %v1838 = vpop.permute.xlu0 %1837
        %1839 = vrot.lane.b32.xlu0 %v1692, 33
        %v1840 = vpop.permute.xlu0 %1839
        %v1841 = vsel %vm775, %v1838, %v1840
        %v1842 = vsel %vm775, %v1840, %v1838
        %v1843 = vmul.f32 %v1842, %v510
        %v1844 = vmul.f32 %v1841, %v511
        %1845 = vset.pattern.permute.xlu0 9
        %1846 = vperm.xlu0 %1845, %v1697
        %v1847 = vpop.permute.xlu0 %1846
        %v1849 = vmul.f32 %v1843, %v1847
        %v1850 = vmul.f32 %v1844, %v1847
        %v1851 = vadd.f32 %v1787, %v1849
        %v1852 = vadd.f32 %v1788, %v1850
        %1853 = vrot.lane.b32.xlu0 %v1690, 32
        %v1854 = vpop.permute.xlu0 %1853
        %1855 = vrot.lane.b32.xlu0 %v1692, 32
        %v1856 = vpop.permute.xlu0 %1855
        %v1857 = vsel %vm792, %v1854, %v1856
        %v1858 = vsel %vm792, %v1856, %v1854
        %v1859 = vmul.f32 %v1858, %v512
        %v1860 = vmul.f32 %v1857, %v513
        %1861 = vset.pattern.permute.xlu0 10
        %1862 = vperm.xlu0 %1861, %v1697
        %v1863 = vpop.permute.xlu0 %1862
        %v1865 = vmul.f32 %v1859, %v1863
        %v1866 = vmul.f32 %v1860, %v1863
        %v1867 = vadd.f32 %v1803, %v1865
        %v1868 = vadd.f32 %v1804, %v1866
        %1869 = vrot.lane.b32.xlu0 %v1690, 31
        %v1870 = vpop.permute.xlu0 %1869
        %1871 = vrot.lane.b32.xlu0 %v1692, 31
        %v1872 = vpop.permute.xlu0 %1871
        %v1873 = vsel %vm809, %v1870, %v1872
        %v1874 = vsel %vm809, %v1872, %v1870
        %v1875 = vmul.f32 %v1874, %v516
        %v1876 = vmul.f32 %v1873, %v517
        %1877 = vset.pattern.permute.xlu0 11
        %1878 = vperm.xlu0 %1877, %v1697
        %v1879 = vpop.permute.xlu0 %1878
        %v1881 = vmul.f32 %v1875, %v1879
        %v1882 = vmul.f32 %v1876, %v1879
        %v1883 = vadd.f32 %v1819, %v1881
        %v1884 = vadd.f32 %v1820, %v1882
        %1885 = vrot.lane.b32.xlu0 %v1690, 30
        %v1886 = vpop.permute.xlu0 %1885
        %1887 = vrot.lane.b32.xlu0 %v1692, 30
        %v1888 = vpop.permute.xlu0 %1887
        %v1889 = vsel %vm826, %v1886, %v1888
        %v1890 = vsel %vm826, %v1888, %v1886
        %v1891 = vmul.f32 %v1890, %v520
        %v1892 = vmul.f32 %v1889, %v521
        %1893 = vset.pattern.permute.xlu0 12
        %1894 = vperm.xlu0 %1893, %v1697
        %v1895 = vpop.permute.xlu0 %1894
        %v1897 = vmul.f32 %v1891, %v1895
        %v1898 = vmul.f32 %v1892, %v1895
        %v1899 = vadd.f32 %v1835, %v1897
        %v1900 = vadd.f32 %v1836, %v1898
        %1901 = vrot.lane.b32.xlu0 %v1690, 29
        %v1902 = vpop.permute.xlu0 %1901
        %1903 = vrot.lane.b32.xlu0 %v1692, 29
        %v1904 = vpop.permute.xlu0 %1903
        %v1905 = vsel %vm843, %v1902, %v1904
        %v1906 = vsel %vm843, %v1904, %v1902
        %v1907 = vmul.f32 %v1906, %v524
        %v1908 = vmul.f32 %v1905, %v525
        %1909 = vset.pattern.permute.xlu0 13
        %1910 = vperm.xlu0 %1909, %v1697
        %v1911 = vpop.permute.xlu0 %1910
        %v1913 = vmul.f32 %v1907, %v1911
        %v1914 = vmul.f32 %v1908, %v1911
        %v1915 = vadd.f32 %v1851, %v1913
        %v1916 = vadd.f32 %v1852, %v1914
        %1917 = vrot.lane.b32.xlu0 %v1690, 19
        %v1918 = vpop.permute.xlu0 %1917
        %1919 = vrot.lane.b32.xlu0 %v1692, 19
        %v1920 = vpop.permute.xlu0 %1919
        %v1921 = vsel %vm860, %v1918, %v1920
        %v1922 = vsel %vm860, %v1920, %v1918
        %v1923 = vmul.f32 %v1922, %v528
        %v1924 = vmul.f32 %v1921, %v529
        %1925 = vset.pattern.permute.xlu0 14
        %1926 = vperm.xlu0 %1925, %v1697
        %v1927 = vpop.permute.xlu0 %1926
        %v1929 = vmul.f32 %v1923, %v1927
        %v1930 = vmul.f32 %v1924, %v1927
        %v1931 = vadd.f32 %v1867, %v1929
        %v1932 = vadd.f32 %v1868, %v1930
        %1933 = vrot.lane.b32.xlu0 %v1690, 18
        %v1934 = vpop.permute.xlu0 %1933
        %1935 = vrot.lane.b32.xlu0 %v1692, 18
        %v1936 = vpop.permute.xlu0 %1935
        %v1937 = vsel %vm877, %v1934, %v1936
        %v1938 = vsel %vm877, %v1936, %v1934
        %v1939 = vmul.f32 %v1938, %v532
        %v1940 = vmul.f32 %v1937, %v533
        %1941 = vset.pattern.permute.xlu0 15
        %1942 = vperm.xlu0 %1941, %v1697
        %v1943 = vpop.permute.xlu0 %1942
        %v1945 = vmul.f32 %v1939, %v1943
        %v1946 = vmul.f32 %v1940, %v1943
        %v1947 = vadd.f32 %v1883, %v1945
        %v1948 = vadd.f32 %v1884, %v1946
        %1949 = vrot.lane.b32.xlu0 %v1690, 17
        %v1950 = vpop.permute.xlu0 %1949
        %1951 = vrot.lane.b32.xlu0 %v1692, 17
        %v1952 = vpop.permute.xlu0 %1951
        %v1953 = vsel %vm325, %v1950, %v1952
        %v1954 = vsel %vm325, %v1952, %v1950
        %v1955 = vmul.f32 %v1954, %v295
        %v1956 = vmul.f32 %v1953, %v296
        %1957 = vset.pattern.permute.xlu0 16
        %1958 = vperm.xlu0 %1957, %v1697
        %v1959 = vpop.permute.xlu0 %1958
        %v1961 = vmul.f32 %v1955, %v1959
        %v1962 = vmul.f32 %v1956, %v1959
        %v1963 = vadd.f32 %v1899, %v1961
        %v1964 = vadd.f32 %v1900, %v1962
        %1965 = vrot.lane.b32.xlu0 %v1690, 16
        %v1966 = vpop.permute.xlu0 %1965
        %1967 = vrot.lane.b32.xlu0 %v1692, 16
        %v1968 = vpop.permute.xlu0 %1967
        %v1969 = vsel %vm334, %v1966, %v1968
        %v1970 = vsel %vm334, %v1968, %v1966
        %v1971 = vmul.f32 %v1970, %v297
        %v1972 = vmul.f32 %v1969, %v298
        %1973 = vset.pattern.permute.xlu0 17
        %1974 = vperm.xlu0 %1973, %v1697
        %v1975 = vpop.permute.xlu0 %1974
        %v1977 = vmul.f32 %v1971, %v1975
        %v1978 = vmul.f32 %v1972, %v1975
        %v1979 = vadd.f32 %v1915, %v1977
        %v1980 = vadd.f32 %v1916, %v1978
        %1981 = vrot.lane.b32.xlu0 %v1690, 15
        %v1982 = vpop.permute.xlu0 %1981
        %1983 = vrot.lane.b32.xlu0 %v1692, 15
        %v1984 = vpop.permute.xlu0 %1983
        %v1985 = vsel %vm343, %v1982, %v1984
        %v1986 = vsel %vm343, %v1984, %v1982
        %v1987 = vmul.f32 %v1986, %v303
        %v1988 = vmul.f32 %v1985, %v304
        %1989 = vset.pattern.permute.xlu0 18
        %1990 = vperm.xlu0 %1989, %v1697
        %v1991 = vpop.permute.xlu0 %1990
        %v1993 = vmul.f32 %v1987, %v1991
        %v1994 = vmul.f32 %v1988, %v1991
        %v1995 = vadd.f32 %v1931, %v1993
        %v1996 = vadd.f32 %v1932, %v1994
        %1997 = vrot.lane.b32.xlu0 %v1690, 14
        %v1998 = vpop.permute.xlu0 %1997
        %1999 = vrot.lane.b32.xlu0 %v1692, 14
        %v2000 = vpop.permute.xlu0 %1999
        %v2001 = vsel %vm942, %v1998, %v2000
        %v2002 = vsel %vm942, %v2000, %v1998
        %v2003 = vmul.f32 %v2002, %v536
        %v2004 = vmul.f32 %v2001, %v537
        %2005 = vset.pattern.permute.xlu0 19
        %2006 = vperm.xlu0 %2005, %v1697
        %v2007 = vpop.permute.xlu0 %2006
        %v2009 = vmul.f32 %v2003, %v2007
        %v2010 = vmul.f32 %v2004, %v2007
        %v2011 = vadd.f32 %v1947, %v2009
        %v2012 = vadd.f32 %v1948, %v2010
        %2013 = vrot.lane.b32.xlu0 %v1690, 13
        %v2014 = vpop.permute.xlu0 %2013
        %2015 = vrot.lane.b32.xlu0 %v1692, 13
        %v2016 = vpop.permute.xlu0 %2015
        %v2017 = vsel %vm959, %v2014, %v2016
        %v2018 = vsel %vm959, %v2016, %v2014
        %v2019 = vmul.f32 %v2018, %v540
        %v2020 = vmul.f32 %v2017, %v541
        %2021 = vset.pattern.permute.xlu0 20
        %2022 = vperm.xlu0 %2021, %v1697
        %v2023 = vpop.permute.xlu0 %2022
        %v2025 = vmul.f32 %v2019, %v2023
        %v2026 = vmul.f32 %v2020, %v2023
        %v2027 = vadd.f32 %v1963, %v2025
        %v2028 = vadd.f32 %v1964, %v2026
        %2029 = vrot.lane.b32.xlu0 %v1690, 3
        %v2030 = vpop.permute.xlu0 %2029
        %2031 = vrot.lane.b32.xlu0 %v1692, 3
        %v2032 = vpop.permute.xlu0 %2031
        %v2033 = vsel %vm976, %v2030, %v2032
        %v2034 = vsel %vm976, %v2032, %v2030
        %v2035 = vmul.f32 %v2034, %v542
        %v2036 = vmul.f32 %v2033, %v543
        %2037 = vset.pattern.permute.xlu0 21
        %2038 = vperm.xlu0 %2037, %v1697
        %v2039 = vpop.permute.xlu0 %2038
        %v2041 = vmul.f32 %v2035, %v2039
        %v2042 = vmul.f32 %v2036, %v2039
        %v2043 = vadd.f32 %v1979, %v2041
        %v2044 = vadd.f32 %v1980, %v2042
        %2045 = vrot.lane.b32.xlu0 %v1690, 2
        %v2046 = vpop.permute.xlu0 %2045
        %2047 = vrot.lane.b32.xlu0 %v1692, 2
        %v2048 = vpop.permute.xlu0 %2047
        %v2049 = vsel %vm993, %v2046, %v2048
        %v2050 = vsel %vm993, %v2048, %v2046
        %v2051 = vmul.f32 %v2050, %v544
        %v2052 = vmul.f32 %v2049, %v545
        %2053 = vset.pattern.permute.xlu0 22
        %2054 = vperm.xlu0 %2053, %v1697
        %v2055 = vpop.permute.xlu0 %2054
        %v2057 = vmul.f32 %v2051, %v2055
        %v2058 = vmul.f32 %v2052, %v2055
        %v2059 = vadd.f32 %v1995, %v2057
        %v2060 = vadd.f32 %v1996, %v2058
        %2061 = vrot.lane.b32.xlu0 %v1690, 1
        %v2062 = vpop.permute.xlu0 %2061
        %2063 = vrot.lane.b32.xlu0 %v1692, 1
        %v2064 = vpop.permute.xlu0 %2063
        %v2065 = vsel %vm352, %v2062, %v2064
        %v2066 = vsel %vm352, %v2064, %v2062
        %v2067 = vmul.f32 %v2066, %v305
        %v2068 = vmul.f32 %v2065, %v306
        %2069 = vset.pattern.permute.xlu0 23
        %2070 = vperm.xlu0 %2069, %v1697
        %v2071 = vpop.permute.xlu0 %2070
        %v2073 = vmul.f32 %v2067, %v2071
        %v2074 = vmul.f32 %v2068, %v2071
        %v2075 = vadd.f32 %v2011, %v2073
        %v2076 = vadd.f32 %v2012, %v2074
        %2077 = vset.pattern.permute.xlu0 24
        %2078 = vperm.xlu0 %2077, %v1697
        %v2079 = vpop.permute.xlu0 %2078
        %v2081 = vmul.f32 %v1690, %v2079
        %v2082 = vmul.f32 %v1692, %v2079
        %v2083 = vadd.f32 %v2027, %v2081
        %v2084 = vadd.f32 %v2028, %v2082
        %2085 = vrot.lane.b32.xlu0 %v1690, 127
        %v2086 = vpop.permute.xlu0 %2085
        %2087 = vrot.lane.b32.xlu0 %v1692, 127
        %v2088 = vpop.permute.xlu0 %2087
        %v2089 = vsel %vm361, %v2086, %v2088
        %v2090 = vsel %vm361, %v2088, %v2086
        %v2091 = vmul.f32 %v2089, %v307
        %v2092 = vmul.f32 %v2090, %v308
        %2093 = vset.pattern.permute.xlu0 25
        %2094 = vperm.xlu0 %2093, %v1697
        %v2095 = vpop.permute.xlu0 %2094
        %v2097 = vmul.f32 %v2091, %v2095
        %v2098 = vmul.f32 %v2092, %v2095
        %v2099 = vadd.f32 %v2043, %v2097
        %v2100 = vadd.f32 %v2044, %v2098
        %2101 = vrot.lane.b32.xlu0 %v1690, 126
        %v2102 = vpop.permute.xlu0 %2101
        %2103 = vrot.lane.b32.xlu0 %v1692, 126
        %v2104 = vpop.permute.xlu0 %2103
        %v2105 = vsel %vm1050, %v2102, %v2104
        %v2106 = vsel %vm1050, %v2104, %v2102
        %v2107 = vmul.f32 %v2105, %v546
        %v2108 = vmul.f32 %v2106, %v547
        %2109 = vset.pattern.permute.xlu0 26
        %2110 = vperm.xlu0 %2109, %v1697
        %v2111 = vpop.permute.xlu0 %2110
        %v2113 = vmul.f32 %v2107, %v2111
        %v2114 = vmul.f32 %v2108, %v2111
        %v2115 = vadd.f32 %v2059, %v2113
        %v2116 = vadd.f32 %v2060, %v2114
        %2117 = vrot.lane.b32.xlu0 %v1690, 125
        %v2118 = vpop.permute.xlu0 %2117
        %2119 = vrot.lane.b32.xlu0 %v1692, 125
        %v2120 = vpop.permute.xlu0 %2119
        %v2121 = vsel %vm1067, %v2118, %v2120
        %v2122 = vsel %vm1067, %v2120, %v2118
        %v2123 = vmul.f32 %v2121, %v548
        %v2124 = vmul.f32 %v2122, %v549
        %2125 = vset.pattern.permute.xlu0 27
        %2126 = vperm.xlu0 %2125, %v1697
        %v2127 = vpop.permute.xlu0 %2126
        %v2129 = vmul.f32 %v2123, %v2127
        %v2130 = vmul.f32 %v2124, %v2127
        %v2131 = vadd.f32 %v2075, %v2129
        %v2132 = vadd.f32 %v2076, %v2130
        %2133 = vrot.lane.b32.xlu0 %v1690, 115
        %v2134 = vpop.permute.xlu0 %2133
        %2135 = vrot.lane.b32.xlu0 %v1692, 115
        %v2136 = vpop.permute.xlu0 %2135
        %v2137 = vsel %vm1084, %v2134, %v2136
        %v2138 = vsel %vm1084, %v2136, %v2134
        %v2139 = vmul.f32 %v2137, %v552
        %v2140 = vmul.f32 %v2138, %v553
        %2141 = vset.pattern.permute.xlu0 28
        %2142 = vperm.xlu0 %2141, %v1697
        %v2143 = vpop.permute.xlu0 %2142
        %v2145 = vmul.f32 %v2139, %v2143
        %v2146 = vmul.f32 %v2140, %v2143
        %v2147 = vadd.f32 %v2083, %v2145
        %v2148 = vadd.f32 %v2084, %v2146
        %2149 = vrot.lane.b32.xlu0 %v1690, 114
        %v2150 = vpop.permute.xlu0 %2149
        %2151 = vrot.lane.b32.xlu0 %v1692, 114
        %v2152 = vpop.permute.xlu0 %2151
        %v2153 = vsel %vm1101, %v2150, %v2152
        %v2154 = vsel %vm1101, %v2152, %v2150
        %v2155 = vmul.f32 %v2153, %v556
        %v2156 = vmul.f32 %v2154, %v557
        %2157 = vset.pattern.permute.xlu0 29
        %2158 = vperm.xlu0 %2157, %v1697
        %v2159 = vpop.permute.xlu0 %2158
        %v2161 = vmul.f32 %v2155, %v2159
        %v2162 = vmul.f32 %v2156, %v2159
        %v2163 = vadd.f32 %v2099, %v2161
        %v2164 = vadd.f32 %v2100, %v2162
        %2165 = vrot.lane.b32.xlu0 %v1690, 113
        %v2166 = vpop.permute.xlu0 %2165
        %2167 = vrot.lane.b32.xlu0 %v1692, 113
        %v2168 = vpop.permute.xlu0 %2167
        %v2169 = vsel %vm370, %v2166, %v2168
        %v2170 = vsel %vm370, %v2168, %v2166
        %v2171 = vmul.f32 %v2169, %v313
        %v2172 = vmul.f32 %v2170, %v314
        %2173 = vset.pattern.permute.xlu0 30
        %2174 = vperm.xlu0 %2173, %v1697
        %v2175 = vpop.permute.xlu0 %2174
        %v2177 = vmul.f32 %v2171, %v2175
        %v2178 = vmul.f32 %v2172, %v2175
        %v2179 = vadd.f32 %v2115, %v2177
        %v2180 = vadd.f32 %v2116, %v2178
        %2181 = vrot.lane.b32.xlu0 %v1690, 112
        %v2182 = vpop.permute.xlu0 %2181
        %2183 = vrot.lane.b32.xlu0 %v1692, 112
        %v2184 = vpop.permute.xlu0 %2183
        %v2185 = vsel %vm379, %v2182, %v2184
        %v2186 = vsel %vm379, %v2184, %v2182
        %v2187 = vmul.f32 %v2185, %v315
        %v2188 = vmul.f32 %v2186, %v316
        %2189 = vset.pattern.permute.xlu0 31
        %2190 = vperm.xlu0 %2189, %v1697
        %v2191 = vpop.permute.xlu0 %2190
        %v2193 = vmul.f32 %v2187, %v2191
        %v2194 = vmul.f32 %v2188, %v2191
        %v2195 = vadd.f32 %v2131, %v2193
        %v2196 = vadd.f32 %v2132, %v2194
        %2197 = vrot.lane.b32.xlu0 %v1690, 111
        %v2198 = vpop.permute.xlu0 %2197
        %2199 = vrot.lane.b32.xlu0 %v1692, 111
        %v2200 = vpop.permute.xlu0 %2199
        %v2201 = vsel %vm388, %v2198, %v2200
        %v2202 = vsel %vm388, %v2200, %v2198
        %v2203 = vmul.f32 %v2201, %v319
        %v2204 = vmul.f32 %v2202, %v320
        %2205 = vset.pattern.permute.xlu0 32
        %2206 = vperm.xlu0 %2205, %v1697
        %v2207 = vpop.permute.xlu0 %2206
        %v2209 = vmul.f32 %v2203, %v2207
        %v2210 = vmul.f32 %v2204, %v2207
        %v2211 = vadd.f32 %v2147, %v2209
        %v2212 = vadd.f32 %v2148, %v2210
        %2213 = vrot.lane.b32.xlu0 %v1690, 110
        %v2214 = vpop.permute.xlu0 %2213
        %2215 = vrot.lane.b32.xlu0 %v1692, 110
        %v2216 = vpop.permute.xlu0 %2215
        %v2217 = vsel %vm1166, %v2214, %v2216
        %v2218 = vsel %vm1166, %v2216, %v2214
        %v2219 = vmul.f32 %v2217, %v560
        %v2220 = vmul.f32 %v2218, %v561
        %2221 = vset.pattern.permute.xlu0 33
        %2222 = vperm.xlu0 %2221, %v1697
        %v2223 = vpop.permute.xlu0 %2222
        %v2225 = vmul.f32 %v2219, %v2223
        %v2226 = vmul.f32 %v2220, %v2223
        %v2227 = vadd.f32 %v2163, %v2225
        %v2228 = vadd.f32 %v2164, %v2226
        %2229 = vrot.lane.b32.xlu0 %v1690, 109
        %v2230 = vpop.permute.xlu0 %2229
        %2231 = vrot.lane.b32.xlu0 %v1692, 109
        %v2232 = vpop.permute.xlu0 %2231
        %v2233 = vsel %vm1183, %v2230, %v2232
        %v2234 = vsel %vm1183, %v2232, %v2230
        %v2235 = vmul.f32 %v2233, %v564
        %v2236 = vmul.f32 %v2234, %v565
        %2237 = vset.pattern.permute.xlu0 34
        %2238 = vperm.xlu0 %2237, %v1697
        %v2239 = vpop.permute.xlu0 %2238
        %v2241 = vmul.f32 %v2235, %v2239
        %v2242 = vmul.f32 %v2236, %v2239
        %v2243 = vadd.f32 %v2179, %v2241
        %v2244 = vadd.f32 %v2180, %v2242
        %2245 = vrot.lane.b32.xlu0 %v1690, 99
        %v2246 = vpop.permute.xlu0 %2245
        %2247 = vrot.lane.b32.xlu0 %v1692, 99
        %v2248 = vpop.permute.xlu0 %2247
        %v2249 = vsel %vm1200, %v2246, %v2248
        %v2250 = vsel %vm1200, %v2248, %v2246
        %v2251 = vmul.f32 %v2249, %v570
        %v2252 = vmul.f32 %v2250, %v571
        %2253 = vset.pattern.permute.xlu0 35
        %2254 = vperm.xlu0 %2253, %v1697
        %v2255 = vpop.permute.xlu0 %2254
        %v2257 = vmul.f32 %v2251, %v2255
        %v2258 = vmul.f32 %v2252, %v2255
        %v2259 = vadd.f32 %v2195, %v2257
        %v2260 = vadd.f32 %v2196, %v2258
        %2261 = vrot.lane.b32.xlu0 %v1690, 98
        %v2262 = vpop.permute.xlu0 %2261
        %2263 = vrot.lane.b32.xlu0 %v1692, 98
        %v2264 = vpop.permute.xlu0 %2263
        %v2265 = vsel %vm1217, %v2262, %v2264
        %v2266 = vsel %vm1217, %v2264, %v2262
        %v2267 = vmul.f32 %v2265, %v574
        %v2268 = vmul.f32 %v2266, %v575
        %2269 = vset.pattern.permute.xlu0 36
        %2270 = vperm.xlu0 %2269, %v1697
        %v2271 = vpop.permute.xlu0 %2270
        %v2273 = vmul.f32 %v2267, %v2271
        %v2274 = vmul.f32 %v2268, %v2271
        %v2275 = vadd.f32 %v2211, %v2273
        %v2276 = vadd.f32 %v2212, %v2274
        %2277 = vrot.lane.b32.xlu0 %v1690, 97
        %v2278 = vpop.permute.xlu0 %2277
        %2279 = vrot.lane.b32.xlu0 %v1692, 97
        %v2280 = vpop.permute.xlu0 %2279
        %v2281 = vsel %vm1234, %v2278, %v2280
        %v2282 = vsel %vm1234, %v2280, %v2278
        %v2283 = vmul.f32 %v2281, %v578
        %v2284 = vmul.f32 %v2282, %v579
        %2285 = vset.pattern.permute.xlu0 37
        %2286 = vperm.xlu0 %2285, %v1697
        %v2287 = vpop.permute.xlu0 %2286
        %v2289 = vmul.f32 %v2283, %v2287
        %v2290 = vmul.f32 %v2284, %v2287
        %v2291 = vadd.f32 %v2227, %v2289
        %v2292 = vadd.f32 %v2228, %v2290
        %2293 = vrot.lane.b32.xlu0 %v1690, 96
        %v2294 = vpop.permute.xlu0 %2293
        %2295 = vrot.lane.b32.xlu0 %v1692, 96
        %v2296 = vpop.permute.xlu0 %2295
        %v2297 = vsel %vm1251, %v2294, %v2296
        %v2298 = vsel %vm1251, %v2296, %v2294
        %v2299 = vmul.f32 %v2297, %v580
        %v2300 = vmul.f32 %v2298, %v581
        %2301 = vset.pattern.permute.xlu0 38
        %2302 = vperm.xlu0 %2301, %v1697
        %v2303 = vpop.permute.xlu0 %2302
        %v2305 = vmul.f32 %v2299, %v2303
        %v2306 = vmul.f32 %v2300, %v2303
        %v2307 = vadd.f32 %v2243, %v2305
        %v2308 = vadd.f32 %v2244, %v2306
        %2309 = vrot.lane.b32.xlu0 %v1690, 95
        %v2310 = vpop.permute.xlu0 %2309
        %2311 = vrot.lane.b32.xlu0 %v1692, 95
        %v2312 = vpop.permute.xlu0 %2311
        %v2313 = vsel %vm1268, %v2310, %v2312
        %v2314 = vsel %vm1268, %v2312, %v2310
        %v2315 = vmul.f32 %v2313, %v584
        %v2316 = vmul.f32 %v2314, %v585
        %2317 = vset.pattern.permute.xlu0 39
        %2318 = vperm.xlu0 %2317, %v1697
        %v2319 = vpop.permute.xlu0 %2318
        %v2321 = vmul.f32 %v2315, %v2319
        %v2322 = vmul.f32 %v2316, %v2319
        %v2323 = vadd.f32 %v2259, %v2321
        %v2324 = vadd.f32 %v2260, %v2322
        %2325 = vrot.lane.b32.xlu0 %v1690, 94
        %v2326 = vpop.permute.xlu0 %2325
        %2327 = vrot.lane.b32.xlu0 %v1692, 94
        %v2328 = vpop.permute.xlu0 %2327
        %v2329 = vsel %vm1285, %v2326, %v2328
        %v2330 = vsel %vm1285, %v2328, %v2326
        %v2331 = vmul.f32 %v2329, %v588
        %v2332 = vmul.f32 %v2330, %v589
        %2333 = vset.pattern.permute.xlu0 40
        %2334 = vperm.xlu0 %2333, %v1697
        %v2335 = vpop.permute.xlu0 %2334
        %v2337 = vmul.f32 %v2331, %v2335
        %v2338 = vmul.f32 %v2332, %v2335
        %v2339 = vadd.f32 %v2275, %v2337
        %v2340 = vadd.f32 %v2276, %v2338
        %2341 = vrot.lane.b32.xlu0 %v1690, 93
        %v2342 = vpop.permute.xlu0 %2341
        %2343 = vrot.lane.b32.xlu0 %v1692, 93
        %v2344 = vpop.permute.xlu0 %2343
        %v2345 = vsel %vm1302, %v2342, %v2344
        %v2346 = vsel %vm1302, %v2344, %v2342
        %v2347 = vmul.f32 %v2345, %v592
        %v2348 = vmul.f32 %v2346, %v593
        %2349 = vset.pattern.permute.xlu0 41
        %2350 = vperm.xlu0 %2349, %v1697
        %v2351 = vpop.permute.xlu0 %2350
        %v2353 = vmul.f32 %v2347, %v2351
        %v2354 = vmul.f32 %v2348, %v2351
        %v2355 = vadd.f32 %v2291, %v2353
        %v2356 = vadd.f32 %v2292, %v2354
        %2357 = vrot.lane.b32.xlu0 %v1690, 83
        %v2358 = vpop.permute.xlu0 %2357
        %2359 = vrot.lane.b32.xlu0 %v1692, 83
        %v2360 = vpop.permute.xlu0 %2359
        %v2361 = vsel %vm1319, %v2358, %v2360
        %v2362 = vsel %vm1319, %v2360, %v2358
        %v2363 = vmul.f32 %v2361, %v598
        %v2364 = vmul.f32 %v2362, %v599
        %2365 = vset.pattern.permute.xlu0 42
        %2366 = vperm.xlu0 %2365, %v1697
        %v2367 = vpop.permute.xlu0 %2366
        %v2369 = vmul.f32 %v2363, %v2367
        %v2370 = vmul.f32 %v2364, %v2367
        %v2371 = vadd.f32 %v2307, %v2369
        %v2372 = vadd.f32 %v2308, %v2370
        %2373 = vrot.lane.b32.xlu0 %v1690, 82
        %v2374 = vpop.permute.xlu0 %2373
        %2375 = vrot.lane.b32.xlu0 %v1692, 82
        %v2376 = vpop.permute.xlu0 %2375
        %v2377 = vsel %vm1336, %v2374, %v2376
        %v2378 = vsel %vm1336, %v2376, %v2374
        %v2379 = vmul.f32 %v2377, %v602
        %v2380 = vmul.f32 %v2378, %v603
        %2381 = vset.pattern.permute.xlu0 43
        %2382 = vperm.xlu0 %2381, %v1697
        %v2383 = vpop.permute.xlu0 %2382
        %v2385 = vmul.f32 %v2379, %v2383
        %v2386 = vmul.f32 %v2380, %v2383
        %v2387 = vadd.f32 %v2323, %v2385
        %v2388 = vadd.f32 %v2324, %v2386
        %2389 = vrot.lane.b32.xlu0 %v1690, 81
        %v2390 = vpop.permute.xlu0 %2389
        %2391 = vrot.lane.b32.xlu0 %v1692, 81
        %v2392 = vpop.permute.xlu0 %2391
        %v2393 = vsel %vm1353, %v2390, %v2392
        %v2394 = vsel %vm1353, %v2392, %v2390
        %v2395 = vmul.f32 %v2393, %v606
        %v2396 = vmul.f32 %v2394, %v607
        %2397 = vset.pattern.permute.xlu0 44
        %2398 = vperm.xlu0 %2397, %v1697
        %v2399 = vpop.permute.xlu0 %2398
        %v2401 = vmul.f32 %v2395, %v2399
        %v2402 = vmul.f32 %v2396, %v2399
        %v2403 = vadd.f32 %v2339, %v2401
        %v2404 = vadd.f32 %v2340, %v2402
        %2405 = vrot.lane.b32.xlu0 %v1690, 80
        %v2406 = vpop.permute.xlu0 %2405
        %2407 = vrot.lane.b32.xlu0 %v1692, 80
        %v2408 = vpop.permute.xlu0 %2407
        %v2409 = vsel %vm1370, %v2406, %v2408
        %v2410 = vsel %vm1370, %v2408, %v2406
        %v2411 = vmul.f32 %v2409, %v608
        %v2412 = vmul.f32 %v2410, %v609
        %2413 = vset.pattern.permute.xlu0 45
        %2414 = vperm.xlu0 %2413, %v1697
        %v2415 = vpop.permute.xlu0 %2414
        %v2417 = vmul.f32 %v2411, %v2415
        %v2418 = vmul.f32 %v2412, %v2415
        %v2419 = vadd.f32 %v2355, %v2417
        %v2420 = vadd.f32 %v2356, %v2418
        %2421 = vrot.lane.b32.xlu0 %v1690, 79
        %v2422 = vpop.permute.xlu0 %2421
        %2423 = vrot.lane.b32.xlu0 %v1692, 79
        %v2424 = vpop.permute.xlu0 %2423
        %v2425 = vsel %vm1387, %v2422, %v2424
        %v2426 = vsel %vm1387, %v2424, %v2422
        %v2427 = vmul.f32 %v2425, %v612
        %v2428 = vmul.f32 %v2426, %v613
        %2429 = vset.pattern.permute.xlu0 46
        %2430 = vperm.xlu0 %2429, %v1697
        %v2431 = vpop.permute.xlu0 %2430
        %v2433 = vmul.f32 %v2427, %v2431
        %v2434 = vmul.f32 %v2428, %v2431
        %v2435 = vadd.f32 %v2371, %v2433
        %v2436 = vadd.f32 %v2372, %v2434
        %2437 = vrot.lane.b32.xlu0 %v1690, 78
        %v2438 = vpop.permute.xlu0 %2437
        %2439 = vrot.lane.b32.xlu0 %v1692, 78
        %v2440 = vpop.permute.xlu0 %2439
        %v2441 = vsel %vm1404, %v2438, %v2440
        %v2442 = vsel %vm1404, %v2440, %v2438
        %v2443 = vmul.f32 %v2441, %v616
        %v2444 = vmul.f32 %v2442, %v617
        %2445 = vset.pattern.permute.xlu0 47
        %2446 = vperm.xlu0 %2445, %v1697
        %v2447 = vpop.permute.xlu0 %2446
        %v2449 = vmul.f32 %v2443, %v2447
        %v2450 = vmul.f32 %v2444, %v2447
        %v2451 = vadd.f32 %v2387, %v2449
        %v2452 = vadd.f32 %v2388, %v2450
        %2453 = vrot.lane.b32.xlu0 %v1690, 77
        %v2454 = vpop.permute.xlu0 %2453
        %2455 = vrot.lane.b32.xlu0 %v1692, 77
        %v2456 = vpop.permute.xlu0 %2455
        %v2457 = vsel %vm1421, %v2454, %v2456
        %v2458 = vsel %vm1421, %v2456, %v2454
        %v2459 = vmul.f32 %v2457, %v620
        %v2460 = vmul.f32 %v2458, %v621
        %2461 = vset.pattern.permute.xlu0 48
        %2462 = vperm.xlu0 %2461, %v1697
        %v2463 = vpop.permute.xlu0 %2462
        %v2465 = vmul.f32 %v2459, %v2463
        %v2466 = vmul.f32 %v2460, %v2463
        %v2467 = vadd.f32 %v2403, %v2465
        %v2468 = vadd.f32 %v2404, %v2466
        %v2469 = vadd.f32 %v2467, %v2419
        %v2470 = vadd.f32 %v2468, %v2420
        %v2471 = vadd.f32 %v2435, %v2451
        %v2472 = vadd.f32 %v2436, %v2452
        %v2473 = vadd.f32 %v2469, %v2471
        %v2474 = vadd.f32 %v2470, %v2472
        %2476 = vset.pattern.permute.xlu0 0
        %2477 = vperm.xlu0 %2476, %v1699
        %v2478 = vpop.permute.xlu0 %2477
        %v2480 = vadd.f32 %v2473, %v2478
        %v2481 = vadd.f32 %v2474, %v2478
        %v2482 = vadd.f32 %v456, %v2480
        %v2483 = vadd.f32 %v458, %v2481
        %2484 = vst [vmem:[%s271] sm:$0xff] %v2482
        %2485 = vst [vmem:[%s271 + $0x8] sm:$0xff] %v2483
        %s2486 = sand.u32 %s181, 1
        %s2487 = scalar_lea.sflag [#allocation3], %s2486
        %s2488 = sand.u32 %s181, 1
        %s2489 = smul.addr %s2488, 16
        %s2490 = scalar_lea.vmem [#allocation2], %s2489
        // Predicated region
        $region49: #{tpu_custom_call.1} parent=47 // pred_check
          %p2491 = pneg %p191
        $region50: #{tpu_custom_call.1} parent=47 // pred_check_branch
          %2493 = sbr.rel (%p2491) target = $region52
        $region51: #{tpu_custom_call.1} parent=47 // pred_region
          %s2495 = ssub.s32 256, 256
          %2496 = vsyncadd %s2487, %s2495
          %s2497 = smul.addr %s21, 2
          %s2498 = smul.addr %s2497, 128
          %s2499 = scalar_lea.hbm %s7, %s2498
          %s2501 = sshll.u32 %s2490, 4
          %s2502 = int_to_ptr.vmem [resolvable:$true] %s2501
          %2504 = dma.vmem_to_hbm [thread:$0]  %s2502, 256, %s2499, %s2487
        $region52: #{tpu_custom_call.1} parent=47 // pred_fallthru
          _
      $region48: #{tpu_custom_call.1} parent=5 // pred_fallthru
        _
      %p2505 = scmp.le.s32.totalorder 2, %s16
      // Predicated region
      $region53: #{tpu_custom_call.1} parent=5 // pred_check
        %p2506 = pneg %p2505
      $region54: #{tpu_custom_call.1} parent=5 // pred_check_branch
        %2508 = sbr.rel (%p2506) target = $region56
      $region55: #{tpu_custom_call.1} parent=5 // pred_region
        %s2509 = ssub.s32 %s16, 2
        // Predicated region
        $region57: #{tpu_custom_call.1} parent=55 // pred_check
          %p2510 = pneg %p197
        $region58: #{tpu_custom_call.1} parent=55 // pred_check_branch
          %2512 = sbr.rel (%p2510) target = $region60
        $region59: #{tpu_custom_call.1} parent=55 // pred_region
          %s2513 = sand.u32 %s182, 1
          %s2514 = scalar_lea.sflag [#allocation3], %s2513
          %s2515 = sand.u32 %s182, 1
          %s2516 = smul.addr %s2515, 16
          %s2517 = scalar_lea.vmem [#allocation2], %s2516
          %2518 = dma.done %s2514, 256
        $region60: #{tpu_custom_call.1} parent=55 // pred_fallthru
          _
      $region56: #{tpu_custom_call.1} parent=5 // pred_fallthru
        _
    $region6: #{tpu_custom_call.1} parent=1 // loop_footer
      %s20 = sadd.s32 1, %s16
    $region7: #{tpu_custom_call.1} parent=1 // loop_footer_branch
      %15 = sbr.rel target = $region3
    $region8: #{tpu_custom_call.1} parent=1 // loop_exit
      _
    %2519 = vsyncpa [#allocation3], 1
    %s2520 = scalar_lea.sflag [#allocation3], 1
    %2521 = vsyncpa %s2520, 1

</llo_original>
